<compile_context>
chip_gen: v5e
topology: v5e:2x2
jax: 0.10.0
libtpu: 0.0.40
codegen_flags: <defaults>
</compile_context>

<pallas_src>
import math

import jax
import jax.numpy as jnp
from jax import lax
from jax.experimental import pallas as pl
from jax.experimental.pallas import tpu as pltpu

_HIGH = jax.lax.Precision.HIGHEST


def _sigmoid(v):
    return 1.0 / (1.0 + jnp.exp(-v))


def _softplus(v):
    # numerically stable, matches torch.nn.functional.softplus
    return jnp.maximum(v, 0.0) + jnp.log(1.0 + jnp.exp(-jnp.abs(v)))


# ------------------------------ Pallas kernel ------------------------------ #
def _bimamba_kernel(h_ref, w_in_x_ref, w_in_z_ref, w_out_ref,
                    cw_f_ref, cb_f_ref, wdt_f_ref, bdt_f_ref, wxb_f_ref,
                    wxc_f_ref, nega_f_ref, dsk_f_ref,
                    cw_r_ref, cb_r_ref, wdt_r_ref, bdt_r_ref, wxb_r_ref,
                    wxc_r_ref, nega_r_ref, dsk_r_ref,
                    o_ref,
                    dA_ref, bu_ref, s_ref):
    L = h_ref.shape[1]
    d_inner = w_in_x_ref.shape[1]
    d_state = wxc_f_ref.shape[1]
    d_conv = cw_f_ref.shape[0]

    def dot(a, b):
        return jnp.dot(a, b, preferred_element_type=jnp.float32, precision=_HIGH)

    def silu(v):
        return v * (1.0 / (1.0 + jnp.exp(-v)))

    def softplus(v):
        return jnp.maximum(v, 0.0) + jnp.log(1.0 + jnp.exp(-jnp.abs(v)))

    h2 = h_ref[0]                                     # (L, D)
    # tied in_proj: compute x / z once, shared by both directions
    x = dot(h2, w_in_x_ref[...])                      # (L, d_inner)
    z = dot(h2, w_in_z_ref[...])                      # (L, d_inner)

    tpos = lax.broadcasted_iota(jnp.int32, (L, 1), 0)

    def run_direction(cw_ref, cb_ref, wdt_ref, bdt_ref, wxb_ref, wxc_ref,
                      nega_ref, dsk_ref, reverse):
        # ---- depthwise conv as shifted adds (causal fwd / anti-causal rev) --
        cw = cw_ref[...]                              # (d_conv, d_inner)
        acc = jnp.zeros((L, d_inner), jnp.float32) + cb_ref[...]
        for k in range(d_conv):
            shift = d_conv - 1 - k
            if shift == 0:
                xs = x
            elif not reverse:
                # xs[t] = x[t - shift], zero-padded at the start
                xs = jnp.where(tpos >= shift,
                               pltpu.roll(x, shift=shift, axis=0), 0.0)
            else:
                # xs[t] = x[t + shift], zero-padded at the end
                xs = jnp.where(tpos < L - shift,
                               pltpu.roll(x, shift=L - shift, axis=0), 0.0)
            acc = acc + xs * cw[k:k + 1, :]
        xc = silu(acc)                                # (L, d_inner)

        # ---- input-dependent SSM parameters (dt proj pre-fused) -------------
        delta = softplus(dot(xc, wdt_ref[...]) + bdt_ref[...])   # (L, d_inner)
        bm = dot(xc, wxb_ref[...])                    # (L, N)  time-major B
        cm = dot(xc, wxc_ref[...])                    # (L, N)  time-major C
        u = delta * xc                                # (L, d_inner)
        nega = nega_ref[...]                          # (N, d_inner)

        # ---- hoist exp / B(x)u off the serial chain, layout (L, N*d_inner) --
        dA_ref[...] = jnp.concatenate(
            [jnp.exp(delta * nega[n:n + 1, :]) for n in range(d_state)], axis=1)
        bu_ref[...] = jnp.concatenate(
            [bm[:, n:n + 1] * u for n in range(d_state)], axis=1)

        # ---- selective scan: one FMA + one row store per step ---------------
        def body(i, hstate):
            t = (L - 1 - i) if reverse else i
            hstate = dA_ref[pl.ds(t, 1), :] * hstate + bu_ref[pl.ds(t, 1), :]
            s_ref[pl.ds(t, 1), :] = hstate
            return hstate

        init = jnp.zeros((1, d_state * d_inner), jnp.float32)
        if L <= 32:
            lax.fori_loop(0, L, body, init, unroll=True)
        else:
            lax.fori_loop(0, L, body, init)

        # ---- y from the stored states (vectorized over L, off the chain) ----
        s_all = s_ref[...]                            # (L, N*d_inner)
        y = dsk_ref[...] * xc                         # D skip connection
        for n in range(d_state):
            y = y + cm[:, n:n + 1] * s_all[:, n * d_inner:(n + 1) * d_inner]
        return y

    y_f = run_direction(cw_f_ref, cb_f_ref, wdt_f_ref, bdt_f_ref, wxb_f_ref,
                        wxc_f_ref, nega_f_ref, dsk_f_ref, reverse=False)
    y_r = run_direction(cw_r_ref, cb_r_ref, wdt_r_ref, bdt_r_ref, wxb_r_ref,
                        wxc_r_ref, nega_r_ref, dsk_r_ref, reverse=True)

    # tied out_proj applied once to the gated sum (strategy = "add")
    gate = z * (1.0 / (1.0 + jnp.exp(-z)))            # SiLU(z), shared gate
    o_ref[0] = dot((y_f + y_r) * gate, w_out_ref[...])


def bimamba_forward_pallas(h, p_shared, p_fwd, p_rev):
    """BiMambaWrapper.forward (bidirectional=True, strategy='add', tied proj)."""
    batch, seqlen, d_model = h.shape
    d_inner = p_shared["w_in_x"].shape[1]
    d_state = p_fwd["w_xc"].shape[1]

    dir_keys = ("conv_w", "conv_b", "w_dt_fused", "b_dt",
                "w_xb", "w_xc", "neg_a", "d_skip")
    params = [p_shared["w_in_x"], p_shared["w_in_z"], p_shared["w_out"]]
    params += [p_fwd[k] for k in dir_keys] + [p_rev[k] for k in dir_keys]

    def const_spec(a):
        return pl.BlockSpec(a.shape, lambda b, _n=a.ndim: (0,) * _n)

    scan_w = d_state * d_inner
    return pl.pallas_call(
        _bimamba_kernel,
        out_shape=jax.ShapeDtypeStruct((batch, seqlen, d_model), jnp.float32),
        grid=(batch,),
        in_specs=[pl.BlockSpec((1, seqlen, d_model), lambda b: (b, 0, 0))]
                 + [const_spec(a) for a in params],
        out_specs=pl.BlockSpec((1, seqlen, d_model), lambda b: (b, 0, 0)),
        scratch_shapes=[pltpu.VMEM((seqlen, scan_w), jnp.float32),   # dA
                        pltpu.VMEM((seqlen, scan_w), jnp.float32),   # B (x) u
                        pltpu.VMEM((seqlen, scan_w), jnp.float32)],  # states
        compiler_params=pltpu.CompilerParams(
            dimension_semantics=("parallel",)),
    )(h, *params)


# --------------------------- parameter handling ----------------------------- #
def init_mamba_params(key, d_model, d_state=16, d_conv=4, expand=2,
                      dt_min=0.001, dt_max=0.1, dt_init_floor=1e-4, tied=None):
    """Raw parameters in PyTorch layout (one Mamba direction)."""
    d_inner = int(expand * d_model)
    dt_rank = math.ceil(d_model / 16)
    keys = jax.random.split(key, 8)

    def unif(k, shape, bound):
        return jax.random.uniform(k, shape, jnp.float32, -bound, bound)

    if tied is None:
        in_proj_w = unif(keys[0], (2 * d_inner, d_model), 1.0 / math.sqrt(d_model))
        out_proj_w = unif(keys[1], (d_model, d_inner), 1.0 / math.sqrt(d_inner))
    else:
        in_proj_w, out_proj_w = tied      # bidirectional_weight_tie=True

    conv_w = unif(keys[2], (d_inner, d_conv), 1.0 / math.sqrt(d_conv))
    conv_b = unif(keys[3], (d_inner,), 1.0 / math.sqrt(d_conv))
    x_proj_w = unif(keys[4], (dt_rank + 2 * d_state, d_inner), 1.0 / math.sqrt(d_inner))
    dt_proj_w = unif(keys[5], (d_inner, dt_rank), dt_rank ** -0.5)
    dt = jnp.exp(jax.random.uniform(keys[6], (d_inner,), jnp.float32)
                 * (math.log(dt_max) - math.log(dt_min)) + math.log(dt_min))
    dt = jnp.maximum(dt, dt_init_floor)
    inv_dt = dt + jnp.log(-jnp.expm1(-dt))                       # dt_proj.bias
    a_log = jnp.log(jnp.broadcast_to(
        jnp.arange(1, d_state + 1, dtype=jnp.float32), (d_inner, d_state)))

    raw = {
        "in_proj_w": in_proj_w, "out_proj_w": out_proj_w,
        "conv_w": conv_w, "conv_b": conv_b,
        "x_proj_w": x_proj_w, "dt_proj_w": dt_proj_w, "dt_proj_b": inv_dt,
        "A_log": a_log, "D": jnp.ones((d_inner,), jnp.float32),
    }
    return raw, (in_proj_w, out_proj_w)


def prepare_shared(raw):
    d_inner = raw["dt_proj_w"].shape[0]
    w = raw["in_proj_w"]
    return {"w_in_x": w[:d_inner].T,                # (D, d_inner)
            "w_in_z": w[d_inner:].T,                # (D, d_inner)
            "w_out": raw["out_proj_w"].T}           # (d_inner, D)


def prepare_direction(raw):
    d_inner = raw["dt_proj_w"].shape[0]
    d_state = raw["A_log"].shape[1]
    dt_rank = raw["dt_proj_w"].shape[1]
    xw = raw["x_proj_w"]
    # pre-fuse the tiny-rank dt projection into one (d_inner, d_inner) matmul
    w_dt_fused = jnp.dot(xw[:dt_rank].T, raw["dt_proj_w"].T, precision=_HIGH)
    return {
        "conv_w": raw["conv_w"].T,                          # (d_conv, d_inner)
        "conv_b": raw["conv_b"].reshape(1, d_inner),
        "w_dt_fused": w_dt_fused,                           # (d_inner, d_inner)
        "b_dt": raw["dt_proj_b"].reshape(1, d_inner),
        "w_xb": xw[dt_rank:dt_rank + d_state].T,            # (d_inner, N)
        "w_xc": xw[dt_rank + d_state:].T,                   # (d_inner, N)
        "neg_a": -jnp.exp(raw["A_log"]).T,                  # (N, d_inner)
        "d_skip": raw["D"].reshape(1, d_inner),
    }


# ---------------------------- pure-JAX reference ---------------------------- #
def mamba_ref(h, raw):
    B, L, _ = h.shape
    d_inner = raw["dt_proj_w"].shape[0]
    d_state = raw["A_log"].shape[1]
    d_conv = raw["conv_w"].shape[1]
    dt_rank = raw["dt_proj_w"].shape[1]
    in_w = raw["in_proj_w"]
    x = jnp.einsum("bld,id->bli", h, in_w[:d_inner], precision=_HIGH)
    z = jnp.einsum("bld,id->bli", h, in_w[d_inner:], precision=_HIGH)
    xp = jnp.pad(x, ((0, 0), (d_conv - 1, 0), (0, 0)))
    acc = jnp.zeros_like(x) + raw["conv_b"][None, None, :]
    for k in range(d_conv):
        acc = acc + xp[:, k:k + L, :] * raw["conv_w"][:, k][None, None, :]
    xc = acc * _sigmoid(acc)
    dt_low = jnp.einsum("bli,ri->blr", xc, raw["x_proj_w"][:dt_rank], precision=_HIGH)
    dt = jnp.einsum("blr,ir->bli", dt_low, raw["dt_proj_w"], precision=_HIGH)
    delta = _softplus(dt + raw["dt_proj_b"][None, None, :])
    bm = jnp.einsum("bli,ni->bln", xc,
                    raw["x_proj_w"][dt_rank:dt_rank + d_state], precision=_HIGH)
    cm = jnp.einsum("bli,ni->bln", xc,
                    raw["x_proj_w"][dt_rank + d_state:], precision=_HIGH)
    neg_a = -jnp.exp(raw["A_log"]).T                    # (N, d_inner)
    u = delta * xc
    s = jnp.zeros((B, d_state, d_inner), jnp.float32)
    ys = []
    for t in range(L):
        dA = jnp.exp(delta[:, t, None, :] * neg_a[None, :, :])
        s = dA * s + bm[:, t, :, None] * u[:, t, None, :]
        ys.append(jnp.einsum("bn,bni->bi", cm[:, t], s, precision=_HIGH))
    y = jnp.stack(ys, axis=1)
    y = y + raw["D"][None, None, :] * xc
    y = y * (z * _sigmoid(z))
    return jnp.einsum("bli,di->bld", y, raw["out_proj_w"], precision=_HIGH)


def bimamba_ref(h, raw_fwd, raw_rev):
    out = mamba_ref(h, raw_fwd)
    out_rev = mamba_ref(jnp.flip(h, axis=1), raw_rev)
    return out + jnp.flip(out_rev, axis=1)


# ----------------------------------- main ----------------------------------- #
if __name__ == "__main__":
    d_model, seqlen, batch = 64, 8, 2     # d_inner=128, d_state=16, dt_rank=4, d_conv=4
    key = jax.random.PRNGKey(0)
    k_in, k_fwd, k_rev = jax.random.split(key, 3)

    raw_fwd, tied = init_mamba_params(k_fwd, d_model)
    raw_rev, _ = init_mamba_params(k_rev, d_model, tied=tied)   # tied in/out proj

    h = jax.random.normal(k_in, (batch, seqlen, d_model), jnp.float32)

    p_shared = prepare_shared(raw_fwd)
    p_fwd = prepare_direction(raw_fwd)
    p_rev = prepare_direction(raw_rev)

    out = jax.jit(bimamba_forward_pallas)(h, p_shared, p_fwd, p_rev)
    out = jax.block_until_ready(out)

    ref = bimamba_ref(h, raw_fwd, raw_rev)
    assert out.shape == h.shape, (out.shape, h.shape)
    max_err = float(jnp.max(jnp.abs(out - ref)))
    assert jnp.allclose(out, ref, rtol=1e-3, atol=1e-3), f"max_err={max_err}"
    print("KERNEL_OK")
</pallas_src>

<mosaic_0001>
module attributes {stable_mosaic.version = 11 : i64} {
  func.func @_bimamba_kernel(%arg0: i32, %arg1: memref<1x8x64xf32, #tpu.memory_space<vmem>>, %arg2: memref<64x128xf32, #tpu.memory_space<vmem>>, %arg3: memref<64x128xf32, #tpu.memory_space<vmem>>, %arg4: memref<128x64xf32, #tpu.memory_space<vmem>>, %arg5: memref<4x128xf32, #tpu.memory_space<vmem>>, %arg6: memref<1x128xf32, #tpu.memory_space<vmem>>, %arg7: memref<128x128xf32, #tpu.memory_space<vmem>>, %arg8: memref<1x128xf32, #tpu.memory_space<vmem>>, %arg9: memref<128x16xf32, #tpu.memory_space<vmem>>, %arg10: memref<128x16xf32, #tpu.memory_space<vmem>>, %arg11: memref<16x128xf32, #tpu.memory_space<vmem>>, %arg12: memref<1x128xf32, #tpu.memory_space<vmem>>, %arg13: memref<4x128xf32, #tpu.memory_space<vmem>>, %arg14: memref<1x128xf32, #tpu.memory_space<vmem>>, %arg15: memref<128x128xf32, #tpu.memory_space<vmem>>, %arg16: memref<1x128xf32, #tpu.memory_space<vmem>>, %arg17: memref<128x16xf32, #tpu.memory_space<vmem>>, %arg18: memref<128x16xf32, #tpu.memory_space<vmem>>, %arg19: memref<16x128xf32, #tpu.memory_space<vmem>>, %arg20: memref<1x128xf32, #tpu.memory_space<vmem>>, %arg21: memref<1x8x64xf32, #tpu.memory_space<vmem>>, %arg22: memref<8x2048xf32, #tpu.memory_space<vmem>>, %arg23: memref<8x2048xf32, #tpu.memory_space<vmem>>, %arg24: memref<8x2048xf32, #tpu.memory_space<vmem>>) attributes {dimension_semantics = [#tpu.dimension_semantics<parallel>], iteration_bounds = array<i64: 2>, scalar_prefetch = 0 : i64, scratch_operands = 3 : i64, tpu.core_type = #tpu.core_type<tc>, window_params = [{transform_indices = @transform_0, window_bounds = array<i64: 1, 8, 64>}, {pipeline_mode = #tpu.pipeline_mode<synchronous>, transform_indices = @transform_1, window_bounds = array<i64: 64, 128>}, {pipeline_mode = #tpu.pipeline_mode<synchronous>, transform_indices = @transform_2, window_bounds = array<i64: 64, 128>}, {pipeline_mode = #tpu.pipeline_mode<synchronous>, transform_indices = @transform_3, window_bounds = array<i64: 128, 64>}, {pipeline_mode = #tpu.pipeline_mode<synchronous>, transform_indices = @transform_4, window_bounds = array<i64: 4, 128>}, {pipeline_mode = #tpu.pipeline_mode<synchronous>, transform_indices = @transform_5, window_bounds = array<i64: 1, 128>}, {pipeline_mode = #tpu.pipeline_mode<synchronous>, transform_indices = @transform_6, window_bounds = array<i64: 128, 128>}, {pipeline_mode = #tpu.pipeline_mode<synchronous>, transform_indices = @transform_7, window_bounds = array<i64: 1, 128>}, {pipeline_mode = #tpu.pipeline_mode<synchronous>, transform_indices = @transform_8, window_bounds = array<i64: 128, 16>}, {pipeline_mode = #tpu.pipeline_mode<synchronous>, transform_indices = @transform_9, window_bounds = array<i64: 128, 16>}, {pipeline_mode = #tpu.pipeline_mode<synchronous>, transform_indices = @transform_10, window_bounds = array<i64: 16, 128>}, {pipeline_mode = #tpu.pipeline_mode<synchronous>, transform_indices = @transform_11, window_bounds = array<i64: 1, 128>}, {pipeline_mode = #tpu.pipeline_mode<synchronous>, transform_indices = @transform_12, window_bounds = array<i64: 4, 128>}, {pipeline_mode = #tpu.pipeline_mode<synchronous>, transform_indices = @transform_13, window_bounds = array<i64: 1, 128>}, {pipeline_mode = #tpu.pipeline_mode<synchronous>, transform_indices = @transform_14, window_bounds = array<i64: 128, 128>}, {pipeline_mode = #tpu.pipeline_mode<synchronous>, transform_indices = @transform_15, window_bounds = array<i64: 1, 128>}, {pipeline_mode = #tpu.pipeline_mode<synchronous>, transform_indices = @transform_16, window_bounds = array<i64: 128, 16>}, {pipeline_mode = #tpu.pipeline_mode<synchronous>, transform_indices = @transform_17, window_bounds = array<i64: 128, 16>}, {pipeline_mode = #tpu.pipeline_mode<synchronous>, transform_indices = @transform_18, window_bounds = array<i64: 16, 128>}, {pipeline_mode = #tpu.pipeline_mode<synchronous>, transform_indices = @transform_19, window_bounds = array<i64: 1, 128>}, {transform_indices = @transform_20, window_bounds = array<i64: 1, 8, 64>}]} {
    %c0 = arith.constant 0 : index
    %c0_0 = arith.constant 0 : index
    %c0_1 = arith.constant 0 : index
    %0 = vector.load %arg1[%c0, %c0_0, %c0_1] : memref<1x8x64xf32, #tpu.memory_space<vmem>>, vector<1x8x64xf32>
    %1 = vector.shape_cast %0 : vector<1x8x64xf32> to vector<8x64xf32>
    %c0_2 = arith.constant 0 : index
    %c0_3 = arith.constant 0 : index
    %2 = vector.load %arg2[%c0_2, %c0_3] : memref<64x128xf32, #tpu.memory_space<vmem>>, vector<64x128xf32>
    %cst = arith.constant dense<0.000000e+00> : vector<8x128xf32>
    %3 = tpu.matmul %1, %2, %cst {dimension_numbers = #tpu.dot_dimension_numbers<[1], [0], [0], [1], [0, 0, 1, 1], [], []>, precision = #tpu.contract_precision<fp32>} : vector<8x64xf32>, vector<64x128xf32>, vector<8x128xf32> -> vector<8x128xf32>
    %c0_4 = arith.constant 0 : index
    %c0_5 = arith.constant 0 : index
    %4 = vector.load %arg3[%c0_4, %c0_5] : memref<64x128xf32, #tpu.memory_space<vmem>>, vector<64x128xf32>
    %cst_6 = arith.constant dense<0.000000e+00> : vector<8x128xf32>
    %5 = tpu.matmul %1, %4, %cst_6 {dimension_numbers = #tpu.dot_dimension_numbers<[1], [0], [0], [1], [0, 0, 1, 1], [], []>, precision = #tpu.contract_precision<fp32>} : vector<8x64xf32>, vector<64x128xf32>, vector<8x128xf32> -> vector<8x128xf32>
    %6 = tpu.iota {dimensions = array<i32: 0>} : vector<8x1xi32>
    %c0_7 = arith.constant 0 : index
    %c0_8 = arith.constant 0 : index
    %7 = vector.load %arg5[%c0_7, %c0_8] : memref<4x128xf32, #tpu.memory_space<vmem>>, vector<4x128xf32>
    %cst_9 = arith.constant 0.000000e+00 : f32
    %8 = vector.broadcast %cst_9 : f32 to vector<8x128xf32>
    %c0_10 = arith.constant 0 : index
    %c0_11 = arith.constant 0 : index
    %9 = vector.load %arg6[%c0_10, %c0_11] : memref<1x128xf32, #tpu.memory_space<vmem>>, vector<1x128xf32>
    %10 = vector.broadcast %9 : vector<1x128xf32> to vector<8x128xf32>
    %11 = arith.addf %8, %10 : vector<8x128xf32>
    %c3_i32 = arith.constant 3 : i32
    %12 = vector.broadcast %c3_i32 : i32 to vector<8x1xi32>
    %13 = arith.cmpi sge, %6, %12 : vector<8x1xi32>
    %c3_i32_12 = arith.constant 3 : i32
    %14 = tpu.dynamic_rotate %3 by %c3_i32_12 dim 0 : vector<8x128xf32>, i32 -> vector<8x128xf32>
    %cst_13 = arith.constant 0.000000e+00 : f32
    %15 = vector.shape_cast %13 : vector<8x1xi1> to vector<8x1xi1>
    %16 = vector.broadcast %15 : vector<8x1xi1> to vector<8x128xi1>
    %17 = vector.broadcast %cst_13 : f32 to vector<8x128xf32>
    %18 = arith.select %16, %14, %17 : vector<8x128xi1>, vector<8x128xf32>
    %19 = vector.extract_strided_slice %7 {offsets = [0, 0], sizes = [1, 128], strides = [1, 1]} : vector<4x128xf32> to vector<1x128xf32>
    %20 = vector.broadcast %19 : vector<1x128xf32> to vector<8x128xf32>
    %21 = arith.mulf %18, %20 : vector<8x128xf32>
    %22 = arith.addf %11, %21 : vector<8x128xf32>
    %c2_i32 = arith.constant 2 : i32
    %23 = vector.broadcast %c2_i32 : i32 to vector<8x1xi32>
    %24 = arith.cmpi sge, %6, %23 : vector<8x1xi32>
    %c2_i32_14 = arith.constant 2 : i32
    %25 = tpu.dynamic_rotate %3 by %c2_i32_14 dim 0 : vector<8x128xf32>, i32 -> vector<8x128xf32>
    %cst_15 = arith.constant 0.000000e+00 : f32
    %26 = vector.shape_cast %24 : vector<8x1xi1> to vector<8x1xi1>
    %27 = vector.broadcast %26 : vector<8x1xi1> to vector<8x128xi1>
    %28 = vector.broadcast %cst_15 : f32 to vector<8x128xf32>
    %29 = arith.select %27, %25, %28 : vector<8x128xi1>, vector<8x128xf32>
    %30 = vector.extract_strided_slice %7 {offsets = [1, 0], sizes = [1, 128], strides = [1, 1]} : vector<4x128xf32> to vector<1x128xf32>
    %31 = vector.broadcast %30 : vector<1x128xf32> to vector<8x128xf32>
    %32 = arith.mulf %29, %31 : vector<8x128xf32>
    %33 = arith.addf %22, %32 : vector<8x128xf32>
    %c1_i32 = arith.constant 1 : i32
    %34 = vector.broadcast %c1_i32 : i32 to vector<8x1xi32>
    %35 = arith.cmpi sge, %6, %34 : vector<8x1xi32>
    %c1_i32_16 = arith.constant 1 : i32
    %36 = tpu.dynamic_rotate %3 by %c1_i32_16 dim 0 : vector<8x128xf32>, i32 -> vector<8x128xf32>
    %cst_17 = arith.constant 0.000000e+00 : f32
    %37 = vector.shape_cast %35 : vector<8x1xi1> to vector<8x1xi1>
    %38 = vector.broadcast %37 : vector<8x1xi1> to vector<8x128xi1>
    %39 = vector.broadcast %cst_17 : f32 to vector<8x128xf32>
    %40 = arith.select %38, %36, %39 : vector<8x128xi1>, vector<8x128xf32>
    %41 = vector.extract_strided_slice %7 {offsets = [2, 0], sizes = [1, 128], strides = [1, 1]} : vector<4x128xf32> to vector<1x128xf32>
    %42 = vector.broadcast %41 : vector<1x128xf32> to vector<8x128xf32>
    %43 = arith.mulf %40, %42 : vector<8x128xf32>
    %44 = arith.addf %33, %43 : vector<8x128xf32>
    %45 = vector.extract_strided_slice %7 {offsets = [3, 0], sizes = [1, 128], strides = [1, 1]} : vector<4x128xf32> to vector<1x128xf32>
    %46 = vector.broadcast %45 : vector<1x128xf32> to vector<8x128xf32>
    %47 = arith.mulf %3, %46 : vector<8x128xf32>
    %48 = arith.addf %44, %47 : vector<8x128xf32>
    %cst_18 = arith.constant 0.000000e+00 : f32
    %49 = vector.broadcast %cst_18 : f32 to vector<8x128xf32>
    %50 = arith.subf %49, %48 : vector<8x128xf32>
    %51 = math.exp %50 : vector<8x128xf32>
    %cst_19 = arith.constant 1.000000e+00 : f32
    %52 = vector.broadcast %cst_19 : f32 to vector<8x128xf32>
    %53 = arith.addf %52, %51 : vector<8x128xf32>
    %cst_20 = arith.constant 1.000000e+00 : f32
    %54 = vector.broadcast %cst_20 : f32 to vector<8x128xf32>
    %55 = arith.divf %54, %53 : vector<8x128xf32>
    %56 = arith.mulf %48, %55 : vector<8x128xf32>
    %c0_21 = arith.constant 0 : index
    %c0_22 = arith.constant 0 : index
    %57 = vector.load %arg7[%c0_21, %c0_22] : memref<128x128xf32, #tpu.memory_space<vmem>>, vector<128x128xf32>
    %cst_23 = arith.constant dense<0.000000e+00> : vector<8x128xf32>
    %58 = tpu.matmul %56, %57, %cst_23 {dimension_numbers = #tpu.dot_dimension_numbers<[1], [0], [0], [1], [0, 0, 1, 1], [], []>, precision = #tpu.contract_precision<fp32>} : vector<8x128xf32>, vector<128x128xf32>, vector<8x128xf32> -> vector<8x128xf32>
    %c0_24 = arith.constant 0 : index
    %c0_25 = arith.constant 0 : index
    %59 = vector.load %arg8[%c0_24, %c0_25] : memref<1x128xf32, #tpu.memory_space<vmem>>, vector<1x128xf32>
    %60 = vector.broadcast %59 : vector<1x128xf32> to vector<8x128xf32>
    %61 = arith.addf %58, %60 : vector<8x128xf32>
    %cst_26 = arith.constant 0.000000e+00 : f32
    %62 = vector.broadcast %cst_26 : f32 to vector<8x128xf32>
    %63 = arith.maximumf %61, %62 : vector<8x128xf32>
    %64 = math.absf %61 : vector<8x128xf32>
    %cst_27 = arith.constant 0.000000e+00 : f32
    %65 = vector.broadcast %cst_27 : f32 to vector<8x128xf32>
    %66 = arith.subf %65, %64 : vector<8x128xf32>
    %67 = math.exp %66 : vector<8x128xf32>
    %cst_28 = arith.constant 1.000000e+00 : f32
    %68 = vector.broadcast %cst_28 : f32 to vector<8x128xf32>
    %69 = arith.addf %68, %67 : vector<8x128xf32>
    %70 = math.log %69 : vector<8x128xf32>
    %71 = arith.addf %63, %70 : vector<8x128xf32>
    %c0_29 = arith.constant 0 : index
    %c0_30 = arith.constant 0 : index
    %72 = vector.load %arg9[%c0_29, %c0_30] : memref<128x16xf32, #tpu.memory_space<vmem>>, vector<128x16xf32>
    %cst_31 = arith.constant dense<0.000000e+00> : vector<8x16xf32>
    %73 = tpu.matmul %56, %72, %cst_31 {dimension_numbers = #tpu.dot_dimension_numbers<[1], [0], [0], [1], [0, 0, 1, 1], [], []>, precision = #tpu.contract_precision<fp32>} : vector<8x128xf32>, vector<128x16xf32>, vector<8x16xf32> -> vector<8x16xf32>
    %c0_32 = arith.constant 0 : index
    %c0_33 = arith.constant 0 : index
    %74 = vector.load %arg10[%c0_32, %c0_33] : memref<128x16xf32, #tpu.memory_space<vmem>>, vector<128x16xf32>
    %cst_34 = arith.constant dense<0.000000e+00> : vector<8x16xf32>
    %75 = tpu.matmul %56, %74, %cst_34 {dimension_numbers = #tpu.dot_dimension_numbers<[1], [0], [0], [1], [0, 0, 1, 1], [], []>, precision = #tpu.contract_precision<fp32>} : vector<8x128xf32>, vector<128x16xf32>, vector<8x16xf32> -> vector<8x16xf32>
    %76 = arith.mulf %71, %56 : vector<8x128xf32>
    %c0_35 = arith.constant 0 : index
    %c0_36 = arith.constant 0 : index
    %77 = vector.load %arg11[%c0_35, %c0_36] : memref<16x128xf32, #tpu.memory_space<vmem>>, vector<16x128xf32>
    %78 = vector.extract_strided_slice %77 {offsets = [0, 0], sizes = [1, 128], strides = [1, 1]} : vector<16x128xf32> to vector<1x128xf32>
    %79 = vector.broadcast %78 : vector<1x128xf32> to vector<8x128xf32>
    %80 = arith.mulf %71, %79 : vector<8x128xf32>
    %81 = math.exp %80 : vector<8x128xf32>
    %82 = vector.extract_strided_slice %77 {offsets = [1, 0], sizes = [1, 128], strides = [1, 1]} : vector<16x128xf32> to vector<1x128xf32>
    %83 = vector.broadcast %82 : vector<1x128xf32> to vector<8x128xf32>
    %84 = arith.mulf %71, %83 : vector<8x128xf32>
    %85 = math.exp %84 : vector<8x128xf32>
    %86 = vector.extract_strided_slice %77 {offsets = [2, 0], sizes = [1, 128], strides = [1, 1]} : vector<16x128xf32> to vector<1x128xf32>
    %87 = vector.broadcast %86 : vector<1x128xf32> to vector<8x128xf32>
    %88 = arith.mulf %71, %87 : vector<8x128xf32>
    %89 = math.exp %88 : vector<8x128xf32>
    %90 = vector.extract_strided_slice %77 {offsets = [3, 0], sizes = [1, 128], strides = [1, 1]} : vector<16x128xf32> to vector<1x128xf32>
    %91 = vector.broadcast %90 : vector<1x128xf32> to vector<8x128xf32>
    %92 = arith.mulf %71, %91 : vector<8x128xf32>
    %93 = math.exp %92 : vector<8x128xf32>
    %94 = vector.extract_strided_slice %77 {offsets = [4, 0], sizes = [1, 128], strides = [1, 1]} : vector<16x128xf32> to vector<1x128xf32>
    %95 = vector.broadcast %94 : vector<1x128xf32> to vector<8x128xf32>
    %96 = arith.mulf %71, %95 : vector<8x128xf32>
    %97 = math.exp %96 : vector<8x128xf32>
    %98 = vector.extract_strided_slice %77 {offsets = [5, 0], sizes = [1, 128], strides = [1, 1]} : vector<16x128xf32> to vector<1x128xf32>
    %99 = vector.broadcast %98 : vector<1x128xf32> to vector<8x128xf32>
    %100 = arith.mulf %71, %99 : vector<8x128xf32>
    %101 = math.exp %100 : vector<8x128xf32>
    %102 = vector.extract_strided_slice %77 {offsets = [6, 0], sizes = [1, 128], strides = [1, 1]} : vector<16x128xf32> to vector<1x128xf32>
    %103 = vector.broadcast %102 : vector<1x128xf32> to vector<8x128xf32>
    %104 = arith.mulf %71, %103 : vector<8x128xf32>
    %105 = math.exp %104 : vector<8x128xf32>
    %106 = vector.extract_strided_slice %77 {offsets = [7, 0], sizes = [1, 128], strides = [1, 1]} : vector<16x128xf32> to vector<1x128xf32>
    %107 = vector.broadcast %106 : vector<1x128xf32> to vector<8x128xf32>
    %108 = arith.mulf %71, %107 : vector<8x128xf32>
    %109 = math.exp %108 : vector<8x128xf32>
    %110 = vector.extract_strided_slice %77 {offsets = [8, 0], sizes = [1, 128], strides = [1, 1]} : vector<16x128xf32> to vector<1x128xf32>
    %111 = vector.broadcast %110 : vector<1x128xf32> to vector<8x128xf32>
    %112 = arith.mulf %71, %111 : vector<8x128xf32>
    %113 = math.exp %112 : vector<8x128xf32>
    %114 = vector.extract_strided_slice %77 {offsets = [9, 0], sizes = [1, 128], strides = [1, 1]} : vector<16x128xf32> to vector<1x128xf32>
    %115 = vector.broadcast %114 : vector<1x128xf32> to vector<8x128xf32>
    %116 = arith.mulf %71, %115 : vector<8x128xf32>
    %117 = math.exp %116 : vector<8x128xf32>
    %118 = vector.extract_strided_slice %77 {offsets = [10, 0], sizes = [1, 128], strides = [1, 1]} : vector<16x128xf32> to vector<1x128xf32>
    %119 = vector.broadcast %118 : vector<1x128xf32> to vector<8x128xf32>
    %120 = arith.mulf %71, %119 : vector<8x128xf32>
    %121 = math.exp %120 : vector<8x128xf32>
    %122 = vector.extract_strided_slice %77 {offsets = [11, 0], sizes = [1, 128], strides = [1, 1]} : vector<16x128xf32> to vector<1x128xf32>
    %123 = vector.broadcast %122 : vector<1x128xf32> to vector<8x128xf32>
    %124 = arith.mulf %71, %123 : vector<8x128xf32>
    %125 = math.exp %124 : vector<8x128xf32>
    %126 = vector.extract_strided_slice %77 {offsets = [12, 0], sizes = [1, 128], strides = [1, 1]} : vector<16x128xf32> to vector<1x128xf32>
    %127 = vector.broadcast %126 : vector<1x128xf32> to vector<8x128xf32>
    %128 = arith.mulf %71, %127 : vector<8x128xf32>
    %129 = math.exp %128 : vector<8x128xf32>
    %130 = vector.extract_strided_slice %77 {offsets = [13, 0], sizes = [1, 128], strides = [1, 1]} : vector<16x128xf32> to vector<1x128xf32>
    %131 = vector.broadcast %130 : vector<1x128xf32> to vector<8x128xf32>
    %132 = arith.mulf %71, %131 : vector<8x128xf32>
    %133 = math.exp %132 : vector<8x128xf32>
    %134 = vector.extract_strided_slice %77 {offsets = [14, 0], sizes = [1, 128], strides = [1, 1]} : vector<16x128xf32> to vector<1x128xf32>
    %135 = vector.broadcast %134 : vector<1x128xf32> to vector<8x128xf32>
    %136 = arith.mulf %71, %135 : vector<8x128xf32>
    %137 = math.exp %136 : vector<8x128xf32>
    %138 = vector.extract_strided_slice %77 {offsets = [15, 0], sizes = [1, 128], strides = [1, 1]} : vector<16x128xf32> to vector<1x128xf32>
    %139 = vector.broadcast %138 : vector<1x128xf32> to vector<8x128xf32>
    %140 = arith.mulf %71, %139 : vector<8x128xf32>
    %141 = math.exp %140 : vector<8x128xf32>
    %142 = tpu.concatenate %81, %85, %89, %93, %97, %101, %105, %109, %113, %117, %121, %125, %129, %133, %137, %141 in 1 : vector<8x128xf32>, vector<8x128xf32>, vector<8x128xf32>, vector<8x128xf32>, vector<8x128xf32>, vector<8x128xf32>, vector<8x128xf32>, vector<8x128xf32>, vector<8x128xf32>, vector<8x128xf32>, vector<8x128xf32>, vector<8x128xf32>, vector<8x128xf32>, vector<8x128xf32>, vector<8x128xf32>, vector<8x128xf32> -> vector<8x2048xf32>
    %c0_37 = arith.constant 0 : index
    %c0_38 = arith.constant 0 : index
    %143 = vector.load %arg22[%c0_37, %c0_38] : memref<8x2048xf32, #tpu.memory_space<vmem>>, vector<8x2048xf32>
    tpu.vector_store %arg22[%c0_37, %c0_38], %142 {strides = array<i32>} : memref<8x2048xf32, #tpu.memory_space<vmem>>, vector<8x2048xf32>,
    %144 = vector.extract_strided_slice %73 {offsets = [0, 0], sizes = [8, 1], strides = [1, 1]} : vector<8x16xf32> to vector<8x1xf32>
    %145 = vector.broadcast %144 : vector<8x1xf32> to vector<8x128xf32>
    %146 = arith.mulf %145, %76 : vector<8x128xf32>
    %147 = vector.extract_strided_slice %73 {offsets = [0, 1], sizes = [8, 1], strides = [1, 1]} : vector<8x16xf32> to vector<8x1xf32>
    %148 = vector.broadcast %147 : vector<8x1xf32> to vector<8x128xf32>
    %149 = arith.mulf %148, %76 : vector<8x128xf32>
    %150 = vector.extract_strided_slice %73 {offsets = [0, 2], sizes = [8, 1], strides = [1, 1]} : vector<8x16xf32> to vector<8x1xf32>
    %151 = vector.broadcast %150 : vector<8x1xf32> to vector<8x128xf32>
    %152 = arith.mulf %151, %76 : vector<8x128xf32>
    %153 = vector.extract_strided_slice %73 {offsets = [0, 3], sizes = [8, 1], strides = [1, 1]} : vector<8x16xf32> to vector<8x1xf32>
    %154 = vector.broadcast %153 : vector<8x1xf32> to vector<8x128xf32>
    %155 = arith.mulf %154, %76 : vector<8x128xf32>
    %156 = vector.extract_strided_slice %73 {offsets = [0, 4], sizes = [8, 1], strides = [1, 1]} : vector<8x16xf32> to vector<8x1xf32>
    %157 = vector.broadcast %156 : vector<8x1xf32> to vector<8x128xf32>
    %158 = arith.mulf %157, %76 : vector<8x128xf32>
    %159 = vector.extract_strided_slice %73 {offsets = [0, 5], sizes = [8, 1], strides = [1, 1]} : vector<8x16xf32> to vector<8x1xf32>
    %160 = vector.broadcast %159 : vector<8x1xf32> to vector<8x128xf32>
    %161 = arith.mulf %160, %76 : vector<8x128xf32>
    %162 = vector.extract_strided_slice %73 {offsets = [0, 6], sizes = [8, 1], strides = [1, 1]} : vector<8x16xf32> to vector<8x1xf32>
    %163 = vector.broadcast %162 : vector<8x1xf32> to vector<8x128xf32>
    %164 = arith.mulf %163, %76 : vector<8x128xf32>
    %165 = vector.extract_strided_slice %73 {offsets = [0, 7], sizes = [8, 1], strides = [1, 1]} : vector<8x16xf32> to vector<8x1xf32>
    %166 = vector.broadcast %165 : vector<8x1xf32> to vector<8x128xf32>
    %167 = arith.mulf %166, %76 : vector<8x128xf32>
    %168 = vector.extract_strided_slice %73 {offsets = [0, 8], sizes = [8, 1], strides = [1, 1]} : vector<8x16xf32> to vector<8x1xf32>
    %169 = vector.broadcast %168 : vector<8x1xf32> to vector<8x128xf32>
    %170 = arith.mulf %169, %76 : vector<8x128xf32>
    %171 = vector.extract_strided_slice %73 {offsets = [0, 9], sizes = [8, 1], strides = [1, 1]} : vector<8x16xf32> to vector<8x1xf32>
    %172 = vector.broadcast %171 : vector<8x1xf32> to vector<8x128xf32>
    %173 = arith.mulf %172, %76 : vector<8x128xf32>
    %174 = vector.extract_strided_slice %73 {offsets = [0, 10], sizes = [8, 1], strides = [1, 1]} : vector<8x16xf32> to vector<8x1xf32>
    %175 = vector.broadcast %174 : vector<8x1xf32> to vector<8x128xf32>
    %176 = arith.mulf %175, %76 : vector<8x128xf32>
    %177 = vector.extract_strided_slice %73 {offsets = [0, 11], sizes = [8, 1], strides = [1, 1]} : vector<8x16xf32> to vector<8x1xf32>
    %178 = vector.broadcast %177 : vector<8x1xf32> to vector<8x128xf32>
    %179 = arith.mulf %178, %76 : vector<8x128xf32>
    %180 = vector.extract_strided_slice %73 {offsets = [0, 12], sizes = [8, 1], strides = [1, 1]} : vector<8x16xf32> to vector<8x1xf32>
    %181 = vector.broadcast %180 : vector<8x1xf32> to vector<8x128xf32>
    %182 = arith.mulf %181, %76 : vector<8x128xf32>
    %183 = vector.extract_strided_slice %73 {offsets = [0, 13], sizes = [8, 1], strides = [1, 1]} : vector<8x16xf32> to vector<8x1xf32>
    %184 = vector.broadcast %183 : vector<8x1xf32> to vector<8x128xf32>
    %185 = arith.mulf %184, %76 : vector<8x128xf32>
    %186 = vector.extract_strided_slice %73 {offsets = [0, 14], sizes = [8, 1], strides = [1, 1]} : vector<8x16xf32> to vector<8x1xf32>
    %187 = vector.broadcast %186 : vector<8x1xf32> to vector<8x128xf32>
    %188 = arith.mulf %187, %76 : vector<8x128xf32>
    %189 = vector.extract_strided_slice %73 {offsets = [0, 15], sizes = [8, 1], strides = [1, 1]} : vector<8x16xf32> to vector<8x1xf32>
    %190 = vector.broadcast %189 : vector<8x1xf32> to vector<8x128xf32>
    %191 = arith.mulf %190, %76 : vector<8x128xf32>
    %192 = tpu.concatenate %146, %149, %152, %155, %158, %161, %164, %167, %170, %173, %176, %179, %182, %185, %188, %191 in 1 : vector<8x128xf32>, vector<8x128xf32>, vector<8x128xf32>, vector<8x128xf32>, vector<8x128xf32>, vector<8x128xf32>, vector<8x128xf32>, vector<8x128xf32>, vector<8x128xf32>, vector<8x128xf32>, vector<8x128xf32>, vector<8x128xf32>, vector<8x128xf32>, vector<8x128xf32>, vector<8x128xf32>, vector<8x128xf32> -> vector<8x2048xf32>
    %c0_39 = arith.constant 0 : index
    %c0_40 = arith.constant 0 : index
    %193 = vector.load %arg23[%c0_39, %c0_40] : memref<8x2048xf32, #tpu.memory_space<vmem>>, vector<8x2048xf32>
    tpu.vector_store %arg23[%c0_39, %c0_40], %192 {strides = array<i32>} : memref<8x2048xf32, #tpu.memory_space<vmem>>, vector<8x2048xf32>,
    %cst_41 = arith.constant 0.000000e+00 : f32
    %194 = vector.broadcast %cst_41 : f32 to vector<1x2048xf32>
    %c0_i32 = arith.constant 0 : i32
    %195 = arith.index_cast %c0_i32 : i32 to index
    %c0_42 = arith.constant 0 : index
    %196 = vector.load %arg22[%195, %c0_42] : memref<8x2048xf32, #tpu.memory_space<vmem>>, vector<1x2048xf32>
    %197 = arith.mulf %196, %194 : vector<1x2048xf32>
    %198 = arith.index_cast %c0_i32 : i32 to index
    %c0_43 = arith.constant 0 : index
    %199 = vector.load %arg23[%198, %c0_43] : memref<8x2048xf32, #tpu.memory_space<vmem>>, vector<1x2048xf32>
    %200 = arith.addf %197, %199 : vector<1x2048xf32>
    %201 = arith.index_cast %c0_i32 : i32 to index
    %c0_44 = arith.constant 0 : index
    %202 = vector.load %arg24[%201, %c0_44] : memref<8x2048xf32, #tpu.memory_space<vmem>>, vector<1x2048xf32>
    tpu.vector_store %arg24[%201, %c0_44], %200 {strides = array<i32>} : memref<8x2048xf32, #tpu.memory_space<vmem>>, vector<1x2048xf32>,
    %c1_i32_45 = arith.constant 1 : i32
    %203 = arith.index_cast %c1_i32_45 : i32 to index
    %c0_46 = arith.constant 0 : index
    %204 = vector.load %arg22[%203, %c0_46] : memref<8x2048xf32, #tpu.memory_space<vmem>>, vector<1x2048xf32>
    %205 = arith.mulf %204, %200 : vector<1x2048xf32>
    %206 = arith.index_cast %c1_i32_45 : i32 to index
    %c0_47 = arith.constant 0 : index
    %207 = vector.load %arg23[%206, %c0_47] : memref<8x2048xf32, #tpu.memory_space<vmem>>, vector<1x2048xf32>
    %208 = arith.addf %205, %207 : vector<1x2048xf32>
    %209 = arith.index_cast %c1_i32_45 : i32 to index
    %c0_48 = arith.constant 0 : index
    %210 = vector.load %arg24[%209, %c0_48] : memref<8x2048xf32, #tpu.memory_space<vmem>>, vector<1x2048xf32>
    tpu.vector_store %arg24[%209, %c0_48], %208 {strides = array<i32>} : memref<8x2048xf32, #tpu.memory_space<vmem>>, vector<1x2048xf32>,
    %c2_i32_49 = arith.constant 2 : i32
    %211 = arith.index_cast %c2_i32_49 : i32 to index
    %c0_50 = arith.constant 0 : index
    %212 = vector.load %arg22[%211, %c0_50] : memref<8x2048xf32, #tpu.memory_space<vmem>>, vector<1x2048xf32>
    %213 = arith.mulf %212, %208 : vector<1x2048xf32>
    %214 = arith.index_cast %c2_i32_49 : i32 to index
    %c0_51 = arith.constant 0 : index
    %215 = vector.load %arg23[%214, %c0_51] : memref<8x2048xf32, #tpu.memory_space<vmem>>, vector<1x2048xf32>
    %216 = arith.addf %213, %215 : vector<1x2048xf32>
    %217 = arith.index_cast %c2_i32_49 : i32 to index
    %c0_52 = arith.constant 0 : index
    %218 = vector.load %arg24[%217, %c0_52] : memref<8x2048xf32, #tpu.memory_space<vmem>>, vector<1x2048xf32>
    tpu.vector_store %arg24[%217, %c0_52], %216 {strides = array<i32>} : memref<8x2048xf32, #tpu.memory_space<vmem>>, vector<1x2048xf32>,
    %c3_i32_53 = arith.constant 3 : i32
    %219 = arith.index_cast %c3_i32_53 : i32 to index
    %c0_54 = arith.constant 0 : index
    %220 = vector.load %arg22[%219, %c0_54] : memref<8x2048xf32, #tpu.memory_space<vmem>>, vector<1x2048xf32>
    %221 = arith.mulf %220, %216 : vector<1x2048xf32>
    %222 = arith.index_cast %c3_i32_53 : i32 to index
    %c0_55 = arith.constant 0 : index
    %223 = vector.load %arg23[%222, %c0_55] : memref<8x2048xf32, #tpu.memory_space<vmem>>, vector<1x2048xf32>
    %224 = arith.addf %221, %223 : vector<1x2048xf32>
    %225 = arith.index_cast %c3_i32_53 : i32 to index
    %c0_56 = arith.constant 0 : index
    %226 = vector.load %arg24[%225, %c0_56] : memref<8x2048xf32, #tpu.memory_space<vmem>>, vector<1x2048xf32>
    tpu.vector_store %arg24[%225, %c0_56], %224 {strides = array<i32>} : memref<8x2048xf32, #tpu.memory_space<vmem>>, vector<1x2048xf32>,
    %c4_i32 = arith.constant 4 : i32
    %227 = arith.index_cast %c4_i32 : i32 to index
    %c0_57 = arith.constant 0 : index
    %228 = vector.load %arg22[%227, %c0_57] : memref<8x2048xf32, #tpu.memory_space<vmem>>, vector<1x2048xf32>
    %229 = arith.mulf %228, %224 : vector<1x2048xf32>
    %230 = arith.index_cast %c4_i32 : i32 to index
    %c0_58 = arith.constant 0 : index
    %231 = vector.load %arg23[%230, %c0_58] : memref<8x2048xf32, #tpu.memory_space<vmem>>, vector<1x2048xf32>
    %232 = arith.addf %229, %231 : vector<1x2048xf32>
    %233 = arith.index_cast %c4_i32 : i32 to index
    %c0_59 = arith.constant 0 : index
    %234 = vector.load %arg24[%233, %c0_59] : memref<8x2048xf32, #tpu.memory_space<vmem>>, vector<1x2048xf32>
    tpu.vector_store %arg24[%233, %c0_59], %232 {strides = array<i32>} : memref<8x2048xf32, #tpu.memory_space<vmem>>, vector<1x2048xf32>,
    %c5_i32 = arith.constant 5 : i32
    %235 = arith.index_cast %c5_i32 : i32 to index
    %c0_60 = arith.constant 0 : index
    %236 = vector.load %arg22[%235, %c0_60] : memref<8x2048xf32, #tpu.memory_space<vmem>>, vector<1x2048xf32>
    %237 = arith.mulf %236, %232 : vector<1x2048xf32>
    %238 = arith.index_cast %c5_i32 : i32 to index
    %c0_61 = arith.constant 0 : index
    %239 = vector.load %arg23[%238, %c0_61] : memref<8x2048xf32, #tpu.memory_space<vmem>>, vector<1x2048xf32>
    %240 = arith.addf %237, %239 : vector<1x2048xf32>
    %241 = arith.index_cast %c5_i32 : i32 to index
    %c0_62 = arith.constant 0 : index
    %242 = vector.load %arg24[%241, %c0_62] : memref<8x2048xf32, #tpu.memory_space<vmem>>, vector<1x2048xf32>
    tpu.vector_store %arg24[%241, %c0_62], %240 {strides = array<i32>} : memref<8x2048xf32, #tpu.memory_space<vmem>>, vector<1x2048xf32>,
    %c6_i32 = arith.constant 6 : i32
    %243 = arith.index_cast %c6_i32 : i32 to index
    %c0_63 = arith.constant 0 : index
    %244 = vector.load %arg22[%243, %c0_63] : memref<8x2048xf32, #tpu.memory_space<vmem>>, vector<1x2048xf32>
    %245 = arith.mulf %244, %240 : vector<1x2048xf32>
    %246 = arith.index_cast %c6_i32 : i32 to index
    %c0_64 = arith.constant 0 : index
    %247 = vector.load %arg23[%246, %c0_64] : memref<8x2048xf32, #tpu.memory_space<vmem>>, vector<1x2048xf32>
    %248 = arith.addf %245, %247 : vector<1x2048xf32>
    %249 = arith.index_cast %c6_i32 : i32 to index
    %c0_65 = arith.constant 0 : index
    %250 = vector.load %arg24[%249, %c0_65] : memref<8x2048xf32, #tpu.memory_space<vmem>>, vector<1x2048xf32>
    tpu.vector_store %arg24[%249, %c0_65], %248 {strides = array<i32>} : memref<8x2048xf32, #tpu.memory_space<vmem>>, vector<1x2048xf32>,
    %c7_i32 = arith.constant 7 : i32
    %251 = arith.index_cast %c7_i32 : i32 to index
    %c0_66 = arith.constant 0 : index
    %252 = vector.load %arg22[%251, %c0_66] : memref<8x2048xf32, #tpu.memory_space<vmem>>, vector<1x2048xf32>
    %253 = arith.mulf %252, %248 : vector<1x2048xf32>
    %254 = arith.index_cast %c7_i32 : i32 to index
    %c0_67 = arith.constant 0 : index
    %255 = vector.load %arg23[%254, %c0_67] : memref<8x2048xf32, #tpu.memory_space<vmem>>, vector<1x2048xf32>
    %256 = arith.addf %253, %255 : vector<1x2048xf32>
    %257 = arith.index_cast %c7_i32 : i32 to index
    %c0_68 = arith.constant 0 : index
    %258 = vector.load %arg24[%257, %c0_68] : memref<8x2048xf32, #tpu.memory_space<vmem>>, vector<1x2048xf32>
    tpu.vector_store %arg24[%257, %c0_68], %256 {strides = array<i32>} : memref<8x2048xf32, #tpu.memory_space<vmem>>, vector<1x2048xf32>,
    %c8_i32 = arith.constant 8 : i32
    %c0_69 = arith.constant 0 : index
    %c0_70 = arith.constant 0 : index
    %259 = vector.load %arg24[%c0_69, %c0_70] : memref<8x2048xf32, #tpu.memory_space<vmem>>, vector<8x2048xf32>
    %c0_71 = arith.constant 0 : index
    %c0_72 = arith.constant 0 : index
    %260 = vector.load %arg12[%c0_71, %c0_72] : memref<1x128xf32, #tpu.memory_space<vmem>>, vector<1x128xf32>
    %261 = vector.broadcast %260 : vector<1x128xf32> to vector<8x128xf32>
    %262 = arith.mulf %261, %56 : vector<8x128xf32>
    %263 = vector.extract_strided_slice %75 {offsets = [0, 0], sizes = [8, 1], strides = [1, 1]} : vector<8x16xf32> to vector<8x1xf32>
    %264 = vector.extract_strided_slice %259 {offsets = [0, 0], sizes = [8, 128], strides = [1, 1]} : vector<8x2048xf32> to vector<8x128xf32>
    %265 = vector.broadcast %263 : vector<8x1xf32> to vector<8x128xf32>
    %266 = arith.mulf %265, %264 : vector<8x128xf32>
    %267 = arith.addf %262, %266 : vector<8x128xf32>
    %268 = vector.extract_strided_slice %75 {offsets = [0, 1], sizes = [8, 1], strides = [1, 1]} : vector<8x16xf32> to vector<8x1xf32>
    %269 = vector.extract_strided_slice %259 {offsets = [0, 128], sizes = [8, 128], strides = [1, 1]} : vector<8x2048xf32> to vector<8x128xf32>
    %270 = vector.broadcast %268 : vector<8x1xf32> to vector<8x128xf32>
    %271 = arith.mulf %270, %269 : vector<8x128xf32>
    %272 = arith.addf %267, %271 : vector<8x128xf32>
    %273 = vector.extract_strided_slice %75 {offsets = [0, 2], sizes = [8, 1], strides = [1, 1]} : vector<8x16xf32> to vector<8x1xf32>
    %274 = vector.extract_strided_slice %259 {offsets = [0, 256], sizes = [8, 128], strides = [1, 1]} : vector<8x2048xf32> to vector<8x128xf32>
    %275 = vector.broadcast %273 : vector<8x1xf32> to vector<8x128xf32>
    %276 = arith.mulf %275, %274 : vector<8x128xf32>
    %277 = arith.addf %272, %276 : vector<8x128xf32>
    %278 = vector.extract_strided_slice %75 {offsets = [0, 3], sizes = [8, 1], strides = [1, 1]} : vector<8x16xf32> to vector<8x1xf32>
    %279 = vector.extract_strided_slice %259 {offsets = [0, 384], sizes = [8, 128], strides = [1, 1]} : vector<8x2048xf32> to vector<8x128xf32>
    %280 = vector.broadcast %278 : vector<8x1xf32> to vector<8x128xf32>
    %281 = arith.mulf %280, %279 : vector<8x128xf32>
    %282 = arith.addf %277, %281 : vector<8x128xf32>
    %283 = vector.extract_strided_slice %75 {offsets = [0, 4], sizes = [8, 1], strides = [1, 1]} : vector<8x16xf32> to vector<8x1xf32>
    %284 = vector.extract_strided_slice %259 {offsets = [0, 512], sizes = [8, 128], strides = [1, 1]} : vector<8x2048xf32> to vector<8x128xf32>
    %285 = vector.broadcast %283 : vector<8x1xf32> to vector<8x128xf32>
    %286 = arith.mulf %285, %284 : vector<8x128xf32>
    %287 = arith.addf %282, %286 : vector<8x128xf32>
    %288 = vector.extract_strided_slice %75 {offsets = [0, 5], sizes = [8, 1], strides = [1, 1]} : vector<8x16xf32> to vector<8x1xf32>
    %289 = vector.extract_strided_slice %259 {offsets = [0, 640], sizes = [8, 128], strides = [1, 1]} : vector<8x2048xf32> to vector<8x128xf32>
    %290 = vector.broadcast %288 : vector<8x1xf32> to vector<8x128xf32>
    %291 = arith.mulf %290, %289 : vector<8x128xf32>
    %292 = arith.addf %287, %291 : vector<8x128xf32>
    %293 = vector.extract_strided_slice %75 {offsets = [0, 6], sizes = [8, 1], strides = [1, 1]} : vector<8x16xf32> to vector<8x1xf32>
    %294 = vector.extract_strided_slice %259 {offsets = [0, 768], sizes = [8, 128], strides = [1, 1]} : vector<8x2048xf32> to vector<8x128xf32>
    %295 = vector.broadcast %293 : vector<8x1xf32> to vector<8x128xf32>
    %296 = arith.mulf %295, %294 : vector<8x128xf32>
    %297 = arith.addf %292, %296 : vector<8x128xf32>
    %298 = vector.extract_strided_slice %75 {offsets = [0, 7], sizes = [8, 1], strides = [1, 1]} : vector<8x16xf32> to vector<8x1xf32>
    %299 = vector.extract_strided_slice %259 {offsets = [0, 896], sizes = [8, 128], strides = [1, 1]} : vector<8x2048xf32> to vector<8x128xf32>
    %300 = vector.broadcast %298 : vector<8x1xf32> to vector<8x128xf32>
    %301 = arith.mulf %300, %299 : vector<8x128xf32>
    %302 = arith.addf %297, %301 : vector<8x128xf32>
    %303 = vector.extract_strided_slice %75 {offsets = [0, 8], sizes = [8, 1], strides = [1, 1]} : vector<8x16xf32> to vector<8x1xf32>
    %304 = vector.extract_strided_slice %259 {offsets = [0, 1024], sizes = [8, 128], strides = [1, 1]} : vector<8x2048xf32> to vector<8x128xf32>
    %305 = vector.broadcast %303 : vector<8x1xf32> to vector<8x128xf32>
    %306 = arith.mulf %305, %304 : vector<8x128xf32>
    %307 = arith.addf %302, %306 : vector<8x128xf32>
    %308 = vector.extract_strided_slice %75 {offsets = [0, 9], sizes = [8, 1], strides = [1, 1]} : vector<8x16xf32> to vector<8x1xf32>
    %309 = vector.extract_strided_slice %259 {offsets = [0, 1152], sizes = [8, 128], strides = [1, 1]} : vector<8x2048xf32> to vector<8x128xf32>
    %310 = vector.broadcast %308 : vector<8x1xf32> to vector<8x128xf32>
    %311 = arith.mulf %310, %309 : vector<8x128xf32>
    %312 = arith.addf %307, %311 : vector<8x128xf32>
    %313 = vector.extract_strided_slice %75 {offsets = [0, 10], sizes = [8, 1], strides = [1, 1]} : vector<8x16xf32> to vector<8x1xf32>
    %314 = vector.extract_strided_slice %259 {offsets = [0, 1280], sizes = [8, 128], strides = [1, 1]} : vector<8x2048xf32> to vector<8x128xf32>
    %315 = vector.broadcast %313 : vector<8x1xf32> to vector<8x128xf32>
    %316 = arith.mulf %315, %314 : vector<8x128xf32>
    %317 = arith.addf %312, %316 : vector<8x128xf32>
    %318 = vector.extract_strided_slice %75 {offsets = [0, 11], sizes = [8, 1], strides = [1, 1]} : vector<8x16xf32> to vector<8x1xf32>
    %319 = vector.extract_strided_slice %259 {offsets = [0, 1408], sizes = [8, 128], strides = [1, 1]} : vector<8x2048xf32> to vector<8x128xf32>
    %320 = vector.broadcast %318 : vector<8x1xf32> to vector<8x128xf32>
    %321 = arith.mulf %320, %319 : vector<8x128xf32>
    %322 = arith.addf %317, %321 : vector<8x128xf32>
    %323 = vector.extract_strided_slice %75 {offsets = [0, 12], sizes = [8, 1], strides = [1, 1]} : vector<8x16xf32> to vector<8x1xf32>
    %324 = vector.extract_strided_slice %259 {offsets = [0, 1536], sizes = [8, 128], strides = [1, 1]} : vector<8x2048xf32> to vector<8x128xf32>
    %325 = vector.broadcast %323 : vector<8x1xf32> to vector<8x128xf32>
    %326 = arith.mulf %325, %324 : vector<8x128xf32>
    %327 = arith.addf %322, %326 : vector<8x128xf32>
    %328 = vector.extract_strided_slice %75 {offsets = [0, 13], sizes = [8, 1], strides = [1, 1]} : vector<8x16xf32> to vector<8x1xf32>
    %329 = vector.extract_strided_slice %259 {offsets = [0, 1664], sizes = [8, 128], strides = [1, 1]} : vector<8x2048xf32> to vector<8x128xf32>
    %330 = vector.broadcast %328 : vector<8x1xf32> to vector<8x128xf32>
    %331 = arith.mulf %330, %329 : vector<8x128xf32>
    %332 = arith.addf %327, %331 : vector<8x128xf32>
    %333 = vector.extract_strided_slice %75 {offsets = [0, 14], sizes = [8, 1], strides = [1, 1]} : vector<8x16xf32> to vector<8x1xf32>
    %334 = vector.extract_strided_slice %259 {offsets = [0, 1792], sizes = [8, 128], strides = [1, 1]} : vector<8x2048xf32> to vector<8x128xf32>
    %335 = vector.broadcast %333 : vector<8x1xf32> to vector<8x128xf32>
    %336 = arith.mulf %335, %334 : vector<8x128xf32>
    %337 = arith.addf %332, %336 : vector<8x128xf32>
    %338 = vector.extract_strided_slice %75 {offsets = [0, 15], sizes = [8, 1], strides = [1, 1]} : vector<8x16xf32> to vector<8x1xf32>
    %339 = vector.extract_strided_slice %259 {offsets = [0, 1920], sizes = [8, 128], strides = [1, 1]} : vector<8x2048xf32> to vector<8x128xf32>
    %340 = vector.broadcast %338 : vector<8x1xf32> to vector<8x128xf32>
    %341 = arith.mulf %340, %339 : vector<8x128xf32>
    %342 = arith.addf %337, %341 : vector<8x128xf32>
    %c0_73 = arith.constant 0 : index
    %c0_74 = arith.constant 0 : index
    %343 = vector.load %arg13[%c0_73, %c0_74] : memref<4x128xf32, #tpu.memory_space<vmem>>, vector<4x128xf32>
    %cst_75 = arith.constant 0.000000e+00 : f32
    %344 = vector.broadcast %cst_75 : f32 to vector<8x128xf32>
    %c0_76 = arith.constant 0 : index
    %c0_77 = arith.constant 0 : index
    %345 = vector.load %arg14[%c0_76, %c0_77] : memref<1x128xf32, #tpu.memory_space<vmem>>, vector<1x128xf32>
    %346 = vector.broadcast %345 : vector<1x128xf32> to vector<8x128xf32>
    %347 = arith.addf %344, %346 : vector<8x128xf32>
    %c5_i32_78 = arith.constant 5 : i32
    %348 = vector.broadcast %c5_i32_78 : i32 to vector<8x1xi32>
    %349 = arith.cmpi slt, %6, %348 : vector<8x1xi32>
    %c5_i32_79 = arith.constant 5 : i32
    %350 = tpu.dynamic_rotate %3 by %c5_i32_79 dim 0 : vector<8x128xf32>, i32 -> vector<8x128xf32>
    %cst_80 = arith.constant 0.000000e+00 : f32
    %351 = vector.shape_cast %349 : vector<8x1xi1> to vector<8x1xi1>
    %352 = vector.broadcast %351 : vector<8x1xi1> to vector<8x128xi1>
    %353 = vector.broadcast %cst_80 : f32 to vector<8x128xf32>
    %354 = arith.select %352, %350, %353 : vector<8x128xi1>, vector<8x128xf32>
    %355 = vector.extract_strided_slice %343 {offsets = [0, 0], sizes = [1, 128], strides = [1, 1]} : vector<4x128xf32> to vector<1x128xf32>
    %356 = vector.broadcast %355 : vector<1x128xf32> to vector<8x128xf32>
    %357 = arith.mulf %354, %356 : vector<8x128xf32>
    %358 = arith.addf %347, %357 : vector<8x128xf32>
    %c6_i32_81 = arith.constant 6 : i32
    %359 = vector.broadcast %c6_i32_81 : i32 to vector<8x1xi32>
    %360 = arith.cmpi slt, %6, %359 : vector<8x1xi32>
    %c6_i32_82 = arith.constant 6 : i32
    %361 = tpu.dynamic_rotate %3 by %c6_i32_82 dim 0 : vector<8x128xf32>, i32 -> vector<8x128xf32>
    %cst_83 = arith.constant 0.000000e+00 : f32
    %362 = vector.shape_cast %360 : vector<8x1xi1> to vector<8x1xi1>
    %363 = vector.broadcast %362 : vector<8x1xi1> to vector<8x128xi1>
    %364 = vector.broadcast %cst_83 : f32 to vector<8x128xf32>
    %365 = arith.select %363, %361, %364 : vector<8x128xi1>, vector<8x128xf32>
    %366 = vector.extract_strided_slice %343 {offsets = [1, 0], sizes = [1, 128], strides = [1, 1]} : vector<4x128xf32> to vector<1x128xf32>
    %367 = vector.broadcast %366 : vector<1x128xf32> to vector<8x128xf32>
    %368 = arith.mulf %365, %367 : vector<8x128xf32>
    %369 = arith.addf %358, %368 : vector<8x128xf32>
    %c7_i32_84 = arith.constant 7 : i32
    %370 = vector.broadcast %c7_i32_84 : i32 to vector<8x1xi32>
    %371 = arith.cmpi slt, %6, %370 : vector<8x1xi32>
    %c7_i32_85 = arith.constant 7 : i32
    %372 = tpu.dynamic_rotate %3 by %c7_i32_85 dim 0 : vector<8x128xf32>, i32 -> vector<8x128xf32>
    %cst_86 = arith.constant 0.000000e+00 : f32
    %373 = vector.shape_cast %371 : vector<8x1xi1> to vector<8x1xi1>
    %374 = vector.broadcast %373 : vector<8x1xi1> to vector<8x128xi1>
    %375 = vector.broadcast %cst_86 : f32 to vector<8x128xf32>
    %376 = arith.select %374, %372, %375 : vector<8x128xi1>, vector<8x128xf32>
    %377 = vector.extract_strided_slice %343 {offsets = [2, 0], sizes = [1, 128], strides = [1, 1]} : vector<4x128xf32> to vector<1x128xf32>
    %378 = vector.broadcast %377 : vector<1x128xf32> to vector<8x128xf32>
    %379 = arith.mulf %376, %378 : vector<8x128xf32>
    %380 = arith.addf %369, %379 : vector<8x128xf32>
    %381 = vector.extract_strided_slice %343 {offsets = [3, 0], sizes = [1, 128], strides = [1, 1]} : vector<4x128xf32> to vector<1x128xf32>
    %382 = vector.broadcast %381 : vector<1x128xf32> to vector<8x128xf32>
    %383 = arith.mulf %3, %382 : vector<8x128xf32>
    %384 = arith.addf %380, %383 : vector<8x128xf32>
    %cst_87 = arith.constant 0.000000e+00 : f32
    %385 = vector.broadcast %cst_87 : f32 to vector<8x128xf32>
    %386 = arith.subf %385, %384 : vector<8x128xf32>
    %387 = math.exp %386 : vector<8x128xf32>
    %cst_88 = arith.constant 1.000000e+00 : f32
    %388 = vector.broadcast %cst_88 : f32 to vector<8x128xf32>
    %389 = arith.addf %388, %387 : vector<8x128xf32>
    %cst_89 = arith.constant 1.000000e+00 : f32
    %390 = vector.broadcast %cst_89 : f32 to vector<8x128xf32>
    %391 = arith.divf %390, %389 : vector<8x128xf32>
    %392 = arith.mulf %384, %391 : vector<8x128xf32>
    %c0_90 = arith.constant 0 : index
    %c0_91 = arith.constant 0 : index
    %393 = vector.load %arg15[%c0_90, %c0_91] : memref<128x128xf32, #tpu.memory_space<vmem>>, vector<128x128xf32>
    %cst_92 = arith.constant dense<0.000000e+00> : vector<8x128xf32>
    %394 = tpu.matmul %392, %393, %cst_92 {dimension_numbers = #tpu.dot_dimension_numbers<[1], [0], [0], [1], [0, 0, 1, 1], [], []>, precision = #tpu.contract_precision<fp32>} : vector<8x128xf32>, vector<128x128xf32>, vector<8x128xf32> -> vector<8x128xf32>
    %c0_93 = arith.constant 0 : index
    %c0_94 = arith.constant 0 : index
    %395 = vector.load %arg16[%c0_93, %c0_94] : memref<1x128xf32, #tpu.memory_space<vmem>>, vector<1x128xf32>
    %396 = vector.broadcast %395 : vector<1x128xf32> to vector<8x128xf32>
    %397 = arith.addf %394, %396 : vector<8x128xf32>
    %cst_95 = arith.constant 0.000000e+00 : f32
    %398 = vector.broadcast %cst_95 : f32 to vector<8x128xf32>
    %399 = arith.maximumf %397, %398 : vector<8x128xf32>
    %400 = math.absf %397 : vector<8x128xf32>
    %cst_96 = arith.constant 0.000000e+00 : f32
    %401 = vector.broadcast %cst_96 : f32 to vector<8x128xf32>
    %402 = arith.subf %401, %400 : vector<8x128xf32>
    %403 = math.exp %402 : vector<8x128xf32>
    %cst_97 = arith.constant 1.000000e+00 : f32
    %404 = vector.broadcast %cst_97 : f32 to vector<8x128xf32>
    %405 = arith.addf %404, %403 : vector<8x128xf32>
    %406 = math.log %405 : vector<8x128xf32>
    %407 = arith.addf %399, %406 : vector<8x128xf32>
    %c0_98 = arith.constant 0 : index
    %c0_99 = arith.constant 0 : index
    %408 = vector.load %arg17[%c0_98, %c0_99] : memref<128x16xf32, #tpu.memory_space<vmem>>, vector<128x16xf32>
    %cst_100 = arith.constant dense<0.000000e+00> : vector<8x16xf32>
    %409 = tpu.matmul %392, %408, %cst_100 {dimension_numbers = #tpu.dot_dimension_numbers<[1], [0], [0], [1], [0, 0, 1, 1], [], []>, precision = #tpu.contract_precision<fp32>} : vector<8x128xf32>, vector<128x16xf32>, vector<8x16xf32> -> vector<8x16xf32>
    %c0_101 = arith.constant 0 : index
    %c0_102 = arith.constant 0 : index
    %410 = vector.load %arg18[%c0_101, %c0_102] : memref<128x16xf32, #tpu.memory_space<vmem>>, vector<128x16xf32>
    %cst_103 = arith.constant dense<0.000000e+00> : vector<8x16xf32>
    %411 = tpu.matmul %392, %410, %cst_103 {dimension_numbers = #tpu.dot_dimension_numbers<[1], [0], [0], [1], [0, 0, 1, 1], [], []>, precision = #tpu.contract_precision<fp32>} : vector<8x128xf32>, vector<128x16xf32>, vector<8x16xf32> -> vector<8x16xf32>
    %412 = arith.mulf %407, %392 : vector<8x128xf32>
    %c0_104 = arith.constant 0 : index
    %c0_105 = arith.constant 0 : index
    %413 = vector.load %arg19[%c0_104, %c0_105] : memref<16x128xf32, #tpu.memory_space<vmem>>, vector<16x128xf32>
    %414 = vector.extract_strided_slice %413 {offsets = [0, 0], sizes = [1, 128], strides = [1, 1]} : vector<16x128xf32> to vector<1x128xf32>
    %415 = vector.broadcast %414 : vector<1x128xf32> to vector<8x128xf32>
    %416 = arith.mulf %407, %415 : vector<8x128xf32>
    %417 = math.exp %416 : vector<8x128xf32>
    %418 = vector.extract_strided_slice %413 {offsets = [1, 0], sizes = [1, 128], strides = [1, 1]} : vector<16x128xf32> to vector<1x128xf32>
    %419 = vector.broadcast %418 : vector<1x128xf32> to vector<8x128xf32>
    %420 = arith.mulf %407, %419 : vector<8x128xf32>
    %421 = math.exp %420 : vector<8x128xf32>
    %422 = vector.extract_strided_slice %413 {offsets = [2, 0], sizes = [1, 128], strides = [1, 1]} : vector<16x128xf32> to vector<1x128xf32>
    %423 = vector.broadcast %422 : vector<1x128xf32> to vector<8x128xf32>
    %424 = arith.mulf %407, %423 : vector<8x128xf32>
    %425 = math.exp %424 : vector<8x128xf32>
    %426 = vector.extract_strided_slice %413 {offsets = [3, 0], sizes = [1, 128], strides = [1, 1]} : vector<16x128xf32> to vector<1x128xf32>
    %427 = vector.broadcast %426 : vector<1x128xf32> to vector<8x128xf32>
    %428 = arith.mulf %407, %427 : vector<8x128xf32>
    %429 = math.exp %428 : vector<8x128xf32>
    %430 = vector.extract_strided_slice %413 {offsets = [4, 0], sizes = [1, 128], strides = [1, 1]} : vector<16x128xf32> to vector<1x128xf32>
    %431 = vector.broadcast %430 : vector<1x128xf32> to vector<8x128xf32>
    %432 = arith.mulf %407, %431 : vector<8x128xf32>
    %433 = math.exp %432 : vector<8x128xf32>
    %434 = vector.extract_strided_slice %413 {offsets = [5, 0], sizes = [1, 128], strides = [1, 1]} : vector<16x128xf32> to vector<1x128xf32>
    %435 = vector.broadcast %434 : vector<1x128xf32> to vector<8x128xf32>
    %436 = arith.mulf %407, %435 : vector<8x128xf32>
    %437 = math.exp %436 : vector<8x128xf32>
    %438 = vector.extract_strided_slice %413 {offsets = [6, 0], sizes = [1, 128], strides = [1, 1]} : vector<16x128xf32> to vector<1x128xf32>
    %439 = vector.broadcast %438 : vector<1x128xf32> to vector<8x128xf32>
    %440 = arith.mulf %407, %439 : vector<8x128xf32>
    %441 = math.exp %440 : vector<8x128xf32>
    %442 = vector.extract_strided_slice %413 {offsets = [7, 0], sizes = [1, 128], strides = [1, 1]} : vector<16x128xf32> to vector<1x128xf32>
    %443 = vector.broadcast %442 : vector<1x128xf32> to vector<8x128xf32>
    %444 = arith.mulf %407, %443 : vector<8x128xf32>
    %445 = math.exp %444 : vector<8x128xf32>
    %446 = vector.extract_strided_slice %413 {offsets = [8, 0], sizes = [1, 128], strides = [1, 1]} : vector<16x128xf32> to vector<1x128xf32>
    %447 = vector.broadcast %446 : vector<1x128xf32> to vector<8x128xf32>
    %448 = arith.mulf %407, %447 : vector<8x128xf32>
    %449 = math.exp %448 : vector<8x128xf32>
    %450 = vector.extract_strided_slice %413 {offsets = [9, 0], sizes = [1, 128], strides = [1, 1]} : vector<16x128xf32> to vector<1x128xf32>
    %451 = vector.broadcast %450 : vector<1x128xf32> to vector<8x128xf32>
    %452 = arith.mulf %407, %451 : vector<8x128xf32>
    %453 = math.exp %452 : vector<8x128xf32>
    %454 = vector.extract_strided_slice %413 {offsets = [10, 0], sizes = [1, 128], strides = [1, 1]} : vector<16x128xf32> to vector<1x128xf32>
    %455 = vector.broadcast %454 : vector<1x128xf32> to vector<8x128xf32>
    %456 = arith.mulf %407, %455 : vector<8x128xf32>
    %457 = math.exp %456 : vector<8x128xf32>
    %458 = vector.extract_strided_slice %413 {offsets = [11, 0], sizes = [1, 128], strides = [1, 1]} : vector<16x128xf32> to vector<1x128xf32>
    %459 = vector.broadcast %458 : vector<1x128xf32> to vector<8x128xf32>
    %460 = arith.mulf %407, %459 : vector<8x128xf32>
    %461 = math.exp %460 : vector<8x128xf32>
    %462 = vector.extract_strided_slice %413 {offsets = [12, 0], sizes = [1, 128], strides = [1, 1]} : vector<16x128xf32> to vector<1x128xf32>
    %463 = vector.broadcast %462 : vector<1x128xf32> to vector<8x128xf32>
    %464 = arith.mulf %407, %463 : vector<8x128xf32>
    %465 = math.exp %464 : vector<8x128xf32>
    %466 = vector.extract_strided_slice %413 {offsets = [13, 0], sizes = [1, 128], strides = [1, 1]} : vector<16x128xf32> to vector<1x128xf32>
    %467 = vector.broadcast %466 : vector<1x128xf32> to vector<8x128xf32>
    %468 = arith.mulf %407, %467 : vector<8x128xf32>
    %469 = math.exp %468 : vector<8x128xf32>
    %470 = vector.extract_strided_slice %413 {offsets = [14, 0], sizes = [1, 128], strides = [1, 1]} : vector<16x128xf32> to vector<1x128xf32>
    %471 = vector.broadcast %470 : vector<1x128xf32> to vector<8x128xf32>
    %472 = arith.mulf %407, %471 : vector<8x128xf32>
    %473 = math.exp %472 : vector<8x128xf32>
    %474 = vector.extract_strided_slice %413 {offsets = [15, 0], sizes = [1, 128], strides = [1, 1]} : vector<16x128xf32> to vector<1x128xf32>
    %475 = vector.broadcast %474 : vector<1x128xf32> to vector<8x128xf32>
    %476 = arith.mulf %407, %475 : vector<8x128xf32>
    %477 = math.exp %476 : vector<8x128xf32>
    %478 = tpu.concatenate %417, %421, %425, %429, %433, %437, %441, %445, %449, %453, %457, %461, %465, %469, %473, %477 in 1 : vector<8x128xf32>, vector<8x128xf32>, vector<8x128xf32>, vector<8x128xf32>, vector<8x128xf32>, vector<8x128xf32>, vector<8x128xf32>, vector<8x128xf32>, vector<8x128xf32>, vector<8x128xf32>, vector<8x128xf32>, vector<8x128xf32>, vector<8x128xf32>, vector<8x128xf32>, vector<8x128xf32>, vector<8x128xf32> -> vector<8x2048xf32>
    %c0_106 = arith.constant 0 : index
    %c0_107 = arith.constant 0 : index
    %479 = vector.load %arg22[%c0_106, %c0_107] : memref<8x2048xf32, #tpu.memory_space<vmem>>, vector<8x2048xf32>
    tpu.vector_store %arg22[%c0_106, %c0_107], %478 {strides = array<i32>} : memref<8x2048xf32, #tpu.memory_space<vmem>>, vector<8x2048xf32>,
    %480 = vector.extract_strided_slice %409 {offsets = [0, 0], sizes = [8, 1], strides = [1, 1]} : vector<8x16xf32> to vector<8x1xf32>
    %481 = vector.broadcast %480 : vector<8x1xf32> to vector<8x128xf32>
    %482 = arith.mulf %481, %412 : vector<8x128xf32>
    %483 = vector.extract_strided_slice %409 {offsets = [0, 1], sizes = [8, 1], strides = [1, 1]} : vector<8x16xf32> to vector<8x1xf32>
    %484 = vector.broadcast %483 : vector<8x1xf32> to vector<8x128xf32>
    %485 = arith.mulf %484, %412 : vector<8x128xf32>
    %486 = vector.extract_strided_slice %409 {offsets = [0, 2], sizes = [8, 1], strides = [1, 1]} : vector<8x16xf32> to vector<8x1xf32>
    %487 = vector.broadcast %486 : vector<8x1xf32> to vector<8x128xf32>
    %488 = arith.mulf %487, %412 : vector<8x128xf32>
    %489 = vector.extract_strided_slice %409 {offsets = [0, 3], sizes = [8, 1], strides = [1, 1]} : vector<8x16xf32> to vector<8x1xf32>
    %490 = vector.broadcast %489 : vector<8x1xf32> to vector<8x128xf32>
    %491 = arith.mulf %490, %412 : vector<8x128xf32>
    %492 = vector.extract_strided_slice %409 {offsets = [0, 4], sizes = [8, 1], strides = [1, 1]} : vector<8x16xf32> to vector<8x1xf32>
    %493 = vector.broadcast %492 : vector<8x1xf32> to vector<8x128xf32>
    %494 = arith.mulf %493, %412 : vector<8x128xf32>
    %495 = vector.extract_strided_slice %409 {offsets = [0, 5], sizes = [8, 1], strides = [1, 1]} : vector<8x16xf32> to vector<8x1xf32>
    %496 = vector.broadcast %495 : vector<8x1xf32> to vector<8x128xf32>
    %497 = arith.mulf %496, %412 : vector<8x128xf32>
    %498 = vector.extract_strided_slice %409 {offsets = [0, 6], sizes = [8, 1], strides = [1, 1]} : vector<8x16xf32> to vector<8x1xf32>
    %499 = vector.broadcast %498 : vector<8x1xf32> to vector<8x128xf32>
    %500 = arith.mulf %499, %412 : vector<8x128xf32>
    %501 = vector.extract_strided_slice %409 {offsets = [0, 7], sizes = [8, 1], strides = [1, 1]} : vector<8x16xf32> to vector<8x1xf32>
    %502 = vector.broadcast %501 : vector<8x1xf32> to vector<8x128xf32>
    %503 = arith.mulf %502, %412 : vector<8x128xf32>
    %504 = vector.extract_strided_slice %409 {offsets = [0, 8], sizes = [8, 1], strides = [1, 1]} : vector<8x16xf32> to vector<8x1xf32>
    %505 = vector.broadcast %504 : vector<8x1xf32> to vector<8x128xf32>
    %506 = arith.mulf %505, %412 : vector<8x128xf32>
    %507 = vector.extract_strided_slice %409 {offsets = [0, 9], sizes = [8, 1], strides = [1, 1]} : vector<8x16xf32> to vector<8x1xf32>
    %508 = vector.broadcast %507 : vector<8x1xf32> to vector<8x128xf32>
    %509 = arith.mulf %508, %412 : vector<8x128xf32>
    %510 = vector.extract_strided_slice %409 {offsets = [0, 10], sizes = [8, 1], strides = [1, 1]} : vector<8x16xf32> to vector<8x1xf32>
    %511 = vector.broadcast %510 : vector<8x1xf32> to vector<8x128xf32>
    %512 = arith.mulf %511, %412 : vector<8x128xf32>
    %513 = vector.extract_strided_slice %409 {offsets = [0, 11], sizes = [8, 1], strides = [1, 1]} : vector<8x16xf32> to vector<8x1xf32>
    %514 = vector.broadcast %513 : vector<8x1xf32> to vector<8x128xf32>
    %515 = arith.mulf %514, %412 : vector<8x128xf32>
    %516 = vector.extract_strided_slice %409 {offsets = [0, 12], sizes = [8, 1], strides = [1, 1]} : vector<8x16xf32> to vector<8x1xf32>
    %517 = vector.broadcast %516 : vector<8x1xf32> to vector<8x128xf32>
    %518 = arith.mulf %517, %412 : vector<8x128xf32>
    %519 = vector.extract_strided_slice %409 {offsets = [0, 13], sizes = [8, 1], strides = [1, 1]} : vector<8x16xf32> to vector<8x1xf32>
    %520 = vector.broadcast %519 : vector<8x1xf32> to vector<8x128xf32>
    %521 = arith.mulf %520, %412 : vector<8x128xf32>
    %522 = vector.extract_strided_slice %409 {offsets = [0, 14], sizes = [8, 1], strides = [1, 1]} : vector<8x16xf32> to vector<8x1xf32>
    %523 = vector.broadcast %522 : vector<8x1xf32> to vector<8x128xf32>
    %524 = arith.mulf %523, %412 : vector<8x128xf32>
    %525 = vector.extract_strided_slice %409 {offsets = [0, 15], sizes = [8, 1], strides = [1, 1]} : vector<8x16xf32> to vector<8x1xf32>
    %526 = vector.broadcast %525 : vector<8x1xf32> to vector<8x128xf32>
    %527 = arith.mulf %526, %412 : vector<8x128xf32>
    %528 = tpu.concatenate %482, %485, %488, %491, %494, %497, %500, %503, %506, %509, %512, %515, %518, %521, %524, %527 in 1 : vector<8x128xf32>, vector<8x128xf32>, vector<8x128xf32>, vector<8x128xf32>, vector<8x128xf32>, vector<8x128xf32>, vector<8x128xf32>, vector<8x128xf32>, vector<8x128xf32>, vector<8x128xf32>, vector<8x128xf32>, vector<8x128xf32>, vector<8x128xf32>, vector<8x128xf32>, vector<8x128xf32>, vector<8x128xf32> -> vector<8x2048xf32>
    %c0_108 = arith.constant 0 : index
    %c0_109 = arith.constant 0 : index
    %529 = vector.load %arg23[%c0_108, %c0_109] : memref<8x2048xf32, #tpu.memory_space<vmem>>, vector<8x2048xf32>
    tpu.vector_store %arg23[%c0_108, %c0_109], %528 {strides = array<i32>} : memref<8x2048xf32, #tpu.memory_space<vmem>>, vector<8x2048xf32>,
    %cst_110 = arith.constant 0.000000e+00 : f32
    %530 = vector.broadcast %cst_110 : f32 to vector<1x2048xf32>
    %c0_i32_111 = arith.constant 0 : i32
    %c7_i32_112 = arith.constant 7 : i32
    %531 = arith.subi %c7_i32_112, %c0_i32_111 : i32
    %532 = arith.index_cast %531 : i32 to index
    %c0_113 = arith.constant 0 : index
    %533 = vector.load %arg22[%532, %c0_113] : memref<8x2048xf32, #tpu.memory_space<vmem>>, vector<1x2048xf32>
    %534 = arith.mulf %533, %530 : vector<1x2048xf32>
    %535 = arith.index_cast %531 : i32 to index
    %c0_114 = arith.constant 0 : index
    %536 = vector.load %arg23[%535, %c0_114] : memref<8x2048xf32, #tpu.memory_space<vmem>>, vector<1x2048xf32>
    %537 = arith.addf %534, %536 : vector<1x2048xf32>
    %538 = arith.index_cast %531 : i32 to index
    %c0_115 = arith.constant 0 : index
    %539 = vector.load %arg24[%538, %c0_115] : memref<8x2048xf32, #tpu.memory_space<vmem>>, vector<1x2048xf32>
    tpu.vector_store %arg24[%538, %c0_115], %537 {strides = array<i32>} : memref<8x2048xf32, #tpu.memory_space<vmem>>, vector<1x2048xf32>,
    %c1_i32_116 = arith.constant 1 : i32
    %c7_i32_117 = arith.constant 7 : i32
    %540 = arith.subi %c7_i32_117, %c1_i32_116 : i32
    %541 = arith.index_cast %540 : i32 to index
    %c0_118 = arith.constant 0 : index
    %542 = vector.load %arg22[%541, %c0_118] : memref<8x2048xf32, #tpu.memory_space<vmem>>, vector<1x2048xf32>
    %543 = arith.mulf %542, %537 : vector<1x2048xf32>
    %544 = arith.index_cast %540 : i32 to index
    %c0_119 = arith.constant 0 : index
    %545 = vector.load %arg23[%544, %c0_119] : memref<8x2048xf32, #tpu.memory_space<vmem>>, vector<1x2048xf32>
    %546 = arith.addf %543, %545 : vector<1x2048xf32>
    %547 = arith.index_cast %540 : i32 to index
    %c0_120 = arith.constant 0 : index
    %548 = vector.load %arg24[%547, %c0_120] : memref<8x2048xf32, #tpu.memory_space<vmem>>, vector<1x2048xf32>
    tpu.vector_store %arg24[%547, %c0_120], %546 {strides = array<i32>} : memref<8x2048xf32, #tpu.memory_space<vmem>>, vector<1x2048xf32>,
    %c2_i32_121 = arith.constant 2 : i32
    %c7_i32_122 = arith.constant 7 : i32
    %549 = arith.subi %c7_i32_122, %c2_i32_121 : i32
    %550 = arith.index_cast %549 : i32 to index
    %c0_123 = arith.constant 0 : index
    %551 = vector.load %arg22[%550, %c0_123] : memref<8x2048xf32, #tpu.memory_space<vmem>>, vector<1x2048xf32>
    %552 = arith.mulf %551, %546 : vector<1x2048xf32>
    %553 = arith.index_cast %549 : i32 to index
    %c0_124 = arith.constant 0 : index
    %554 = vector.load %arg23[%553, %c0_124] : memref<8x2048xf32, #tpu.memory_space<vmem>>, vector<1x2048xf32>
    %555 = arith.addf %552, %554 : vector<1x2048xf32>
    %556 = arith.index_cast %549 : i32 to index
    %c0_125 = arith.constant 0 : index
    %557 = vector.load %arg24[%556, %c0_125] : memref<8x2048xf32, #tpu.memory_space<vmem>>, vector<1x2048xf32>
    tpu.vector_store %arg24[%556, %c0_125], %555 {strides = array<i32>} : memref<8x2048xf32, #tpu.memory_space<vmem>>, vector<1x2048xf32>,
    %c3_i32_126 = arith.constant 3 : i32
    %c7_i32_127 = arith.constant 7 : i32
    %558 = arith.subi %c7_i32_127, %c3_i32_126 : i32
    %559 = arith.index_cast %558 : i32 to index
    %c0_128 = arith.constant 0 : index
    %560 = vector.load %arg22[%559, %c0_128] : memref<8x2048xf32, #tpu.memory_space<vmem>>, vector<1x2048xf32>
    %561 = arith.mulf %560, %555 : vector<1x2048xf32>
    %562 = arith.index_cast %558 : i32 to index
    %c0_129 = arith.constant 0 : index
    %563 = vector.load %arg23[%562, %c0_129] : memref<8x2048xf32, #tpu.memory_space<vmem>>, vector<1x2048xf32>
    %564 = arith.addf %561, %563 : vector<1x2048xf32>
    %565 = arith.index_cast %558 : i32 to index
    %c0_130 = arith.constant 0 : index
    %566 = vector.load %arg24[%565, %c0_130] : memref<8x2048xf32, #tpu.memory_space<vmem>>, vector<1x2048xf32>
    tpu.vector_store %arg24[%565, %c0_130], %564 {strides = array<i32>} : memref<8x2048xf32, #tpu.memory_space<vmem>>, vector<1x2048xf32>,
    %c4_i32_131 = arith.constant 4 : i32
    %c7_i32_132 = arith.constant 7 : i32
    %567 = arith.subi %c7_i32_132, %c4_i32_131 : i32
    %568 = arith.index_cast %567 : i32 to index
    %c0_133 = arith.constant 0 : index
    %569 = vector.load %arg22[%568, %c0_133] : memref<8x2048xf32, #tpu.memory_space<vmem>>, vector<1x2048xf32>
    %570 = arith.mulf %569, %564 : vector<1x2048xf32>
    %571 = arith.index_cast %567 : i32 to index
    %c0_134 = arith.constant 0 : index
    %572 = vector.load %arg23[%571, %c0_134] : memref<8x2048xf32, #tpu.memory_space<vmem>>, vector<1x2048xf32>
    %573 = arith.addf %570, %572 : vector<1x2048xf32>
    %574 = arith.index_cast %567 : i32 to index
    %c0_135 = arith.constant 0 : index
    %575 = vector.load %arg24[%574, %c0_135] : memref<8x2048xf32, #tpu.memory_space<vmem>>, vector<1x2048xf32>
    tpu.vector_store %arg24[%574, %c0_135], %573 {strides = array<i32>} : memref<8x2048xf32, #tpu.memory_space<vmem>>, vector<1x2048xf32>,
    %c5_i32_136 = arith.constant 5 : i32
    %c7_i32_137 = arith.constant 7 : i32
    %576 = arith.subi %c7_i32_137, %c5_i32_136 : i32
    %577 = arith.index_cast %576 : i32 to index
    %c0_138 = arith.constant 0 : index
    %578 = vector.load %arg22[%577, %c0_138] : memref<8x2048xf32, #tpu.memory_space<vmem>>, vector<1x2048xf32>
    %579 = arith.mulf %578, %573 : vector<1x2048xf32>
    %580 = arith.index_cast %576 : i32 to index
    %c0_139 = arith.constant 0 : index
    %581 = vector.load %arg23[%580, %c0_139] : memref<8x2048xf32, #tpu.memory_space<vmem>>, vector<1x2048xf32>
    %582 = arith.addf %579, %581 : vector<1x2048xf32>
    %583 = arith.index_cast %576 : i32 to index
    %c0_140 = arith.constant 0 : index
    %584 = vector.load %arg24[%583, %c0_140] : memref<8x2048xf32, #tpu.memory_space<vmem>>, vector<1x2048xf32>
    tpu.vector_store %arg24[%583, %c0_140], %582 {strides = array<i32>} : memref<8x2048xf32, #tpu.memory_space<vmem>>, vector<1x2048xf32>,
    %c6_i32_141 = arith.constant 6 : i32
    %c7_i32_142 = arith.constant 7 : i32
    %585 = arith.subi %c7_i32_142, %c6_i32_141 : i32
    %586 = arith.index_cast %585 : i32 to index
    %c0_143 = arith.constant 0 : index
    %587 = vector.load %arg22[%586, %c0_143] : memref<8x2048xf32, #tpu.memory_space<vmem>>, vector<1x2048xf32>
    %588 = arith.mulf %587, %582 : vector<1x2048xf32>
    %589 = arith.index_cast %585 : i32 to index
    %c0_144 = arith.constant 0 : index
    %590 = vector.load %arg23[%589, %c0_144] : memref<8x2048xf32, #tpu.memory_space<vmem>>, vector<1x2048xf32>
    %591 = arith.addf %588, %590 : vector<1x2048xf32>
    %592 = arith.index_cast %585 : i32 to index
    %c0_145 = arith.constant 0 : index
    %593 = vector.load %arg24[%592, %c0_145] : memref<8x2048xf32, #tpu.memory_space<vmem>>, vector<1x2048xf32>
    tpu.vector_store %arg24[%592, %c0_145], %591 {strides = array<i32>} : memref<8x2048xf32, #tpu.memory_space<vmem>>, vector<1x2048xf32>,
    %c7_i32_146 = arith.constant 7 : i32
    %c7_i32_147 = arith.constant 7 : i32
    %594 = arith.subi %c7_i32_147, %c7_i32_146 : i32
    %595 = arith.index_cast %594 : i32 to index
    %c0_148 = arith.constant 0 : index
    %596 = vector.load %arg22[%595, %c0_148] : memref<8x2048xf32, #tpu.memory_space<vmem>>, vector<1x2048xf32>
    %597 = arith.mulf %596, %591 : vector<1x2048xf32>
    %598 = arith.index_cast %594 : i32 to index
    %c0_149 = arith.constant 0 : index
    %599 = vector.load %arg23[%598, %c0_149] : memref<8x2048xf32, #tpu.memory_space<vmem>>, vector<1x2048xf32>
    %600 = arith.addf %597, %599 : vector<1x2048xf32>
    %601 = arith.index_cast %594 : i32 to index
    %c0_150 = arith.constant 0 : index
    %602 = vector.load %arg24[%601, %c0_150] : memref<8x2048xf32, #tpu.memory_space<vmem>>, vector<1x2048xf32>
    tpu.vector_store %arg24[%601, %c0_150], %600 {strides = array<i32>} : memref<8x2048xf32, #tpu.memory_space<vmem>>, vector<1x2048xf32>,
    %c8_i32_151 = arith.constant 8 : i32
    %c0_152 = arith.constant 0 : index
    %c0_153 = arith.constant 0 : index
    %603 = vector.load %arg24[%c0_152, %c0_153] : memref<8x2048xf32, #tpu.memory_space<vmem>>, vector<8x2048xf32>
    %c0_154 = arith.constant 0 : index
    %c0_155 = arith.constant 0 : index
    %604 = vector.load %arg20[%c0_154, %c0_155] : memref<1x128xf32, #tpu.memory_space<vmem>>, vector<1x128xf32>
    %605 = vector.broadcast %604 : vector<1x128xf32> to vector<8x128xf32>
    %606 = arith.mulf %605, %392 : vector<8x128xf32>
    %607 = vector.extract_strided_slice %411 {offsets = [0, 0], sizes = [8, 1], strides = [1, 1]} : vector<8x16xf32> to vector<8x1xf32>
    %608 = vector.extract_strided_slice %603 {offsets = [0, 0], sizes = [8, 128], strides = [1, 1]} : vector<8x2048xf32> to vector<8x128xf32>
    %609 = vector.broadcast %607 : vector<8x1xf32> to vector<8x128xf32>
    %610 = arith.mulf %609, %608 : vector<8x128xf32>
    %611 = arith.addf %606, %610 : vector<8x128xf32>
    %612 = vector.extract_strided_slice %411 {offsets = [0, 1], sizes = [8, 1], strides = [1, 1]} : vector<8x16xf32> to vector<8x1xf32>
    %613 = vector.extract_strided_slice %603 {offsets = [0, 128], sizes = [8, 128], strides = [1, 1]} : vector<8x2048xf32> to vector<8x128xf32>
    %614 = vector.broadcast %612 : vector<8x1xf32> to vector<8x128xf32>
    %615 = arith.mulf %614, %613 : vector<8x128xf32>
    %616 = arith.addf %611, %615 : vector<8x128xf32>
    %617 = vector.extract_strided_slice %411 {offsets = [0, 2], sizes = [8, 1], strides = [1, 1]} : vector<8x16xf32> to vector<8x1xf32>
    %618 = vector.extract_strided_slice %603 {offsets = [0, 256], sizes = [8, 128], strides = [1, 1]} : vector<8x2048xf32> to vector<8x128xf32>
    %619 = vector.broadcast %617 : vector<8x1xf32> to vector<8x128xf32>
    %620 = arith.mulf %619, %618 : vector<8x128xf32>
    %621 = arith.addf %616, %620 : vector<8x128xf32>
    %622 = vector.extract_strided_slice %411 {offsets = [0, 3], sizes = [8, 1], strides = [1, 1]} : vector<8x16xf32> to vector<8x1xf32>
    %623 = vector.extract_strided_slice %603 {offsets = [0, 384], sizes = [8, 128], strides = [1, 1]} : vector<8x2048xf32> to vector<8x128xf32>
    %624 = vector.broadcast %622 : vector<8x1xf32> to vector<8x128xf32>
    %625 = arith.mulf %624, %623 : vector<8x128xf32>
    %626 = arith.addf %621, %625 : vector<8x128xf32>
    %627 = vector.extract_strided_slice %411 {offsets = [0, 4], sizes = [8, 1], strides = [1, 1]} : vector<8x16xf32> to vector<8x1xf32>
    %628 = vector.extract_strided_slice %603 {offsets = [0, 512], sizes = [8, 128], strides = [1, 1]} : vector<8x2048xf32> to vector<8x128xf32>
    %629 = vector.broadcast %627 : vector<8x1xf32> to vector<8x128xf32>
    %630 = arith.mulf %629, %628 : vector<8x128xf32>
    %631 = arith.addf %626, %630 : vector<8x128xf32>
    %632 = vector.extract_strided_slice %411 {offsets = [0, 5], sizes = [8, 1], strides = [1, 1]} : vector<8x16xf32> to vector<8x1xf32>
    %633 = vector.extract_strided_slice %603 {offsets = [0, 640], sizes = [8, 128], strides = [1, 1]} : vector<8x2048xf32> to vector<8x128xf32>
    %634 = vector.broadcast %632 : vector<8x1xf32> to vector<8x128xf32>
    %635 = arith.mulf %634, %633 : vector<8x128xf32>
    %636 = arith.addf %631, %635 : vector<8x128xf32>
    %637 = vector.extract_strided_slice %411 {offsets = [0, 6], sizes = [8, 1], strides = [1, 1]} : vector<8x16xf32> to vector<8x1xf32>
    %638 = vector.extract_strided_slice %603 {offsets = [0, 768], sizes = [8, 128], strides = [1, 1]} : vector<8x2048xf32> to vector<8x128xf32>
    %639 = vector.broadcast %637 : vector<8x1xf32> to vector<8x128xf32>
    %640 = arith.mulf %639, %638 : vector<8x128xf32>
    %641 = arith.addf %636, %640 : vector<8x128xf32>
    %642 = vector.extract_strided_slice %411 {offsets = [0, 7], sizes = [8, 1], strides = [1, 1]} : vector<8x16xf32> to vector<8x1xf32>
    %643 = vector.extract_strided_slice %603 {offsets = [0, 896], sizes = [8, 128], strides = [1, 1]} : vector<8x2048xf32> to vector<8x128xf32>
    %644 = vector.broadcast %642 : vector<8x1xf32> to vector<8x128xf32>
    %645 = arith.mulf %644, %643 : vector<8x128xf32>
    %646 = arith.addf %641, %645 : vector<8x128xf32>
    %647 = vector.extract_strided_slice %411 {offsets = [0, 8], sizes = [8, 1], strides = [1, 1]} : vector<8x16xf32> to vector<8x1xf32>
    %648 = vector.extract_strided_slice %603 {offsets = [0, 1024], sizes = [8, 128], strides = [1, 1]} : vector<8x2048xf32> to vector<8x128xf32>
    %649 = vector.broadcast %647 : vector<8x1xf32> to vector<8x128xf32>
    %650 = arith.mulf %649, %648 : vector<8x128xf32>
    %651 = arith.addf %646, %650 : vector<8x128xf32>
    %652 = vector.extract_strided_slice %411 {offsets = [0, 9], sizes = [8, 1], strides = [1, 1]} : vector<8x16xf32> to vector<8x1xf32>
    %653 = vector.extract_strided_slice %603 {offsets = [0, 1152], sizes = [8, 128], strides = [1, 1]} : vector<8x2048xf32> to vector<8x128xf32>
    %654 = vector.broadcast %652 : vector<8x1xf32> to vector<8x128xf32>
    %655 = arith.mulf %654, %653 : vector<8x128xf32>
    %656 = arith.addf %651, %655 : vector<8x128xf32>
    %657 = vector.extract_strided_slice %411 {offsets = [0, 10], sizes = [8, 1], strides = [1, 1]} : vector<8x16xf32> to vector<8x1xf32>
    %658 = vector.extract_strided_slice %603 {offsets = [0, 1280], sizes = [8, 128], strides = [1, 1]} : vector<8x2048xf32> to vector<8x128xf32>
    %659 = vector.broadcast %657 : vector<8x1xf32> to vector<8x128xf32>
    %660 = arith.mulf %659, %658 : vector<8x128xf32>
    %661 = arith.addf %656, %660 : vector<8x128xf32>
    %662 = vector.extract_strided_slice %411 {offsets = [0, 11], sizes = [8, 1], strides = [1, 1]} : vector<8x16xf32> to vector<8x1xf32>
    %663 = vector.extract_strided_slice %603 {offsets = [0, 1408], sizes = [8, 128], strides = [1, 1]} : vector<8x2048xf32> to vector<8x128xf32>
    %664 = vector.broadcast %662 : vector<8x1xf32> to vector<8x128xf32>
    %665 = arith.mulf %664, %663 : vector<8x128xf32>
    %666 = arith.addf %661, %665 : vector<8x128xf32>
    %667 = vector.extract_strided_slice %411 {offsets = [0, 12], sizes = [8, 1], strides = [1, 1]} : vector<8x16xf32> to vector<8x1xf32>
    %668 = vector.extract_strided_slice %603 {offsets = [0, 1536], sizes = [8, 128], strides = [1, 1]} : vector<8x2048xf32> to vector<8x128xf32>
    %669 = vector.broadcast %667 : vector<8x1xf32> to vector<8x128xf32>
    %670 = arith.mulf %669, %668 : vector<8x128xf32>
    %671 = arith.addf %666, %670 : vector<8x128xf32>
    %672 = vector.extract_strided_slice %411 {offsets = [0, 13], sizes = [8, 1], strides = [1, 1]} : vector<8x16xf32> to vector<8x1xf32>
    %673 = vector.extract_strided_slice %603 {offsets = [0, 1664], sizes = [8, 128], strides = [1, 1]} : vector<8x2048xf32> to vector<8x128xf32>
    %674 = vector.broadcast %672 : vector<8x1xf32> to vector<8x128xf32>
    %675 = arith.mulf %674, %673 : vector<8x128xf32>
    %676 = arith.addf %671, %675 : vector<8x128xf32>
    %677 = vector.extract_strided_slice %411 {offsets = [0, 14], sizes = [8, 1], strides = [1, 1]} : vector<8x16xf32> to vector<8x1xf32>
    %678 = vector.extract_strided_slice %603 {offsets = [0, 1792], sizes = [8, 128], strides = [1, 1]} : vector<8x2048xf32> to vector<8x128xf32>
    %679 = vector.broadcast %677 : vector<8x1xf32> to vector<8x128xf32>
    %680 = arith.mulf %679, %678 : vector<8x128xf32>
    %681 = arith.addf %676, %680 : vector<8x128xf32>
    %682 = vector.extract_strided_slice %411 {offsets = [0, 15], sizes = [8, 1], strides = [1, 1]} : vector<8x16xf32> to vector<8x1xf32>
    %683 = vector.extract_strided_slice %603 {offsets = [0, 1920], sizes = [8, 128], strides = [1, 1]} : vector<8x2048xf32> to vector<8x128xf32>
    %684 = vector.broadcast %682 : vector<8x1xf32> to vector<8x128xf32>
    %685 = arith.mulf %684, %683 : vector<8x128xf32>
    %686 = arith.addf %681, %685 : vector<8x128xf32>
    %cst_156 = arith.constant 0.000000e+00 : f32
    %687 = vector.broadcast %cst_156 : f32 to vector<8x128xf32>
    %688 = arith.subf %687, %5 : vector<8x128xf32>
    %689 = math.exp %688 : vector<8x128xf32>
    %cst_157 = arith.constant 1.000000e+00 : f32
    %690 = vector.broadcast %cst_157 : f32 to vector<8x128xf32>
    %691 = arith.addf %690, %689 : vector<8x128xf32>
    %cst_158 = arith.constant 1.000000e+00 : f32
    %692 = vector.broadcast %cst_158 : f32 to vector<8x128xf32>
    %693 = arith.divf %692, %691 : vector<8x128xf32>
    %694 = arith.mulf %5, %693 : vector<8x128xf32>
    %695 = arith.addf %342, %686 : vector<8x128xf32>
    %696 = arith.mulf %695, %694 : vector<8x128xf32>
    %c0_159 = arith.constant 0 : index
    %c0_160 = arith.constant 0 : index
    %697 = vector.load %arg4[%c0_159, %c0_160] : memref<128x64xf32, #tpu.memory_space<vmem>>, vector<128x64xf32>
    %cst_161 = arith.constant dense<0.000000e+00> : vector<8x64xf32>
    %698 = tpu.matmul %696, %697, %cst_161 {dimension_numbers = #tpu.dot_dimension_numbers<[1], [0], [0], [1], [0, 0, 1, 1], [], []>, precision = #tpu.contract_precision<fp32>} : vector<8x128xf32>, vector<128x64xf32>, vector<8x64xf32> -> vector<8x64xf32>
    %c0_162 = arith.constant 0 : index
    %c0_163 = arith.constant 0 : index
    %c0_164 = arith.constant 0 : index
    %699 = vector.load %arg21[%c0_162, %c0_163, %c0_164] : memref<1x8x64xf32, #tpu.memory_space<vmem>>, vector<1x8x64xf32>
    %700 = vector.shape_cast %699 : vector<1x8x64xf32> to vector<8x64xf32>
    %701 = vector.shape_cast %698 : vector<8x64xf32> to vector<1x8x64xf32>
    tpu.vector_store %arg21[%c0_162, %c0_163, %c0_164], %701 {strides = array<i32>} : memref<1x8x64xf32, #tpu.memory_space<vmem>>, vector<1x8x64xf32>,
    return
  }
  func.func @transform_0(%arg0: i32) -> (i32, i32, i32) {
    %c0_i32 = arith.constant 0 : i32
    %c0_i32_0 = arith.constant 0 : i32
    %c0_i32_1 = arith.constant 0 : i32
    return %arg0, %c0_i32, %c0_i32_0 : i32, i32, i32
  }
  func.func @transform_1(%arg0: i32) -> (i32, i32) {
    %c0_i32 = arith.constant 0 : i32
    %c0_i32_0 = arith.constant 0 : i32
    %c0_i32_1 = arith.constant 0 : i32
    return %c0_i32, %c0_i32_0 : i32, i32
  }
  func.func @transform_2(%arg0: i32) -> (i32, i32) {
    %c0_i32 = arith.constant 0 : i32
    %c0_i32_0 = arith.constant 0 : i32
    %c0_i32_1 = arith.constant 0 : i32
    return %c0_i32, %c0_i32_0 : i32, i32
  }
  func.func @transform_3(%arg0: i32) -> (i32, i32) {
    %c0_i32 = arith.constant 0 : i32
    %c0_i32_0 = arith.constant 0 : i32
    %c0_i32_1 = arith.constant 0 : i32
    return %c0_i32, %c0_i32_0 : i32, i32
  }
  func.func @transform_4(%arg0: i32) -> (i32, i32) {
    %c0_i32 = arith.constant 0 : i32
    %c0_i32_0 = arith.constant 0 : i32
    %c0_i32_1 = arith.constant 0 : i32
    return %c0_i32, %c0_i32_0 : i32, i32
  }
  func.func @transform_5(%arg0: i32) -> (i32, i32) {
    %c0_i32 = arith.constant 0 : i32
    %c0_i32_0 = arith.constant 0 : i32
    %c0_i32_1 = arith.constant 0 : i32
    return %c0_i32, %c0_i32_0 : i32, i32
  }
  func.func @transform_6(%arg0: i32) -> (i32, i32) {
    %c0_i32 = arith.constant 0 : i32
    %c0_i32_0 = arith.constant 0 : i32
    %c0_i32_1 = arith.constant 0 : i32
    return %c0_i32, %c0_i32_0 : i32, i32
  }
  func.func @transform_7(%arg0: i32) -> (i32, i32) {
    %c0_i32 = arith.constant 0 : i32
    %c0_i32_0 = arith.constant 0 : i32
    %c0_i32_1 = arith.constant 0 : i32
    return %c0_i32, %c0_i32_0 : i32, i32
  }
  func.func @transform_8(%arg0: i32) -> (i32, i32) {
    %c0_i32 = arith.constant 0 : i32
    %c0_i32_0 = arith.constant 0 : i32
    %c0_i32_1 = arith.constant 0 : i32
    return %c0_i32, %c0_i32_0 : i32, i32
  }
  func.func @transform_9(%arg0: i32) -> (i32, i32) {
    %c0_i32 = arith.constant 0 : i32
    %c0_i32_0 = arith.constant 0 : i32
    %c0_i32_1 = arith.constant 0 : i32
    return %c0_i32, %c0_i32_0 : i32, i32
  }
  func.func @transform_10(%arg0: i32) -> (i32, i32) {
    %c0_i32 = arith.constant 0 : i32
    %c0_i32_0 = arith.constant 0 : i32
    %c0_i32_1 = arith.constant 0 : i32
    return %c0_i32, %c0_i32_0 : i32, i32
  }
  func.func @transform_11(%arg0: i32) -> (i32, i32) {
    %c0_i32 = arith.constant 0 : i32
    %c0_i32_0 = arith.constant 0 : i32
    %c0_i32_1 = arith.constant 0 : i32
    return %c0_i32, %c0_i32_0 : i32, i32
  }
  func.func @transform_12(%arg0: i32) -> (i32, i32) {
    %c0_i32 = arith.constant 0 : i32
    %c0_i32_0 = arith.constant 0 : i32
    %c0_i32_1 = arith.constant 0 : i32
    return %c0_i32, %c0_i32_0 : i32, i32
  }
  func.func @transform_13(%arg0: i32) -> (i32, i32) {
    %c0_i32 = arith.constant 0 : i32
    %c0_i32_0 = arith.constant 0 : i32
    %c0_i32_1 = arith.constant 0 : i32
    return %c0_i32, %c0_i32_0 : i32, i32
  }
  func.func @transform_14(%arg0: i32) -> (i32, i32) {
    %c0_i32 = arith.constant 0 : i32
    %c0_i32_0 = arith.constant 0 : i32
    %c0_i32_1 = arith.constant 0 : i32
    return %c0_i32, %c0_i32_0 : i32, i32
  }
  func.func @transform_15(%arg0: i32) -> (i32, i32) {
    %c0_i32 = arith.constant 0 : i32
    %c0_i32_0 = arith.constant 0 : i32
    %c0_i32_1 = arith.constant 0 : i32
    return %c0_i32, %c0_i32_0 : i32, i32
  }
  func.func @transform_16(%arg0: i32) -> (i32, i32) {
    %c0_i32 = arith.constant 0 : i32
    %c0_i32_0 = arith.constant 0 : i32
    %c0_i32_1 = arith.constant 0 : i32
    return %c0_i32, %c0_i32_0 : i32, i32
  }
  func.func @transform_17(%arg0: i32) -> (i32, i32) {
    %c0_i32 = arith.constant 0 : i32
    %c0_i32_0 = arith.constant 0 : i32
    %c0_i32_1 = arith.constant 0 : i32
    return %c0_i32, %c0_i32_0 : i32, i32
  }
  func.func @transform_18(%arg0: i32) -> (i32, i32) {
    %c0_i32 = arith.constant 0 : i32
    %c0_i32_0 = arith.constant 0 : i32
    %c0_i32_1 = arith.constant 0 : i32
    return %c0_i32, %c0_i32_0 : i32, i32
  }
  func.func @transform_19(%arg0: i32) -> (i32, i32) {
    %c0_i32 = arith.constant 0 : i32
    %c0_i32_0 = arith.constant 0 : i32
    %c0_i32_1 = arith.constant 0 : i32
    return %c0_i32, %c0_i32_0 : i32, i32
  }
  func.func @transform_20(%arg0: i32) -> (i32, i32, i32) {
    %c0_i32 = arith.constant 0 : i32
    %c0_i32_0 = arith.constant 0 : i32
    %c0_i32_1 = arith.constant 0 : i32
    return %arg0, %c0_i32, %c0_i32_0 : i32, i32, i32
  }
}

</mosaic_0001>

<llo_original>
// kernel: bimamba_forward_pallas.1
$region0: #{bimamba_forward_pallas.1}
  #allocation0 [shape = 'u32[]', space=smem, size = 0x4, offset = 0x4, fixed_abs, tag = 'smem constant byte address 0x4 - core index']
  #allocation1 [shape = 'u32[72,128]{1,0:T(1,128)}', space=vmem, size = 0x9000, scoped, tag = 'internal scratch']
  #allocation2 [shape = 'f32[8,2048]{1,0:T(8,128)}', space=vmem, size = 0x10000, scoped, tag = 'scratch operand']
  #allocation3 [shape = 'f32[8,2048]{1,0:T(8,128)}', space=vmem, size = 0x10000, scoped, tag = 'scratch operand']
  #allocation4 [shape = 'f32[8,2048]{1,0:T(8,128)}', space=vmem, size = 0x10000, scoped, tag = 'scratch operand']
  %s0 = inlined_call_operand.vmem [shape: f32[2,8,64], index: 0, kind: input, shape index: {}]
  %s1 = inlined_call_operand.vmem [shape: f32[64,128], index: 1, kind: input, shape index: {}]
  %s2 = inlined_call_operand.vmem [shape: f32[64,128], index: 2, kind: input, shape index: {}]
  %s3 = inlined_call_operand.vmem [shape: f32[128,64], index: 3, kind: input, shape index: {}]
  %s4 = inlined_call_operand.vmem [shape: f32[4,128], index: 4, kind: input, shape index: {}]
  %s5 = inlined_call_operand.vmem [shape: f32[1,128], index: 5, kind: input, shape index: {}]
  %s6 = inlined_call_operand.vmem [shape: f32[128,128], index: 6, kind: input, shape index: {}]
  %s7 = inlined_call_operand.vmem [shape: f32[1,128], index: 7, kind: input, shape index: {}]
  %s8 = inlined_call_operand.vmem [shape: f32[128,16], index: 8, kind: input, shape index: {}]
  %s9 = inlined_call_operand.vmem [shape: f32[128,16], index: 9, kind: input, shape index: {}]
  %s10 = inlined_call_operand.vmem [shape: f32[16,128], index: 10, kind: input, shape index: {}]
  %s11 = inlined_call_operand.vmem [shape: f32[1,128], index: 11, kind: input, shape index: {}]
  %s12 = inlined_call_operand.vmem [shape: f32[4,128], index: 12, kind: input, shape index: {}]
  %s13 = inlined_call_operand.vmem [shape: f32[1,128], index: 13, kind: input, shape index: {}]
  %s14 = inlined_call_operand.vmem [shape: f32[128,128], index: 14, kind: input, shape index: {}]
  %s15 = inlined_call_operand.vmem [shape: f32[1,128], index: 15, kind: input, shape index: {}]
  %s16 = inlined_call_operand.vmem [shape: f32[128,16], index: 16, kind: input, shape index: {}]
  %s17 = inlined_call_operand.vmem [shape: f32[128,16], index: 17, kind: input, shape index: {}]
  %s18 = inlined_call_operand.vmem [shape: f32[16,128], index: 18, kind: input, shape index: {}]
  %s19 = inlined_call_operand.vmem [shape: f32[1,128], index: 19, kind: input, shape index: {}]
  %s20 = inlined_call_operand.hbm [shape: f32[2,8,64], index: 20, kind: output, shape index: {}]
  %s21 = sld [smem:[#allocation0]]
  $region113: #{bimamba_forward_pallas.1} parent=0
    _
  %s23 = ssub.s32 1, %s21
  %s24 = scalar_select 0, %s23, %s21
  $region1: #{bimamba_forward_pallas.1} parent=0
    #allocation5 [shape = 'u8[8192]{0}', space=vmem, size = 0x2000, scoped, tag = 'output window, operand 0']
    #allocation6 [shape = 's32[2]{0}', space=sflag, size = 0x8, scoped, tag = 'scoped memory for bimamba_forward_pallas.1']
    %25 = vsyncpa [#allocation6], 0
    %s26 = scalar_lea.sflag [#allocation6], 1
    %27 = vsyncpa %s26, 0
    loop: start=0, step=1, limit=4
    $region2: #{bimamba_forward_pallas.1} parent=1 // loop_pre_header
      _
    $region3: #{bimamba_forward_pallas.1} parent=1 // loop_header
      %s29 = sphi 0, %s33
      %p30 = scmp.ge.s32.totalorder %s29, 4
      %s39 = sphi 0, %s41
      %s42 = sphi 0, %s39
      %s43 = sphi 0, %s42
      %s59 = sphi 0, %s43
      %s63 = sphi 0, %s63
      %s65 = sphi 0, %s63
      %s66 = sphi 0, %s65
      %s80 = sphi 0, %s66
      %s84 = sphi 0, %s84
      %s86 = sphi 0, %s84
      %s87 = sphi 0, %s86
      %s101 = sphi 0, %s87
      %s105 = sphi 0, %s105
      %s107 = sphi 0, %s105
      %s108 = sphi 0, %s107
      %s122 = sphi 0, %s108
      %s126 = sphi 0, %s126
      %s128 = sphi 0, %s126
      %s129 = sphi 0, %s128
      %s143 = sphi 0, %s129
      %s147 = sphi 0, %s147
      %s149 = sphi 0, %s147
      %s150 = sphi 0, %s149
      %s164 = sphi 0, %s150
      %s168 = sphi 0, %s168
      %s170 = sphi 0, %s168
      %s171 = sphi 0, %s170
      %s185 = sphi 0, %s171
      %s189 = sphi 0, %s189
      %s191 = sphi 0, %s189
      %s192 = sphi 0, %s191
      %s206 = sphi 0, %s192
      %s210 = sphi 0, %s210
      %s212 = sphi 0, %s210
      %s213 = sphi 0, %s212
      %s227 = sphi 0, %s213
      %s231 = sphi 0, %s231
      %s233 = sphi 0, %s231
      %s234 = sphi 0, %s233
      %s248 = sphi 0, %s234
      %s252 = sphi 0, %s252
      %s254 = sphi 0, %s252
      %s255 = sphi 0, %s254
      %s269 = sphi 0, %s255
      %s273 = sphi 0, %s273
      %s275 = sphi 0, %s273
      %s276 = sphi 0, %s275
      %s290 = sphi 0, %s276
      %s294 = sphi 0, %s294
      %s296 = sphi 0, %s294
      %s297 = sphi 0, %s296
      %s311 = sphi 0, %s297
      %s315 = sphi 0, %s315
      %s317 = sphi 0, %s315
      %s318 = sphi 0, %s317
      %s332 = sphi 0, %s318
      %s336 = sphi 0, %s336
      %s338 = sphi 0, %s336
      %s339 = sphi 0, %s338
      %s353 = sphi 0, %s339
      %s357 = sphi 0, %s357
      %s359 = sphi 0, %s357
      %s360 = sphi 0, %s359
      %s374 = sphi 0, %s360
      %s378 = sphi 0, %s378
      %s380 = sphi 0, %s378
      %s381 = sphi 0, %s380
      %s395 = sphi 0, %s381
      %s399 = sphi 0, %s399
      %s401 = sphi 0, %s399
      %s402 = sphi 0, %s401
      %s416 = sphi 0, %s402
      %s420 = sphi 0, %s420
      %s422 = sphi 0, %s420
      %s423 = sphi 0, %s422
      %s437 = sphi 0, %s423
      %s441 = sphi 0, %s441
      %s443 = sphi 0, %s441
      %s444 = sphi 0, %s443
      %s458 = sphi 0, %s444
      %s464 = sphi 0, %s466
      %s467 = sphi 0, %s464
      %s468 = sphi 0, %s467
      %s484 = sphi 0, %s468
    $region4: #{bimamba_forward_pallas.1} parent=1 // loop_header_branch
      %32 = sbr.rel (%p30) target = $region8
    $region5: #{bimamba_forward_pallas.1} parent=1 // loop_body
      %s34 = ssub.s32 %s29, 1
      %s35 = ssub.s32 %s29, 2
      %s36 = sadd.s32 %s29, 1
      %s37 = ssub.s32 %s29, %s36
      %p38 = scmp.eq.s32.totalorder %s37, 0
      %s40 = sadd.s32 %s39, 1
      %s41 = scalar_select %p38, %s39, %s40
      %p44 = pneg %p38
      %p45 = scmp.eq.s32.totalorder %s29, 1
      %p46 = por %p44, %p45
      %p47 = scmp.ne.s32.totalorder %s39, %s42
      %p48 = scmp.eq.s32.totalorder %s29, 0
      %p49 = por %p47, %p48
      %p50 = scmp.ne.s32.totalorder %s39, %s42
      %p51 = scmp.eq.s32.totalorder %s34, 1
      %p52 = por %p50, %p51
      %p53 = scmp.ne.s32.totalorder %s42, %s43
      %p54 = scmp.eq.s32.totalorder %s34, 0
      %p55 = por %p53, %p54
      %p56 = scmp.ne.s32.totalorder %s42, %s43
      %p57 = scmp.eq.s32.totalorder %s35, 1
      %p58 = por %p56, %p57
      %p60 = scmp.ne.s32.totalorder %s43, %s59
      %p61 = scmp.eq.s32.totalorder %s35, 0
      %p62 = por %p60, %p61
      %s64 = sadd.s32 %s63, 1
      %p67 = scmp.eq.s32.totalorder %s29, 1
      %p68 = scmp.ne.s32.totalorder %s63, %s65
      %p69 = scmp.eq.s32.totalorder %s29, 0
      %p70 = por %p68, %p69
      %p71 = scmp.ne.s32.totalorder %s63, %s65
      %p72 = scmp.eq.s32.totalorder %s34, 1
      %p73 = por %p71, %p72
      %p74 = scmp.ne.s32.totalorder %s65, %s66
      %p75 = scmp.eq.s32.totalorder %s34, 0
      %p76 = por %p74, %p75
      %p77 = scmp.ne.s32.totalorder %s65, %s66
      %p78 = scmp.eq.s32.totalorder %s35, 1
      %p79 = por %p77, %p78
      %p81 = scmp.ne.s32.totalorder %s66, %s80
      %p82 = scmp.eq.s32.totalorder %s35, 0
      %p83 = por %p81, %p82
      %s85 = sadd.s32 %s84, 1
      %p88 = scmp.eq.s32.totalorder %s29, 1
      %p89 = scmp.ne.s32.totalorder %s84, %s86
      %p90 = scmp.eq.s32.totalorder %s29, 0
      %p91 = por %p89, %p90
      %p92 = scmp.ne.s32.totalorder %s84, %s86
      %p93 = scmp.eq.s32.totalorder %s34, 1
      %p94 = por %p92, %p93
      %p95 = scmp.ne.s32.totalorder %s86, %s87
      %p96 = scmp.eq.s32.totalorder %s34, 0
      %p97 = por %p95, %p96
      %p98 = scmp.ne.s32.totalorder %s86, %s87
      %p99 = scmp.eq.s32.totalorder %s35, 1
      %p100 = por %p98, %p99
      %p102 = scmp.ne.s32.totalorder %s87, %s101
      %p103 = scmp.eq.s32.totalorder %s35, 0
      %p104 = por %p102, %p103
      %s106 = sadd.s32 %s105, 1
      %p109 = scmp.eq.s32.totalorder %s29, 1
      %p110 = scmp.ne.s32.totalorder %s105, %s107
      %p111 = scmp.eq.s32.totalorder %s29, 0
      %p112 = por %p110, %p111
      %p113 = scmp.ne.s32.totalorder %s105, %s107
      %p114 = scmp.eq.s32.totalorder %s34, 1
      %p115 = por %p113, %p114
      %p116 = scmp.ne.s32.totalorder %s107, %s108
      %p117 = scmp.eq.s32.totalorder %s34, 0
      %p118 = por %p116, %p117
      %p119 = scmp.ne.s32.totalorder %s107, %s108
      %p120 = scmp.eq.s32.totalorder %s35, 1
      %p121 = por %p119, %p120
      %p123 = scmp.ne.s32.totalorder %s108, %s122
      %p124 = scmp.eq.s32.totalorder %s35, 0
      %p125 = por %p123, %p124
      %s127 = sadd.s32 %s126, 1
      %p130 = scmp.eq.s32.totalorder %s29, 1
      %p131 = scmp.ne.s32.totalorder %s126, %s128
      %p132 = scmp.eq.s32.totalorder %s29, 0
      %p133 = por %p131, %p132
      %p134 = scmp.ne.s32.totalorder %s126, %s128
      %p135 = scmp.eq.s32.totalorder %s34, 1
      %p136 = por %p134, %p135
      %p137 = scmp.ne.s32.totalorder %s128, %s129
      %p138 = scmp.eq.s32.totalorder %s34, 0
      %p139 = por %p137, %p138
      %p140 = scmp.ne.s32.totalorder %s128, %s129
      %p141 = scmp.eq.s32.totalorder %s35, 1
      %p142 = por %p140, %p141
      %p144 = scmp.ne.s32.totalorder %s129, %s143
      %p145 = scmp.eq.s32.totalorder %s35, 0
      %p146 = por %p144, %p145
      %s148 = sadd.s32 %s147, 1
      %p151 = scmp.eq.s32.totalorder %s29, 1
      %p152 = scmp.ne.s32.totalorder %s147, %s149
      %p153 = scmp.eq.s32.totalorder %s29, 0
      %p154 = por %p152, %p153
      %p155 = scmp.ne.s32.totalorder %s147, %s149
      %p156 = scmp.eq.s32.totalorder %s34, 1
      %p157 = por %p155, %p156
      %p158 = scmp.ne.s32.totalorder %s149, %s150
      %p159 = scmp.eq.s32.totalorder %s34, 0
      %p160 = por %p158, %p159
      %p161 = scmp.ne.s32.totalorder %s149, %s150
      %p162 = scmp.eq.s32.totalorder %s35, 1
      %p163 = por %p161, %p162
      %p165 = scmp.ne.s32.totalorder %s150, %s164
      %p166 = scmp.eq.s32.totalorder %s35, 0
      %p167 = por %p165, %p166
      %s169 = sadd.s32 %s168, 1
      %p172 = scmp.eq.s32.totalorder %s29, 1
      %p173 = scmp.ne.s32.totalorder %s168, %s170
      %p174 = scmp.eq.s32.totalorder %s29, 0
      %p175 = por %p173, %p174
      %p176 = scmp.ne.s32.totalorder %s168, %s170
      %p177 = scmp.eq.s32.totalorder %s34, 1
      %p178 = por %p176, %p177
      %p179 = scmp.ne.s32.totalorder %s170, %s171
      %p180 = scmp.eq.s32.totalorder %s34, 0
      %p181 = por %p179, %p180
      %p182 = scmp.ne.s32.totalorder %s170, %s171
      %p183 = scmp.eq.s32.totalorder %s35, 1
      %p184 = por %p182, %p183
      %p186 = scmp.ne.s32.totalorder %s171, %s185
      %p187 = scmp.eq.s32.totalorder %s35, 0
      %p188 = por %p186, %p187
      %s190 = sadd.s32 %s189, 1
      %p193 = scmp.eq.s32.totalorder %s29, 1
      %p194 = scmp.ne.s32.totalorder %s189, %s191
      %p195 = scmp.eq.s32.totalorder %s29, 0
      %p196 = por %p194, %p195
      %p197 = scmp.ne.s32.totalorder %s189, %s191
      %p198 = scmp.eq.s32.totalorder %s34, 1
      %p199 = por %p197, %p198
      %p200 = scmp.ne.s32.totalorder %s191, %s192
      %p201 = scmp.eq.s32.totalorder %s34, 0
      %p202 = por %p200, %p201
      %p203 = scmp.ne.s32.totalorder %s191, %s192
      %p204 = scmp.eq.s32.totalorder %s35, 1
      %p205 = por %p203, %p204
      %p207 = scmp.ne.s32.totalorder %s192, %s206
      %p208 = scmp.eq.s32.totalorder %s35, 0
      %p209 = por %p207, %p208
      %s211 = sadd.s32 %s210, 1
      %p214 = scmp.eq.s32.totalorder %s29, 1
      %p215 = scmp.ne.s32.totalorder %s210, %s212
      %p216 = scmp.eq.s32.totalorder %s29, 0
      %p217 = por %p215, %p216
      %p218 = scmp.ne.s32.totalorder %s210, %s212
      %p219 = scmp.eq.s32.totalorder %s34, 1
      %p220 = por %p218, %p219
      %p221 = scmp.ne.s32.totalorder %s212, %s213
      %p222 = scmp.eq.s32.totalorder %s34, 0
      %p223 = por %p221, %p222
      %p224 = scmp.ne.s32.totalorder %s212, %s213
      %p225 = scmp.eq.s32.totalorder %s35, 1
      %p226 = por %p224, %p225
      %p228 = scmp.ne.s32.totalorder %s213, %s227
      %p229 = scmp.eq.s32.totalorder %s35, 0
      %p230 = por %p228, %p229
      %s232 = sadd.s32 %s231, 1
      %p235 = scmp.eq.s32.totalorder %s29, 1
      %p236 = scmp.ne.s32.totalorder %s231, %s233
      %p237 = scmp.eq.s32.totalorder %s29, 0
      %p238 = por %p236, %p237
      %p239 = scmp.ne.s32.totalorder %s231, %s233
      %p240 = scmp.eq.s32.totalorder %s34, 1
      %p241 = por %p239, %p240
      %p242 = scmp.ne.s32.totalorder %s233, %s234
      %p243 = scmp.eq.s32.totalorder %s34, 0
      %p244 = por %p242, %p243
      %p245 = scmp.ne.s32.totalorder %s233, %s234
      %p246 = scmp.eq.s32.totalorder %s35, 1
      %p247 = por %p245, %p246
      %p249 = scmp.ne.s32.totalorder %s234, %s248
      %p250 = scmp.eq.s32.totalorder %s35, 0
      %p251 = por %p249, %p250
      %s253 = sadd.s32 %s252, 1
      %p256 = scmp.eq.s32.totalorder %s29, 1
      %p257 = scmp.ne.s32.totalorder %s252, %s254
      %p258 = scmp.eq.s32.totalorder %s29, 0
      %p259 = por %p257, %p258
      %p260 = scmp.ne.s32.totalorder %s252, %s254
      %p261 = scmp.eq.s32.totalorder %s34, 1
      %p262 = por %p260, %p261
      %p263 = scmp.ne.s32.totalorder %s254, %s255
      %p264 = scmp.eq.s32.totalorder %s34, 0
      %p265 = por %p263, %p264
      %p266 = scmp.ne.s32.totalorder %s254, %s255
      %p267 = scmp.eq.s32.totalorder %s35, 1
      %p268 = por %p266, %p267
      %p270 = scmp.ne.s32.totalorder %s255, %s269
      %p271 = scmp.eq.s32.totalorder %s35, 0
      %p272 = por %p270, %p271
      %s274 = sadd.s32 %s273, 1
      %p277 = scmp.eq.s32.totalorder %s29, 1
      %p278 = scmp.ne.s32.totalorder %s273, %s275
      %p279 = scmp.eq.s32.totalorder %s29, 0
      %p280 = por %p278, %p279
      %p281 = scmp.ne.s32.totalorder %s273, %s275
      %p282 = scmp.eq.s32.totalorder %s34, 1
      %p283 = por %p281, %p282
      %p284 = scmp.ne.s32.totalorder %s275, %s276
      %p285 = scmp.eq.s32.totalorder %s34, 0
      %p286 = por %p284, %p285
      %p287 = scmp.ne.s32.totalorder %s275, %s276
      %p288 = scmp.eq.s32.totalorder %s35, 1
      %p289 = por %p287, %p288
      %p291 = scmp.ne.s32.totalorder %s276, %s290
      %p292 = scmp.eq.s32.totalorder %s35, 0
      %p293 = por %p291, %p292
      %s295 = sadd.s32 %s294, 1
      %p298 = scmp.eq.s32.totalorder %s29, 1
      %p299 = scmp.ne.s32.totalorder %s294, %s296
      %p300 = scmp.eq.s32.totalorder %s29, 0
      %p301 = por %p299, %p300
      %p302 = scmp.ne.s32.totalorder %s294, %s296
      %p303 = scmp.eq.s32.totalorder %s34, 1
      %p304 = por %p302, %p303
      %p305 = scmp.ne.s32.totalorder %s296, %s297
      %p306 = scmp.eq.s32.totalorder %s34, 0
      %p307 = por %p305, %p306
      %p308 = scmp.ne.s32.totalorder %s296, %s297
      %p309 = scmp.eq.s32.totalorder %s35, 1
      %p310 = por %p308, %p309
      %p312 = scmp.ne.s32.totalorder %s297, %s311
      %p313 = scmp.eq.s32.totalorder %s35, 0
      %p314 = por %p312, %p313
      %s316 = sadd.s32 %s315, 1
      %p319 = scmp.eq.s32.totalorder %s29, 1
      %p320 = scmp.ne.s32.totalorder %s315, %s317
      %p321 = scmp.eq.s32.totalorder %s29, 0
      %p322 = por %p320, %p321
      %p323 = scmp.ne.s32.totalorder %s315, %s317
      %p324 = scmp.eq.s32.totalorder %s34, 1
      %p325 = por %p323, %p324
      %p326 = scmp.ne.s32.totalorder %s317, %s318
      %p327 = scmp.eq.s32.totalorder %s34, 0
      %p328 = por %p326, %p327
      %p329 = scmp.ne.s32.totalorder %s317, %s318
      %p330 = scmp.eq.s32.totalorder %s35, 1
      %p331 = por %p329, %p330
      %p333 = scmp.ne.s32.totalorder %s318, %s332
      %p334 = scmp.eq.s32.totalorder %s35, 0
      %p335 = por %p333, %p334
      %s337 = sadd.s32 %s336, 1
      %p340 = scmp.eq.s32.totalorder %s29, 1
      %p341 = scmp.ne.s32.totalorder %s336, %s338
      %p342 = scmp.eq.s32.totalorder %s29, 0
      %p343 = por %p341, %p342
      %p344 = scmp.ne.s32.totalorder %s336, %s338
      %p345 = scmp.eq.s32.totalorder %s34, 1
      %p346 = por %p344, %p345
      %p347 = scmp.ne.s32.totalorder %s338, %s339
      %p348 = scmp.eq.s32.totalorder %s34, 0
      %p349 = por %p347, %p348
      %p350 = scmp.ne.s32.totalorder %s338, %s339
      %p351 = scmp.eq.s32.totalorder %s35, 1
      %p352 = por %p350, %p351
      %p354 = scmp.ne.s32.totalorder %s339, %s353
      %p355 = scmp.eq.s32.totalorder %s35, 0
      %p356 = por %p354, %p355
      %s358 = sadd.s32 %s357, 1
      %p361 = scmp.eq.s32.totalorder %s29, 1
      %p362 = scmp.ne.s32.totalorder %s357, %s359
      %p363 = scmp.eq.s32.totalorder %s29, 0
      %p364 = por %p362, %p363
      %p365 = scmp.ne.s32.totalorder %s357, %s359
      %p366 = scmp.eq.s32.totalorder %s34, 1
      %p367 = por %p365, %p366
      %p368 = scmp.ne.s32.totalorder %s359, %s360
      %p369 = scmp.eq.s32.totalorder %s34, 0
      %p370 = por %p368, %p369
      %p371 = scmp.ne.s32.totalorder %s359, %s360
      %p372 = scmp.eq.s32.totalorder %s35, 1
      %p373 = por %p371, %p372
      %p375 = scmp.ne.s32.totalorder %s360, %s374
      %p376 = scmp.eq.s32.totalorder %s35, 0
      %p377 = por %p375, %p376
      %s379 = sadd.s32 %s378, 1
      %p382 = scmp.eq.s32.totalorder %s29, 1
      %p383 = scmp.ne.s32.totalorder %s378, %s380
      %p384 = scmp.eq.s32.totalorder %s29, 0
      %p385 = por %p383, %p384
      %p386 = scmp.ne.s32.totalorder %s378, %s380
      %p387 = scmp.eq.s32.totalorder %s34, 1
      %p388 = por %p386, %p387
      %p389 = scmp.ne.s32.totalorder %s380, %s381
      %p390 = scmp.eq.s32.totalorder %s34, 0
      %p391 = por %p389, %p390
      %p392 = scmp.ne.s32.totalorder %s380, %s381
      %p393 = scmp.eq.s32.totalorder %s35, 1
      %p394 = por %p392, %p393
      %p396 = scmp.ne.s32.totalorder %s381, %s395
      %p397 = scmp.eq.s32.totalorder %s35, 0
      %p398 = por %p396, %p397
      %s400 = sadd.s32 %s399, 1
      %p403 = scmp.eq.s32.totalorder %s29, 1
      %p404 = scmp.ne.s32.totalorder %s399, %s401
      %p405 = scmp.eq.s32.totalorder %s29, 0
      %p406 = por %p404, %p405
      %p407 = scmp.ne.s32.totalorder %s399, %s401
      %p408 = scmp.eq.s32.totalorder %s34, 1
      %p409 = por %p407, %p408
      %p410 = scmp.ne.s32.totalorder %s401, %s402
      %p411 = scmp.eq.s32.totalorder %s34, 0
      %p412 = por %p410, %p411
      %p413 = scmp.ne.s32.totalorder %s401, %s402
      %p414 = scmp.eq.s32.totalorder %s35, 1
      %p415 = por %p413, %p414
      %p417 = scmp.ne.s32.totalorder %s402, %s416
      %p418 = scmp.eq.s32.totalorder %s35, 0
      %p419 = por %p417, %p418
      %s421 = sadd.s32 %s420, 1
      %p424 = scmp.eq.s32.totalorder %s29, 1
      %p425 = scmp.ne.s32.totalorder %s420, %s422
      %p426 = scmp.eq.s32.totalorder %s29, 0
      %p427 = por %p425, %p426
      %p428 = scmp.ne.s32.totalorder %s420, %s422
      %p429 = scmp.eq.s32.totalorder %s34, 1
      %p430 = por %p428, %p429
      %p431 = scmp.ne.s32.totalorder %s422, %s423
      %p432 = scmp.eq.s32.totalorder %s34, 0
      %p433 = por %p431, %p432
      %p434 = scmp.ne.s32.totalorder %s422, %s423
      %p435 = scmp.eq.s32.totalorder %s35, 1
      %p436 = por %p434, %p435
      %p438 = scmp.ne.s32.totalorder %s423, %s437
      %p439 = scmp.eq.s32.totalorder %s35, 0
      %p440 = por %p438, %p439
      %s442 = sadd.s32 %s441, 1
      %p445 = scmp.eq.s32.totalorder %s29, 1
      %p446 = scmp.ne.s32.totalorder %s441, %s443
      %p447 = scmp.eq.s32.totalorder %s29, 0
      %p448 = por %p446, %p447
      %p449 = scmp.ne.s32.totalorder %s441, %s443
      %p450 = scmp.eq.s32.totalorder %s34, 1
      %p451 = por %p449, %p450
      %p452 = scmp.ne.s32.totalorder %s443, %s444
      %p453 = scmp.eq.s32.totalorder %s34, 0
      %p454 = por %p452, %p453
      %p455 = scmp.ne.s32.totalorder %s443, %s444
      %p456 = scmp.eq.s32.totalorder %s35, 1
      %p457 = por %p455, %p456
      %p459 = scmp.ne.s32.totalorder %s444, %s458
      %p460 = scmp.eq.s32.totalorder %s35, 0
      %p461 = por %p459, %p460
      %s462 = ssub.s32 %s29, %s36
      %p463 = scmp.eq.s32.totalorder %s462, 0
      %s465 = sadd.s32 %s464, 1
      %s466 = scalar_select %p463, %s464, %s465
      %p469 = pneg %p463
      %p470 = scmp.eq.s32.totalorder %s29, 1
      %p471 = por %p469, %p470
      %p472 = scmp.ne.s32.totalorder %s464, %s467
      %p473 = scmp.eq.s32.totalorder %s29, 0
      %p474 = por %p472, %p473
      %p475 = scmp.ne.s32.totalorder %s464, %s467
      %p476 = scmp.eq.s32.totalorder %s34, 1
      %p477 = por %p475, %p476
      %p478 = scmp.ne.s32.totalorder %s467, %s468
      %p479 = scmp.eq.s32.totalorder %s34, 0
      %p480 = por %p478, %p479
      %p481 = scmp.ne.s32.totalorder %s467, %s468
      %p482 = scmp.eq.s32.totalorder %s35, 1
      %p483 = por %p481, %p482
      %p485 = scmp.ne.s32.totalorder %s468, %s484
      %p486 = scmp.eq.s32.totalorder %s35, 0
      %p487 = por %p485, %p486
      %p488 = scmp.le.s32.totalorder 1, %s29
      %p489 = scmp.lt.s32.totalorder %s29, 3
      %p490 = pnand %p488, %p489
      %p491 = pneg %p490
      // Predicated region
      $region9: #{bimamba_forward_pallas.1} parent=5 // pred_check
        _
      $region10: #{bimamba_forward_pallas.1} parent=5 // pred_check_branch
        %493 = sbr.rel (%p490) target = $region12
      $region11: #{bimamba_forward_pallas.1} parent=5 // pred_region
        %s494 = ssub.s32 %s29, 1
        // Predicated region
        $region13: #{bimamba_forward_pallas.1} parent=11 // pred_check
          %p495 = pneg %p76
        $region14: #{bimamba_forward_pallas.1} parent=11 // pred_check_branch
          %497 = sbr.rel (%p495) target = $region16
        $region15: #{bimamba_forward_pallas.1} parent=11 // pred_region
          _
        $region16: #{bimamba_forward_pallas.1} parent=11 // pred_fallthru
          _
        // Predicated region
        $region17: #{bimamba_forward_pallas.1} parent=11 // pred_check
          %p498 = pneg %p97
        $region18: #{bimamba_forward_pallas.1} parent=11 // pred_check_branch
          %500 = sbr.rel (%p498) target = $region20
        $region19: #{bimamba_forward_pallas.1} parent=11 // pred_region
          _
        $region20: #{bimamba_forward_pallas.1} parent=11 // pred_fallthru
          _
        // Predicated region
        $region21: #{bimamba_forward_pallas.1} parent=11 // pred_check
          %p501 = pneg %p118
        $region22: #{bimamba_forward_pallas.1} parent=11 // pred_check_branch
          %503 = sbr.rel (%p501) target = $region24
        $region23: #{bimamba_forward_pallas.1} parent=11 // pred_region
          _
        $region24: #{bimamba_forward_pallas.1} parent=11 // pred_fallthru
          _
        // Predicated region
        $region25: #{bimamba_forward_pallas.1} parent=11 // pred_check
          %p504 = pneg %p139
        $region26: #{bimamba_forward_pallas.1} parent=11 // pred_check_branch
          %506 = sbr.rel (%p504) target = $region28
        $region27: #{bimamba_forward_pallas.1} parent=11 // pred_region
          _
        $region28: #{bimamba_forward_pallas.1} parent=11 // pred_fallthru
          _
        // Predicated region
        $region29: #{bimamba_forward_pallas.1} parent=11 // pred_check
          %p507 = pneg %p160
        $region30: #{bimamba_forward_pallas.1} parent=11 // pred_check_branch
          %509 = sbr.rel (%p507) target = $region32
        $region31: #{bimamba_forward_pallas.1} parent=11 // pred_region
          _
        $region32: #{bimamba_forward_pallas.1} parent=11 // pred_fallthru
          _
        // Predicated region
        $region33: #{bimamba_forward_pallas.1} parent=11 // pred_check
          %p510 = pneg %p181
        $region34: #{bimamba_forward_pallas.1} parent=11 // pred_check_branch
          %512 = sbr.rel (%p510) target = $region36
        $region35: #{bimamba_forward_pallas.1} parent=11 // pred_region
          _
        $region36: #{bimamba_forward_pallas.1} parent=11 // pred_fallthru
          _
        // Predicated region
        $region37: #{bimamba_forward_pallas.1} parent=11 // pred_check
          %p513 = pneg %p202
        $region38: #{bimamba_forward_pallas.1} parent=11 // pred_check_branch
          %515 = sbr.rel (%p513) target = $region40
        $region39: #{bimamba_forward_pallas.1} parent=11 // pred_region
          _
        $region40: #{bimamba_forward_pallas.1} parent=11 // pred_fallthru
          _
        // Predicated region
        $region41: #{bimamba_forward_pallas.1} parent=11 // pred_check
          %p516 = pneg %p223
        $region42: #{bimamba_forward_pallas.1} parent=11 // pred_check_branch
          %518 = sbr.rel (%p516) target = $region44
        $region43: #{bimamba_forward_pallas.1} parent=11 // pred_region
          _
        $region44: #{bimamba_forward_pallas.1} parent=11 // pred_fallthru
          _
        // Predicated region
        $region45: #{bimamba_forward_pallas.1} parent=11 // pred_check
          %p519 = pneg %p244
        $region46: #{bimamba_forward_pallas.1} parent=11 // pred_check_branch
          %521 = sbr.rel (%p519) target = $region48
        $region47: #{bimamba_forward_pallas.1} parent=11 // pred_region
          _
        $region48: #{bimamba_forward_pallas.1} parent=11 // pred_fallthru
          _
        // Predicated region
        $region49: #{bimamba_forward_pallas.1} parent=11 // pred_check
          %p522 = pneg %p265
        $region50: #{bimamba_forward_pallas.1} parent=11 // pred_check_branch
          %524 = sbr.rel (%p522) target = $region52
        $region51: #{bimamba_forward_pallas.1} parent=11 // pred_region
          _
        $region52: #{bimamba_forward_pallas.1} parent=11 // pred_fallthru
          _
        // Predicated region
        $region53: #{bimamba_forward_pallas.1} parent=11 // pred_check
          %p525 = pneg %p286
        $region54: #{bimamba_forward_pallas.1} parent=11 // pred_check_branch
          %527 = sbr.rel (%p525) target = $region56
        $region55: #{bimamba_forward_pallas.1} parent=11 // pred_region
          _
        $region56: #{bimamba_forward_pallas.1} parent=11 // pred_fallthru
          _
        // Predicated region
        $region57: #{bimamba_forward_pallas.1} parent=11 // pred_check
          %p528 = pneg %p307
        $region58: #{bimamba_forward_pallas.1} parent=11 // pred_check_branch
          %530 = sbr.rel (%p528) target = $region60
        $region59: #{bimamba_forward_pallas.1} parent=11 // pred_region
          _
        $region60: #{bimamba_forward_pallas.1} parent=11 // pred_fallthru
          _
        // Predicated region
        $region61: #{bimamba_forward_pallas.1} parent=11 // pred_check
          %p531 = pneg %p328
        $region62: #{bimamba_forward_pallas.1} parent=11 // pred_check_branch
          %533 = sbr.rel (%p531) target = $region64
        $region63: #{bimamba_forward_pallas.1} parent=11 // pred_region
          _
        $region64: #{bimamba_forward_pallas.1} parent=11 // pred_fallthru
          _
        // Predicated region
        $region65: #{bimamba_forward_pallas.1} parent=11 // pred_check
          %p534 = pneg %p349
        $region66: #{bimamba_forward_pallas.1} parent=11 // pred_check_branch
          %536 = sbr.rel (%p534) target = $region68
        $region67: #{bimamba_forward_pallas.1} parent=11 // pred_region
          _
        $region68: #{bimamba_forward_pallas.1} parent=11 // pred_fallthru
          _
        // Predicated region
        $region69: #{bimamba_forward_pallas.1} parent=11 // pred_check
          %p537 = pneg %p370
        $region70: #{bimamba_forward_pallas.1} parent=11 // pred_check_branch
          %539 = sbr.rel (%p537) target = $region72
        $region71: #{bimamba_forward_pallas.1} parent=11 // pred_region
          _
        $region72: #{bimamba_forward_pallas.1} parent=11 // pred_fallthru
          _
        // Predicated region
        $region73: #{bimamba_forward_pallas.1} parent=11 // pred_check
          %p540 = pneg %p391
        $region74: #{bimamba_forward_pallas.1} parent=11 // pred_check_branch
          %542 = sbr.rel (%p540) target = $region76
        $region75: #{bimamba_forward_pallas.1} parent=11 // pred_region
          _
        $region76: #{bimamba_forward_pallas.1} parent=11 // pred_fallthru
          _
        // Predicated region
        $region77: #{bimamba_forward_pallas.1} parent=11 // pred_check
          %p543 = pneg %p412
        $region78: #{bimamba_forward_pallas.1} parent=11 // pred_check_branch
          %545 = sbr.rel (%p543) target = $region80
        $region79: #{bimamba_forward_pallas.1} parent=11 // pred_region
          _
        $region80: #{bimamba_forward_pallas.1} parent=11 // pred_fallthru
          _
        // Predicated region
        $region81: #{bimamba_forward_pallas.1} parent=11 // pred_check
          %p546 = pneg %p433
        $region82: #{bimamba_forward_pallas.1} parent=11 // pred_check_branch
          %548 = sbr.rel (%p546) target = $region84
        $region83: #{bimamba_forward_pallas.1} parent=11 // pred_region
          _
        $region84: #{bimamba_forward_pallas.1} parent=11 // pred_fallthru
          _
        // Predicated region
        $region85: #{bimamba_forward_pallas.1} parent=11 // pred_check
          %p549 = pneg %p454
        $region86: #{bimamba_forward_pallas.1} parent=11 // pred_check_branch
          %551 = sbr.rel (%p549) target = $region88
        $region87: #{bimamba_forward_pallas.1} parent=11 // pred_region
          _
        $region88: #{bimamba_forward_pallas.1} parent=11 // pred_fallthru
          _
      $region12: #{bimamba_forward_pallas.1} parent=5 // pred_fallthru
        _
      %p552 = scmp.lt.s32.totalorder %s29, 2
      // Predicated region
      $region89: #{bimamba_forward_pallas.1} parent=5 // pred_check
        %p553 = pneg %p552
      $region90: #{bimamba_forward_pallas.1} parent=5 // pred_check_branch
        %555 = sbr.rel (%p553) target = $region92
      $region91: #{bimamba_forward_pallas.1} parent=5 // pred_region
        // Predicated region
        $region93: #{bimamba_forward_pallas.1} parent=91 // pred_check
          %p556 = pneg %p49
        $region94: #{bimamba_forward_pallas.1} parent=91 // pred_check_branch
          %558 = sbr.rel (%p556) target = $region96
        $region95: #{bimamba_forward_pallas.1} parent=91 // pred_region
          %p559 = scmp.lt.s32.totalorder %s29, 1
          %s560 = scalar_select %p559, %s29, 1
          %s561 = smul.addr %s560, 8
          %s562 = scalar_lea.vmem %s0, %s561
        $region96: #{bimamba_forward_pallas.1} parent=91 // pred_fallthru
          _
      $region92: #{bimamba_forward_pallas.1} parent=5 // pred_fallthru
        _
      %p563 = scmp.le.s32.totalorder 1, %s29
      %p564 = scmp.lt.s32.totalorder %s29, 3
      %p565 = pnand %p563, %p564
      %p566 = pneg %p565
      // Predicated region
      $region97: #{bimamba_forward_pallas.1} parent=5 // pred_check
        _
      $region98: #{bimamba_forward_pallas.1} parent=5 // pred_check_branch
        %568 = sbr.rel (%p565) target = $region100
      $region99: #{bimamba_forward_pallas.1} parent=5 // pred_region
        %s569 = ssub.s32 %s29, 1
        %p570 = scmp.lt.s32.totalorder %s34, 1
        %s571 = scalar_select %p570, %s34, 1
        %s572 = smul.addr %s571, 8
        %s573 = scalar_lea.vmem %s0, %s572
        %p574 = pneg %p55
        %p575 = pneg %p52
        %p576 = pneg %p76
        %p577 = pneg %p73
        %p578 = pneg %p97
        %p579 = pneg %p94
        %p580 = pneg %p118
        %p581 = pneg %p115
        %p582 = pneg %p139
        %p583 = pneg %p136
        %p584 = pneg %p160
        %p585 = pneg %p157
        %p586 = pneg %p181
        %p587 = pneg %p178
        %p588 = pneg %p202
        %p589 = pneg %p199
        %p590 = pneg %p223
        %p591 = pneg %p220
        %p592 = pneg %p244
        %p593 = pneg %p241
        %p594 = pneg %p265
        %p595 = pneg %p262
        %p596 = pneg %p286
        %p597 = pneg %p283
        %p598 = pneg %p307
        %p599 = pneg %p304
        %p600 = pneg %p328
        %p601 = pneg %p325
        %p602 = pneg %p349
        %p603 = pneg %p346
        %p604 = pneg %p370
        %p605 = pneg %p367
        %p606 = pneg %p391
        %p607 = pneg %p388
        %p608 = pneg %p412
        %p609 = pneg %p409
        %p610 = pneg %p433
        %p611 = pneg %p430
        %p612 = pneg %p454
        %p613 = pneg %p451
        %p614 = pneg %p480
        %p615 = pneg %p477
        %s616 = sand.u32 %s467, 1
        %s617 = scalar_lea.sflag [#allocation6], %s616
        %s618 = sand.u32 %s467, 1
        %s619 = smul.addr %s618, 8
        %s620 = scalar_lea.vmem [#allocation5], %s619
        %p621 = scmp.lt.s32.totalorder %s34, 1
        %s622 = scalar_select %p621, %s34, 1
        %s623 = smul.addr %s622, 8
        %s624 = scalar_lea.vmem %s0, %s623
        %v625 = vld [vmem:[%s624] sm:$0xff]
        %v626 = vld [vmem:[%s1] sm:$0xff]
        %v627 = vld [vmem:[%s1 + $0x8] sm:$0xff]
        %v628 = vld [vmem:[%s1 + $0x10] sm:$0xff]
        %v629 = vld [vmem:[%s1 + $0x18] sm:$0xff]
        %v630 = vld [vmem:[%s1 + $0x20] sm:$0xff]
        %v631 = vld [vmem:[%s1 + $0x28] sm:$0xff]
        %v632 = vld [vmem:[%s1 + $0x30] sm:$0xff]
        %v633 = vld [vmem:[%s1 + $0x38] sm:$0xff]
        %vm634 = vcmask 523264
        %v636 = vsel %vm634, %v625, 0
        %638 = vmatpush.msra.mxu0 0.0
        %639 = vmatpush.msra.mxu0 0.0
        %640 = vmatpush.msra.mxu0 0.0
        %641 = vmatpush.msra.mxu0 0.0
        %642 = vmatpush.msra.mxu0 0.0
        %643 = vmatpush.msra.mxu0 0.0
        %644 = vmatpush.msra.mxu0 0.0
        %645 = vmatpush.msra.mxu0 0.0
        %v646 = vand.u32 %v633, 4294901760
        %647 = vmatpush.msra.mxu0 %v646
        %v648 = vand.u32 %v632, 4294901760
        %649 = vmatpush.msra.mxu0 %v648
        %v650 = vand.u32 %v631, 4294901760
        %651 = vmatpush.msra.mxu0 %v650
        %v652 = vand.u32 %v630, 4294901760
        %653 = vmatpush.msra.mxu0 %v652
        %v654 = vand.u32 %v629, 4294901760
        %655 = vmatpush.msra.mxu0 %v654
        %v656 = vand.u32 %v628, 4294901760
        %657 = vmatpush.msra.mxu0 %v656
        %v658 = vand.u32 %v627, 4294901760
        %659 = vmatpush.msra.mxu0 %v658
        %v660 = vand.u32 %v626, 4294901760
        %661 = vmatpush.msra.mxu0 %v660
        %v662 = vand.u32 %v636, 4294901760
        %v663 = vsub.f32 %v636, %v662
        %v664 = vand.u32 %v663, 4294901760
        %v665 = vsub.f32 %v663, %v664
        %v666 = vand.u32 %v665, 4294901760
        %667 = vmatmul.f32.gmra.mxu0 %v666
        %v668 = vpop.f32.mrf.mxu0
        %v669 = vadd.f32 0.0, %v668
        %670 = vdwg.mxu0
        %671 = vmatpush.msra.mxu0 0.0
        %672 = vmatpush.msra.mxu0 0.0
        %673 = vmatpush.msra.mxu0 0.0
        %674 = vmatpush.msra.mxu0 0.0
        %675 = vmatpush.msra.mxu0 0.0
        %676 = vmatpush.msra.mxu0 0.0
        %677 = vmatpush.msra.mxu0 0.0
        %678 = vmatpush.msra.mxu0 0.0
        %v679 = vand.u32 %v633, 4294901760
        %v680 = vsub.f32 %v633, %v679
        %v681 = vand.u32 %v680, 4294901760
        %v682 = vsub.f32 %v680, %v681
        %v683 = vand.u32 %v682, 4294901760
        %684 = vmatpush.msra.mxu0 %v683
        %v685 = vand.u32 %v632, 4294901760
        %v686 = vsub.f32 %v632, %v685
        %v687 = vand.u32 %v686, 4294901760
        %v688 = vsub.f32 %v686, %v687
        %v689 = vand.u32 %v688, 4294901760
        %690 = vmatpush.msra.mxu0 %v689
        %v691 = vand.u32 %v631, 4294901760
        %v692 = vsub.f32 %v631, %v691
        %v693 = vand.u32 %v692, 4294901760
        %v694 = vsub.f32 %v692, %v693
        %v695 = vand.u32 %v694, 4294901760
        %696 = vmatpush.msra.mxu0 %v695
        %v697 = vand.u32 %v630, 4294901760
        %v698 = vsub.f32 %v630, %v697
        %v699 = vand.u32 %v698, 4294901760
        %v700 = vsub.f32 %v698, %v699
        %v701 = vand.u32 %v700, 4294901760
        %702 = vmatpush.msra.mxu0 %v701
        %v703 = vand.u32 %v629, 4294901760
        %v704 = vsub.f32 %v629, %v703
        %v705 = vand.u32 %v704, 4294901760
        %v706 = vsub.f32 %v704, %v705
        %v707 = vand.u32 %v706, 4294901760
        %708 = vmatpush.msra.mxu0 %v707
        %v709 = vand.u32 %v628, 4294901760
        %v710 = vsub.f32 %v628, %v709
        %v711 = vand.u32 %v710, 4294901760
        %v712 = vsub.f32 %v710, %v711
        %v713 = vand.u32 %v712, 4294901760
        %714 = vmatpush.msra.mxu0 %v713
        %v715 = vand.u32 %v627, 4294901760
        %v716 = vsub.f32 %v627, %v715
        %v717 = vand.u32 %v716, 4294901760
        %v718 = vsub.f32 %v716, %v717
        %v719 = vand.u32 %v718, 4294901760
        %720 = vmatpush.msra.mxu0 %v719
        %v721 = vand.u32 %v626, 4294901760
        %v722 = vsub.f32 %v626, %v721
        %v723 = vand.u32 %v722, 4294901760
        %v724 = vsub.f32 %v722, %v723
        %v725 = vand.u32 %v724, 4294901760
        %726 = vmatpush.msra.mxu0 %v725
        %v727 = vand.u32 %v636, 4294901760
        %728 = vmatmul.f32.gmra.mxu0 %v727
        %v729 = vpop.f32.mrf.mxu0
        %v730 = vadd.f32 %v669, %v729
        %731 = vdwg.mxu0
        %732 = vmatpush.msra.mxu0 0.0
        %733 = vmatpush.msra.mxu0 0.0
        %734 = vmatpush.msra.mxu0 0.0
        %735 = vmatpush.msra.mxu0 0.0
        %736 = vmatpush.msra.mxu0 0.0
        %737 = vmatpush.msra.mxu0 0.0
        %738 = vmatpush.msra.mxu0 0.0
        %739 = vmatpush.msra.mxu0 0.0
        %v740 = vand.u32 %v633, 4294901760
        %v741 = vsub.f32 %v633, %v740
        %742 = vmatpush.msra.mxu0 %v741
        %v743 = vand.u32 %v632, 4294901760
        %v744 = vsub.f32 %v632, %v743
        %745 = vmatpush.msra.mxu0 %v744
        %v746 = vand.u32 %v631, 4294901760
        %v747 = vsub.f32 %v631, %v746
        %748 = vmatpush.msra.mxu0 %v747
        %v749 = vand.u32 %v630, 4294901760
        %v750 = vsub.f32 %v630, %v749
        %751 = vmatpush.msra.mxu0 %v750
        %v752 = vand.u32 %v629, 4294901760
        %v753 = vsub.f32 %v629, %v752
        %754 = vmatpush.msra.mxu0 %v753
        %v755 = vand.u32 %v628, 4294901760
        %v756 = vsub.f32 %v628, %v755
        %757 = vmatpush.msra.mxu0 %v756
        %v758 = vand.u32 %v627, 4294901760
        %v759 = vsub.f32 %v627, %v758
        %760 = vmatpush.msra.mxu0 %v759
        %v761 = vand.u32 %v626, 4294901760
        %v762 = vsub.f32 %v626, %v761
        %763 = vmatpush.msra.mxu0 %v762
        %v764 = vand.u32 %v636, 4294901760
        %v765 = vsub.f32 %v636, %v764
        %766 = vmatmul.f32.gmra.mxu0 %v765
        %v767 = vpop.f32.mrf.mxu0
        %v768 = vadd.f32 %v730, %v767
        %769 = vdwg.mxu0
        %770 = vmatpush.msra.mxu0 0.0
        %771 = vmatpush.msra.mxu0 0.0
        %772 = vmatpush.msra.mxu0 0.0
        %773 = vmatpush.msra.mxu0 0.0
        %774 = vmatpush.msra.mxu0 0.0
        %775 = vmatpush.msra.mxu0 0.0
        %776 = vmatpush.msra.mxu0 0.0
        %777 = vmatpush.msra.mxu0 0.0
        %v778 = vand.u32 %v633, 4294901760
        %779 = vmatpush.msra.mxu0 %v778
        %v780 = vand.u32 %v632, 4294901760
        %781 = vmatpush.msra.mxu0 %v780
        %v782 = vand.u32 %v631, 4294901760
        %783 = vmatpush.msra.mxu0 %v782
        %v784 = vand.u32 %v630, 4294901760
        %785 = vmatpush.msra.mxu0 %v784
        %v786 = vand.u32 %v629, 4294901760
        %787 = vmatpush.msra.mxu0 %v786
        %v788 = vand.u32 %v628, 4294901760
        %789 = vmatpush.msra.mxu0 %v788
        %v790 = vand.u32 %v627, 4294901760
        %791 = vmatpush.msra.mxu0 %v790
        %v792 = vand.u32 %v626, 4294901760
        %793 = vmatpush.msra.mxu0 %v792
        %v794 = vand.u32 %v636, 4294901760
        %v795 = vsub.f32 %v636, %v794
        %v796 = vand.u32 %v795, 4294901760
        %797 = vmatmul.f32.gmra.mxu0 %v796
        %v798 = vpop.f32.mrf.mxu0
        %v799 = vadd.f32 %v768, %v798
        %800 = vdwg.mxu0
        %801 = vmatpush.msra.mxu0 0.0
        %802 = vmatpush.msra.mxu0 0.0
        %803 = vmatpush.msra.mxu0 0.0
        %804 = vmatpush.msra.mxu0 0.0
        %805 = vmatpush.msra.mxu0 0.0
        %806 = vmatpush.msra.mxu0 0.0
        %807 = vmatpush.msra.mxu0 0.0
        %808 = vmatpush.msra.mxu0 0.0
        %v809 = vand.u32 %v633, 4294901760
        %v810 = vsub.f32 %v633, %v809
        %v811 = vand.u32 %v810, 4294901760
        %812 = vmatpush.msra.mxu0 %v811
        %v813 = vand.u32 %v632, 4294901760
        %v814 = vsub.f32 %v632, %v813
        %v815 = vand.u32 %v814, 4294901760
        %816 = vmatpush.msra.mxu0 %v815
        %v817 = vand.u32 %v631, 4294901760
        %v818 = vsub.f32 %v631, %v817
        %v819 = vand.u32 %v818, 4294901760
        %820 = vmatpush.msra.mxu0 %v819
        %v821 = vand.u32 %v630, 4294901760
        %v822 = vsub.f32 %v630, %v821
        %v823 = vand.u32 %v822, 4294901760
        %824 = vmatpush.msra.mxu0 %v823
        %v825 = vand.u32 %v629, 4294901760
        %v826 = vsub.f32 %v629, %v825
        %v827 = vand.u32 %v826, 4294901760
        %828 = vmatpush.msra.mxu0 %v827
        %v829 = vand.u32 %v628, 4294901760
        %v830 = vsub.f32 %v628, %v829
        %v831 = vand.u32 %v830, 4294901760
        %832 = vmatpush.msra.mxu0 %v831
        %v833 = vand.u32 %v627, 4294901760
        %v834 = vsub.f32 %v627, %v833
        %v835 = vand.u32 %v834, 4294901760
        %836 = vmatpush.msra.mxu0 %v835
        %v837 = vand.u32 %v626, 4294901760
        %v838 = vsub.f32 %v626, %v837
        %v839 = vand.u32 %v838, 4294901760
        %840 = vmatpush.msra.mxu0 %v839
        %v841 = vand.u32 %v636, 4294901760
        %842 = vmatmul.f32.gmra.mxu0 %v841
        %v843 = vpop.f32.mrf.mxu0
        %v844 = vadd.f32 %v799, %v843
        %845 = vdwg.mxu0
        %846 = vmatpush.msra.mxu0 0.0
        %847 = vmatpush.msra.mxu0 0.0
        %848 = vmatpush.msra.mxu0 0.0
        %849 = vmatpush.msra.mxu0 0.0
        %850 = vmatpush.msra.mxu0 0.0
        %851 = vmatpush.msra.mxu0 0.0
        %852 = vmatpush.msra.mxu0 0.0
        %853 = vmatpush.msra.mxu0 0.0
        %v854 = vand.u32 %v633, 4294901760
        %855 = vmatpush.msra.mxu0 %v854
        %v856 = vand.u32 %v632, 4294901760
        %857 = vmatpush.msra.mxu0 %v856
        %v858 = vand.u32 %v631, 4294901760
        %859 = vmatpush.msra.mxu0 %v858
        %v860 = vand.u32 %v630, 4294901760
        %861 = vmatpush.msra.mxu0 %v860
        %v862 = vand.u32 %v629, 4294901760
        %863 = vmatpush.msra.mxu0 %v862
        %v864 = vand.u32 %v628, 4294901760
        %865 = vmatpush.msra.mxu0 %v864
        %v866 = vand.u32 %v627, 4294901760
        %867 = vmatpush.msra.mxu0 %v866
        %v868 = vand.u32 %v626, 4294901760
        %869 = vmatpush.msra.mxu0 %v868
        %v870 = vand.u32 %v636, 4294901760
        %871 = vmatmul.f32.gmra.mxu0 %v870
        %v872 = vpop.f32.mrf.mxu0
        %v873 = vadd.f32 %v844, %v872
        %874 = vdwg.mxu0
        %v875 = vld [vmem:[%s2] sm:$0xff]
        %v876 = vld [vmem:[%s2 + $0x8] sm:$0xff]
        %v877 = vld [vmem:[%s2 + $0x10] sm:$0xff]
        %v878 = vld [vmem:[%s2 + $0x18] sm:$0xff]
        %v879 = vld [vmem:[%s2 + $0x20] sm:$0xff]
        %v880 = vld [vmem:[%s2 + $0x28] sm:$0xff]
        %v881 = vld [vmem:[%s2 + $0x30] sm:$0xff]
        %v882 = vld [vmem:[%s2 + $0x38] sm:$0xff]
        %883 = vmatpush.msra.mxu0 0.0
        %884 = vmatpush.msra.mxu0 0.0
        %885 = vmatpush.msra.mxu0 0.0
        %886 = vmatpush.msra.mxu0 0.0
        %887 = vmatpush.msra.mxu0 0.0
        %888 = vmatpush.msra.mxu0 0.0
        %889 = vmatpush.msra.mxu0 0.0
        %890 = vmatpush.msra.mxu0 0.0
        %v891 = vand.u32 %v882, 4294901760
        %892 = vmatpush.msra.mxu0 %v891
        %v893 = vand.u32 %v881, 4294901760
        %894 = vmatpush.msra.mxu0 %v893
        %v895 = vand.u32 %v880, 4294901760
        %896 = vmatpush.msra.mxu0 %v895
        %v897 = vand.u32 %v879, 4294901760
        %898 = vmatpush.msra.mxu0 %v897
        %v899 = vand.u32 %v878, 4294901760
        %900 = vmatpush.msra.mxu0 %v899
        %v901 = vand.u32 %v877, 4294901760
        %902 = vmatpush.msra.mxu0 %v901
        %v903 = vand.u32 %v876, 4294901760
        %904 = vmatpush.msra.mxu0 %v903
        %v905 = vand.u32 %v875, 4294901760
        %906 = vmatpush.msra.mxu0 %v905
        %v907 = vand.u32 %v636, 4294901760
        %v908 = vsub.f32 %v636, %v907
        %v909 = vand.u32 %v908, 4294901760
        %v910 = vsub.f32 %v908, %v909
        %v911 = vand.u32 %v910, 4294901760
        %912 = vmatmul.f32.gmra.mxu0 %v911
        %v913 = vpop.f32.mrf.mxu0
        %v914 = vadd.f32 0.0, %v913
        %915 = vdwg.mxu0
        %916 = vmatpush.msra.mxu0 0.0
        %917 = vmatpush.msra.mxu0 0.0
        %918 = vmatpush.msra.mxu0 0.0
        %919 = vmatpush.msra.mxu0 0.0
        %920 = vmatpush.msra.mxu0 0.0
        %921 = vmatpush.msra.mxu0 0.0
        %922 = vmatpush.msra.mxu0 0.0
        %923 = vmatpush.msra.mxu0 0.0
        %v924 = vand.u32 %v882, 4294901760
        %v925 = vsub.f32 %v882, %v924
        %v926 = vand.u32 %v925, 4294901760
        %v927 = vsub.f32 %v925, %v926
        %v928 = vand.u32 %v927, 4294901760
        %929 = vmatpush.msra.mxu0 %v928
        %v930 = vand.u32 %v881, 4294901760
        %v931 = vsub.f32 %v881, %v930
        %v932 = vand.u32 %v931, 4294901760
        %v933 = vsub.f32 %v931, %v932
        %v934 = vand.u32 %v933, 4294901760
        %935 = vmatpush.msra.mxu0 %v934
        %v936 = vand.u32 %v880, 4294901760
        %v937 = vsub.f32 %v880, %v936
        %v938 = vand.u32 %v937, 4294901760
        %v939 = vsub.f32 %v937, %v938
        %v940 = vand.u32 %v939, 4294901760
        %941 = vmatpush.msra.mxu0 %v940
        %v942 = vand.u32 %v879, 4294901760
        %v943 = vsub.f32 %v879, %v942
        %v944 = vand.u32 %v943, 4294901760
        %v945 = vsub.f32 %v943, %v944
        %v946 = vand.u32 %v945, 4294901760
        %947 = vmatpush.msra.mxu0 %v946
        %v948 = vand.u32 %v878, 4294901760
        %v949 = vsub.f32 %v878, %v948
        %v950 = vand.u32 %v949, 4294901760
        %v951 = vsub.f32 %v949, %v950
        %v952 = vand.u32 %v951, 4294901760
        %953 = vmatpush.msra.mxu0 %v952
        %v954 = vand.u32 %v877, 4294901760
        %v955 = vsub.f32 %v877, %v954
        %v956 = vand.u32 %v955, 4294901760
        %v957 = vsub.f32 %v955, %v956
        %v958 = vand.u32 %v957, 4294901760
        %959 = vmatpush.msra.mxu0 %v958
        %v960 = vand.u32 %v876, 4294901760
        %v961 = vsub.f32 %v876, %v960
        %v962 = vand.u32 %v961, 4294901760
        %v963 = vsub.f32 %v961, %v962
        %v964 = vand.u32 %v963, 4294901760
        %965 = vmatpush.msra.mxu0 %v964
        %v966 = vand.u32 %v875, 4294901760
        %v967 = vsub.f32 %v875, %v966
        %v968 = vand.u32 %v967, 4294901760
        %v969 = vsub.f32 %v967, %v968
        %v970 = vand.u32 %v969, 4294901760
        %971 = vmatpush.msra.mxu0 %v970
        %v972 = vand.u32 %v636, 4294901760
        %973 = vmatmul.f32.gmra.mxu0 %v972
        %v974 = vpop.f32.mrf.mxu0
        %v975 = vadd.f32 %v914, %v974
        %976 = vdwg.mxu0
        %977 = vmatpush.msra.mxu0 0.0
        %978 = vmatpush.msra.mxu0 0.0
        %979 = vmatpush.msra.mxu0 0.0
        %980 = vmatpush.msra.mxu0 0.0
        %981 = vmatpush.msra.mxu0 0.0
        %982 = vmatpush.msra.mxu0 0.0
        %983 = vmatpush.msra.mxu0 0.0
        %984 = vmatpush.msra.mxu0 0.0
        %v985 = vand.u32 %v882, 4294901760
        %v986 = vsub.f32 %v882, %v985
        %987 = vmatpush.msra.mxu0 %v986
        %v988 = vand.u32 %v881, 4294901760
        %v989 = vsub.f32 %v881, %v988
        %990 = vmatpush.msra.mxu0 %v989
        %v991 = vand.u32 %v880, 4294901760
        %v992 = vsub.f32 %v880, %v991
        %993 = vmatpush.msra.mxu0 %v992
        %v994 = vand.u32 %v879, 4294901760
        %v995 = vsub.f32 %v879, %v994
        %996 = vmatpush.msra.mxu0 %v995
        %v997 = vand.u32 %v878, 4294901760
        %v998 = vsub.f32 %v878, %v997
        %999 = vmatpush.msra.mxu0 %v998
        %v1000 = vand.u32 %v877, 4294901760
        %v1001 = vsub.f32 %v877, %v1000
        %1002 = vmatpush.msra.mxu0 %v1001
        %v1003 = vand.u32 %v876, 4294901760
        %v1004 = vsub.f32 %v876, %v1003
        %1005 = vmatpush.msra.mxu0 %v1004
        %v1006 = vand.u32 %v875, 4294901760
        %v1007 = vsub.f32 %v875, %v1006
        %1008 = vmatpush.msra.mxu0 %v1007
        %v1009 = vand.u32 %v636, 4294901760
        %v1010 = vsub.f32 %v636, %v1009
        %1011 = vmatmul.f32.gmra.mxu0 %v1010
        %v1012 = vpop.f32.mrf.mxu0
        %v1013 = vadd.f32 %v975, %v1012
        %1014 = vdwg.mxu0
        %1015 = vmatpush.msra.mxu0 0.0
        %1016 = vmatpush.msra.mxu0 0.0
        %1017 = vmatpush.msra.mxu0 0.0
        %1018 = vmatpush.msra.mxu0 0.0
        %1019 = vmatpush.msra.mxu0 0.0
        %1020 = vmatpush.msra.mxu0 0.0
        %1021 = vmatpush.msra.mxu0 0.0
        %1022 = vmatpush.msra.mxu0 0.0
        %v1023 = vand.u32 %v882, 4294901760
        %1024 = vmatpush.msra.mxu0 %v1023
        %v1025 = vand.u32 %v881, 4294901760
        %1026 = vmatpush.msra.mxu0 %v1025
        %v1027 = vand.u32 %v880, 4294901760
        %1028 = vmatpush.msra.mxu0 %v1027
        %v1029 = vand.u32 %v879, 4294901760
        %1030 = vmatpush.msra.mxu0 %v1029
        %v1031 = vand.u32 %v878, 4294901760
        %1032 = vmatpush.msra.mxu0 %v1031
        %v1033 = vand.u32 %v877, 4294901760
        %1034 = vmatpush.msra.mxu0 %v1033
        %v1035 = vand.u32 %v876, 4294901760
        %1036 = vmatpush.msra.mxu0 %v1035
        %v1037 = vand.u32 %v875, 4294901760
        %1038 = vmatpush.msra.mxu0 %v1037
        %v1039 = vand.u32 %v636, 4294901760
        %v1040 = vsub.f32 %v636, %v1039
        %v1041 = vand.u32 %v1040, 4294901760
        %1042 = vmatmul.f32.gmra.mxu0 %v1041
        %v1043 = vpop.f32.mrf.mxu0
        %v1044 = vadd.f32 %v1013, %v1043
        %1045 = vdwg.mxu0
        %1046 = vmatpush.msra.mxu0 0.0
        %1047 = vmatpush.msra.mxu0 0.0
        %1048 = vmatpush.msra.mxu0 0.0
        %1049 = vmatpush.msra.mxu0 0.0
        %1050 = vmatpush.msra.mxu0 0.0
        %1051 = vmatpush.msra.mxu0 0.0
        %1052 = vmatpush.msra.mxu0 0.0
        %1053 = vmatpush.msra.mxu0 0.0
        %v1054 = vand.u32 %v882, 4294901760
        %v1055 = vsub.f32 %v882, %v1054
        %v1056 = vand.u32 %v1055, 4294901760
        %1057 = vmatpush.msra.mxu0 %v1056
        %v1058 = vand.u32 %v881, 4294901760
        %v1059 = vsub.f32 %v881, %v1058
        %v1060 = vand.u32 %v1059, 4294901760
        %1061 = vmatpush.msra.mxu0 %v1060
        %v1062 = vand.u32 %v880, 4294901760
        %v1063 = vsub.f32 %v880, %v1062
        %v1064 = vand.u32 %v1063, 4294901760
        %1065 = vmatpush.msra.mxu0 %v1064
        %v1066 = vand.u32 %v879, 4294901760
        %v1067 = vsub.f32 %v879, %v1066
        %v1068 = vand.u32 %v1067, 4294901760
        %1069 = vmatpush.msra.mxu0 %v1068
        %v1070 = vand.u32 %v878, 4294901760
        %v1071 = vsub.f32 %v878, %v1070
        %v1072 = vand.u32 %v1071, 4294901760
        %1073 = vmatpush.msra.mxu0 %v1072
        %v1074 = vand.u32 %v877, 4294901760
        %v1075 = vsub.f32 %v877, %v1074
        %v1076 = vand.u32 %v1075, 4294901760
        %1077 = vmatpush.msra.mxu0 %v1076
        %v1078 = vand.u32 %v876, 4294901760
        %v1079 = vsub.f32 %v876, %v1078
        %v1080 = vand.u32 %v1079, 4294901760
        %1081 = vmatpush.msra.mxu0 %v1080
        %v1082 = vand.u32 %v875, 4294901760
        %v1083 = vsub.f32 %v875, %v1082
        %v1084 = vand.u32 %v1083, 4294901760
        %1085 = vmatpush.msra.mxu0 %v1084
        %v1086 = vand.u32 %v636, 4294901760
        %1087 = vmatmul.f32.gmra.mxu0 %v1086
        %v1088 = vpop.f32.mrf.mxu0
        %v1089 = vadd.f32 %v1044, %v1088
        %1090 = vdwg.mxu0
        %1091 = vmatpush.msra.mxu0 0.0
        %1092 = vmatpush.msra.mxu0 0.0
        %1093 = vmatpush.msra.mxu0 0.0
        %1094 = vmatpush.msra.mxu0 0.0
        %1095 = vmatpush.msra.mxu0 0.0
        %1096 = vmatpush.msra.mxu0 0.0
        %1097 = vmatpush.msra.mxu0 0.0
        %1098 = vmatpush.msra.mxu0 0.0
        %v1099 = vand.u32 %v882, 4294901760
        %1100 = vmatpush.msra.mxu0 %v1099
        %v1101 = vand.u32 %v881, 4294901760
        %1102 = vmatpush.msra.mxu0 %v1101
        %v1103 = vand.u32 %v880, 4294901760
        %1104 = vmatpush.msra.mxu0 %v1103
        %v1105 = vand.u32 %v879, 4294901760
        %1106 = vmatpush.msra.mxu0 %v1105
        %v1107 = vand.u32 %v878, 4294901760
        %1108 = vmatpush.msra.mxu0 %v1107
        %v1109 = vand.u32 %v877, 4294901760
        %1110 = vmatpush.msra.mxu0 %v1109
        %v1111 = vand.u32 %v876, 4294901760
        %1112 = vmatpush.msra.mxu0 %v1111
        %v1113 = vand.u32 %v875, 4294901760
        %1114 = vmatpush.msra.mxu0 %v1113
        %v1115 = vand.u32 %v636, 4294901760
        %1116 = vmatmul.f32.gmra.mxu0 %v1115
        %v1117 = vpop.f32.mrf.mxu0
        %v1118 = vadd.f32 %v1089, %v1117
        %1119 = vdwg.mxu0
        %v1120 = vlaneseq
        %v1121 = vshrl.u32 %v1120, 7
        %v1122 = vld [vmem:[%s4] sm:$0xf]
        %v1123 = vld [vmem:[%s5] sm:$0x1]
        %v1125 = vperm.slane %v1123, 0
        %v1127 = vadd.f32 %v1125, 0.0
        %vm1128 = vcmp.ge.s32.totalorder %v1121, 3
        %v1129 = vrot.slane %v873, 5
        %v1130 = vsel %vm1128, 1, 0
        %vm1131 = vcmp.eq.s32.totalorder %v1130, 1
        %v1132 = vsel %vm1131, %v1129, 0.0
        %v1133 = vperm.slane %v1122, 0
        %v1134 = vmul.f32 %v1132, %v1133
        %v1135 = vadd.f32 %v1127, %v1134
        %vm1136 = vcmp.ge.s32.totalorder %v1121, 2
        %v1137 = vrot.slane %v873, 6
        %v1138 = vsel %vm1136, 1, 0
        %vm1139 = vcmp.eq.s32.totalorder %v1138, 1
        %v1140 = vsel %vm1139, %v1137, 0.0
        %v1141 = vperm.slane %v1122, 1
        %v1142 = vmul.f32 %v1140, %v1141
        %v1143 = vadd.f32 %v1135, %v1142
        %vm1144 = vcmp.ge.s32.totalorder %v1121, 1
        %v1145 = vrot.slane %v873, 7
        %v1146 = vsel %vm1144, 1, 0
        %vm1147 = vcmp.eq.s32.totalorder %v1146, 1
        %v1148 = vsel %vm1147, %v1145, 0.0
        %v1149 = vperm.slane %v1122, 2
        %v1150 = vmul.f32 %v1148, %v1149
        %v1151 = vadd.f32 %v1143, %v1150
        %v1152 = vperm.slane %v1122, 3
        %v1153 = vmul.f32 %v873, %v1152
        %v1154 = vadd.f32 %v1151, %v1153
        %v1155 = vsub.f32 0.0, %v1154
        %v1156 = vmul.f32 %v1155, 1.442695
        %v1157 = vpow.pop %v1156
        %v1158 = vadd.f32 %v1157, 1.0
        %v1159 = vrcp.pop %v1158
        %v1160 = vmul.f32 %v1158, %v1159
        %v1161 = vsub.f32 1.0, %v1160
        %v1162 = vmul.f32 %v1159, %v1161
        %v1163 = vadd.f32 %v1159, %v1162
        %vm1164 = vweird.f32 %v1158
        %vm1165 = vweird.f32 %v1159
        %vm1166 = vmor %vm1164, %vm1165
        %v1167 = vsel %vm1166, %v1159, %v1163
        %v1168 = vand.u32 2147483647, %v1158
        %vm1169 = vcmp.eq.f32.partialorder %v1168, 8.507059e+37
        %v1170 = vand.u32 %v1158, 2147483648
        %v1171 = vor.u32 1.1754944e-38, %v1170
        %v1172 = vsel %vm1169, %v1171, %v1167
        %v1173 = vmul.f32 1.0, %v1172
        %v1174 = vmul.f32 %v1154, %v1173
        %v1175 = vld [vmem:[%s6] sm:$0xff]
        %v1176 = vld [vmem:[%s6 + $0x8] sm:$0xff]
        %v1177 = vld [vmem:[%s6 + $0x10] sm:$0xff]
        %v1178 = vld [vmem:[%s6 + $0x18] sm:$0xff]
        %v1179 = vld [vmem:[%s6 + $0x20] sm:$0xff]
        %v1180 = vld [vmem:[%s6 + $0x28] sm:$0xff]
        %v1181 = vld [vmem:[%s6 + $0x30] sm:$0xff]
        %v1182 = vld [vmem:[%s6 + $0x38] sm:$0xff]
        %v1183 = vld [vmem:[%s6 + $0x40] sm:$0xff]
        %v1184 = vld [vmem:[%s6 + $0x48] sm:$0xff]
        %v1185 = vld [vmem:[%s6 + $0x50] sm:$0xff]
        %v1186 = vld [vmem:[%s6 + $0x58] sm:$0xff]
        %v1187 = vld [vmem:[%s6 + $0x60] sm:$0xff]
        %v1188 = vld [vmem:[%s6 + $0x68] sm:$0xff]
        %v1189 = vld [vmem:[%s6 + $0x70] sm:$0xff]
        %v1190 = vld [vmem:[%s6 + $0x78] sm:$0xff]
        %v1191 = vld [vmem:[%s7] sm:$0x1]
        %v1193 = vperm.slane %v1191, 0
        %v1195 = vand.u32 %v1190, 4294901760
        %1196 = vmatpush.msra.mxu0 %v1195
        %v1197 = vand.u32 %v1189, 4294901760
        %1198 = vmatpush.msra.mxu0 %v1197
        %v1199 = vand.u32 %v1188, 4294901760
        %1200 = vmatpush.msra.mxu0 %v1199
        %v1201 = vand.u32 %v1187, 4294901760
        %1202 = vmatpush.msra.mxu0 %v1201
        %v1203 = vand.u32 %v1186, 4294901760
        %1204 = vmatpush.msra.mxu0 %v1203
        %v1205 = vand.u32 %v1185, 4294901760
        %1206 = vmatpush.msra.mxu0 %v1205
        %v1207 = vand.u32 %v1184, 4294901760
        %1208 = vmatpush.msra.mxu0 %v1207
        %v1209 = vand.u32 %v1183, 4294901760
        %1210 = vmatpush.msra.mxu0 %v1209
        %v1211 = vand.u32 %v1182, 4294901760
        %1212 = vmatpush.msra.mxu0 %v1211
        %v1213 = vand.u32 %v1181, 4294901760
        %1214 = vmatpush.msra.mxu0 %v1213
        %v1215 = vand.u32 %v1180, 4294901760
        %1216 = vmatpush.msra.mxu0 %v1215
        %v1217 = vand.u32 %v1179, 4294901760
        %1218 = vmatpush.msra.mxu0 %v1217
        %v1219 = vand.u32 %v1178, 4294901760
        %1220 = vmatpush.msra.mxu0 %v1219
        %v1221 = vand.u32 %v1177, 4294901760
        %1222 = vmatpush.msra.mxu0 %v1221
        %v1223 = vand.u32 %v1176, 4294901760
        %1224 = vmatpush.msra.mxu0 %v1223
        %v1225 = vand.u32 %v1175, 4294901760
        %1226 = vmatpush.msra.mxu0 %v1225
        %v1227 = vand.u32 %v1174, 4294901760
        %v1228 = vsub.f32 %v1174, %v1227
        %v1229 = vand.u32 %v1228, 4294901760
        %v1230 = vsub.f32 %v1228, %v1229
        %v1231 = vand.u32 %v1230, 4294901760
        %1232 = vmatmul.f32.gmra.mxu0 %v1231
        %v1233 = vpop.f32.mrf.mxu0
        %v1234 = vadd.f32 %v1193, %v1233
        %1235 = vdwg.mxu0
        %v1236 = vand.u32 %v1190, 4294901760
        %v1237 = vsub.f32 %v1190, %v1236
        %v1238 = vand.u32 %v1237, 4294901760
        %v1239 = vsub.f32 %v1237, %v1238
        %v1240 = vand.u32 %v1239, 4294901760
        %1241 = vmatpush.msra.mxu0 %v1240
        %v1242 = vand.u32 %v1189, 4294901760
        %v1243 = vsub.f32 %v1189, %v1242
        %v1244 = vand.u32 %v1243, 4294901760
        %v1245 = vsub.f32 %v1243, %v1244
        %v1246 = vand.u32 %v1245, 4294901760
        %1247 = vmatpush.msra.mxu0 %v1246
        %v1248 = vand.u32 %v1188, 4294901760
        %v1249 = vsub.f32 %v1188, %v1248
        %v1250 = vand.u32 %v1249, 4294901760
        %v1251 = vsub.f32 %v1249, %v1250
        %v1252 = vand.u32 %v1251, 4294901760
        %1253 = vmatpush.msra.mxu0 %v1252
        %v1254 = vand.u32 %v1187, 4294901760
        %v1255 = vsub.f32 %v1187, %v1254
        %v1256 = vand.u32 %v1255, 4294901760
        %v1257 = vsub.f32 %v1255, %v1256
        %v1258 = vand.u32 %v1257, 4294901760
        %1259 = vmatpush.msra.mxu0 %v1258
        %v1260 = vand.u32 %v1186, 4294901760
        %v1261 = vsub.f32 %v1186, %v1260
        %v1262 = vand.u32 %v1261, 4294901760
        %v1263 = vsub.f32 %v1261, %v1262
        %v1264 = vand.u32 %v1263, 4294901760
        %1265 = vmatpush.msra.mxu0 %v1264
        %v1266 = vand.u32 %v1185, 4294901760
        %v1267 = vsub.f32 %v1185, %v1266
        %v1268 = vand.u32 %v1267, 4294901760
        %v1269 = vsub.f32 %v1267, %v1268
        %v1270 = vand.u32 %v1269, 4294901760
        %1271 = vmatpush.msra.mxu0 %v1270
        %v1272 = vand.u32 %v1184, 4294901760
        %v1273 = vsub.f32 %v1184, %v1272
        %v1274 = vand.u32 %v1273, 4294901760
        %v1275 = vsub.f32 %v1273, %v1274
        %v1276 = vand.u32 %v1275, 4294901760
        %1277 = vmatpush.msra.mxu0 %v1276
        %v1278 = vand.u32 %v1183, 4294901760
        %v1279 = vsub.f32 %v1183, %v1278
        %v1280 = vand.u32 %v1279, 4294901760
        %v1281 = vsub.f32 %v1279, %v1280
        %v1282 = vand.u32 %v1281, 4294901760
        %1283 = vmatpush.msra.mxu0 %v1282
        %v1284 = vand.u32 %v1182, 4294901760
        %v1285 = vsub.f32 %v1182, %v1284
        %v1286 = vand.u32 %v1285, 4294901760
        %v1287 = vsub.f32 %v1285, %v1286
        %v1288 = vand.u32 %v1287, 4294901760
        %1289 = vmatpush.msra.mxu0 %v1288
        %v1290 = vand.u32 %v1181, 4294901760
        %v1291 = vsub.f32 %v1181, %v1290
        %v1292 = vand.u32 %v1291, 4294901760
        %v1293 = vsub.f32 %v1291, %v1292
        %v1294 = vand.u32 %v1293, 4294901760
        %1295 = vmatpush.msra.mxu0 %v1294
        %v1296 = vand.u32 %v1180, 4294901760
        %v1297 = vsub.f32 %v1180, %v1296
        %v1298 = vand.u32 %v1297, 4294901760
        %v1299 = vsub.f32 %v1297, %v1298
        %v1300 = vand.u32 %v1299, 4294901760
        %1301 = vmatpush.msra.mxu0 %v1300
        %v1302 = vand.u32 %v1179, 4294901760
        %v1303 = vsub.f32 %v1179, %v1302
        %v1304 = vand.u32 %v1303, 4294901760
        %v1305 = vsub.f32 %v1303, %v1304
        %v1306 = vand.u32 %v1305, 4294901760
        %1307 = vmatpush.msra.mxu0 %v1306
        %v1308 = vand.u32 %v1178, 4294901760
        %v1309 = vsub.f32 %v1178, %v1308
        %v1310 = vand.u32 %v1309, 4294901760
        %v1311 = vsub.f32 %v1309, %v1310
        %v1312 = vand.u32 %v1311, 4294901760
        %1313 = vmatpush.msra.mxu0 %v1312
        %v1314 = vand.u32 %v1177, 4294901760
        %v1315 = vsub.f32 %v1177, %v1314
        %v1316 = vand.u32 %v1315, 4294901760
        %v1317 = vsub.f32 %v1315, %v1316
        %v1318 = vand.u32 %v1317, 4294901760
        %1319 = vmatpush.msra.mxu0 %v1318
        %v1320 = vand.u32 %v1176, 4294901760
        %v1321 = vsub.f32 %v1176, %v1320
        %v1322 = vand.u32 %v1321, 4294901760
        %v1323 = vsub.f32 %v1321, %v1322
        %v1324 = vand.u32 %v1323, 4294901760
        %1325 = vmatpush.msra.mxu0 %v1324
        %v1326 = vand.u32 %v1175, 4294901760
        %v1327 = vsub.f32 %v1175, %v1326
        %v1328 = vand.u32 %v1327, 4294901760
        %v1329 = vsub.f32 %v1327, %v1328
        %v1330 = vand.u32 %v1329, 4294901760
        %1331 = vmatpush.msra.mxu0 %v1330
        %v1332 = vand.u32 %v1174, 4294901760
        %1333 = vmatmul.f32.gmra.mxu0 %v1332
        %v1334 = vpop.f32.mrf.mxu0
        %v1335 = vadd.f32 %v1234, %v1334
        %1336 = vdwg.mxu0
        %v1337 = vand.u32 %v1190, 4294901760
        %v1338 = vsub.f32 %v1190, %v1337
        %1339 = vmatpush.msra.mxu0 %v1338
        %v1340 = vand.u32 %v1189, 4294901760
        %v1341 = vsub.f32 %v1189, %v1340
        %1342 = vmatpush.msra.mxu0 %v1341
        %v1343 = vand.u32 %v1188, 4294901760
        %v1344 = vsub.f32 %v1188, %v1343
        %1345 = vmatpush.msra.mxu0 %v1344
        %v1346 = vand.u32 %v1187, 4294901760
        %v1347 = vsub.f32 %v1187, %v1346
        %1348 = vmatpush.msra.mxu0 %v1347
        %v1349 = vand.u32 %v1186, 4294901760
        %v1350 = vsub.f32 %v1186, %v1349
        %1351 = vmatpush.msra.mxu0 %v1350
        %v1352 = vand.u32 %v1185, 4294901760
        %v1353 = vsub.f32 %v1185, %v1352
        %1354 = vmatpush.msra.mxu0 %v1353
        %v1355 = vand.u32 %v1184, 4294901760
        %v1356 = vsub.f32 %v1184, %v1355
        %1357 = vmatpush.msra.mxu0 %v1356
        %v1358 = vand.u32 %v1183, 4294901760
        %v1359 = vsub.f32 %v1183, %v1358
        %1360 = vmatpush.msra.mxu0 %v1359
        %v1361 = vand.u32 %v1182, 4294901760
        %v1362 = vsub.f32 %v1182, %v1361
        %1363 = vmatpush.msra.mxu0 %v1362
        %v1364 = vand.u32 %v1181, 4294901760
        %v1365 = vsub.f32 %v1181, %v1364
        %1366 = vmatpush.msra.mxu0 %v1365
        %v1367 = vand.u32 %v1180, 4294901760
        %v1368 = vsub.f32 %v1180, %v1367
        %1369 = vmatpush.msra.mxu0 %v1368
        %v1370 = vand.u32 %v1179, 4294901760
        %v1371 = vsub.f32 %v1179, %v1370
        %1372 = vmatpush.msra.mxu0 %v1371
        %v1373 = vand.u32 %v1178, 4294901760
        %v1374 = vsub.f32 %v1178, %v1373
        %1375 = vmatpush.msra.mxu0 %v1374
        %v1376 = vand.u32 %v1177, 4294901760
        %v1377 = vsub.f32 %v1177, %v1376
        %1378 = vmatpush.msra.mxu0 %v1377
        %v1379 = vand.u32 %v1176, 4294901760
        %v1380 = vsub.f32 %v1176, %v1379
        %1381 = vmatpush.msra.mxu0 %v1380
        %v1382 = vand.u32 %v1175, 4294901760
        %v1383 = vsub.f32 %v1175, %v1382
        %1384 = vmatpush.msra.mxu0 %v1383
        %v1385 = vand.u32 %v1174, 4294901760
        %v1386 = vsub.f32 %v1174, %v1385
        %1387 = vmatmul.f32.gmra.mxu0 %v1386
        %v1388 = vpop.f32.mrf.mxu0
        %v1389 = vadd.f32 %v1335, %v1388
        %1390 = vdwg.mxu0
        %v1391 = vand.u32 %v1190, 4294901760
        %1392 = vmatpush.msra.mxu0 %v1391
        %v1393 = vand.u32 %v1189, 4294901760
        %1394 = vmatpush.msra.mxu0 %v1393
        %v1395 = vand.u32 %v1188, 4294901760
        %1396 = vmatpush.msra.mxu0 %v1395
        %v1397 = vand.u32 %v1187, 4294901760
        %1398 = vmatpush.msra.mxu0 %v1397
        %v1399 = vand.u32 %v1186, 4294901760
        %1400 = vmatpush.msra.mxu0 %v1399
        %v1401 = vand.u32 %v1185, 4294901760
        %1402 = vmatpush.msra.mxu0 %v1401
        %v1403 = vand.u32 %v1184, 4294901760
        %1404 = vmatpush.msra.mxu0 %v1403
        %v1405 = vand.u32 %v1183, 4294901760
        %1406 = vmatpush.msra.mxu0 %v1405
        %v1407 = vand.u32 %v1182, 4294901760
        %1408 = vmatpush.msra.mxu0 %v1407
        %v1409 = vand.u32 %v1181, 4294901760
        %1410 = vmatpush.msra.mxu0 %v1409
        %v1411 = vand.u32 %v1180, 4294901760
        %1412 = vmatpush.msra.mxu0 %v1411
        %v1413 = vand.u32 %v1179, 4294901760
        %1414 = vmatpush.msra.mxu0 %v1413
        %v1415 = vand.u32 %v1178, 4294901760
        %1416 = vmatpush.msra.mxu0 %v1415
        %v1417 = vand.u32 %v1177, 4294901760
        %1418 = vmatpush.msra.mxu0 %v1417
        %v1419 = vand.u32 %v1176, 4294901760
        %1420 = vmatpush.msra.mxu0 %v1419
        %v1421 = vand.u32 %v1175, 4294901760
        %1422 = vmatpush.msra.mxu0 %v1421
        %v1423 = vand.u32 %v1174, 4294901760
        %v1424 = vsub.f32 %v1174, %v1423
        %v1425 = vand.u32 %v1424, 4294901760
        %1426 = vmatmul.f32.gmra.mxu0 %v1425
        %v1427 = vpop.f32.mrf.mxu0
        %v1428 = vadd.f32 %v1389, %v1427
        %1429 = vdwg.mxu0
        %v1430 = vand.u32 %v1190, 4294901760
        %v1431 = vsub.f32 %v1190, %v1430
        %v1432 = vand.u32 %v1431, 4294901760
        %1433 = vmatpush.msra.mxu0 %v1432
        %v1434 = vand.u32 %v1189, 4294901760
        %v1435 = vsub.f32 %v1189, %v1434
        %v1436 = vand.u32 %v1435, 4294901760
        %1437 = vmatpush.msra.mxu0 %v1436
        %v1438 = vand.u32 %v1188, 4294901760
        %v1439 = vsub.f32 %v1188, %v1438
        %v1440 = vand.u32 %v1439, 4294901760
        %1441 = vmatpush.msra.mxu0 %v1440
        %v1442 = vand.u32 %v1187, 4294901760
        %v1443 = vsub.f32 %v1187, %v1442
        %v1444 = vand.u32 %v1443, 4294901760
        %1445 = vmatpush.msra.mxu0 %v1444
        %v1446 = vand.u32 %v1186, 4294901760
        %v1447 = vsub.f32 %v1186, %v1446
        %v1448 = vand.u32 %v1447, 4294901760
        %1449 = vmatpush.msra.mxu0 %v1448
        %v1450 = vand.u32 %v1185, 4294901760
        %v1451 = vsub.f32 %v1185, %v1450
        %v1452 = vand.u32 %v1451, 4294901760
        %1453 = vmatpush.msra.mxu0 %v1452
        %v1454 = vand.u32 %v1184, 4294901760
        %v1455 = vsub.f32 %v1184, %v1454
        %v1456 = vand.u32 %v1455, 4294901760
        %1457 = vmatpush.msra.mxu0 %v1456
        %v1458 = vand.u32 %v1183, 4294901760
        %v1459 = vsub.f32 %v1183, %v1458
        %v1460 = vand.u32 %v1459, 4294901760
        %1461 = vmatpush.msra.mxu0 %v1460
        %v1462 = vand.u32 %v1182, 4294901760
        %v1463 = vsub.f32 %v1182, %v1462
        %v1464 = vand.u32 %v1463, 4294901760
        %1465 = vmatpush.msra.mxu0 %v1464
        %v1466 = vand.u32 %v1181, 4294901760
        %v1467 = vsub.f32 %v1181, %v1466
        %v1468 = vand.u32 %v1467, 4294901760
        %1469 = vmatpush.msra.mxu0 %v1468
        %v1470 = vand.u32 %v1180, 4294901760
        %v1471 = vsub.f32 %v1180, %v1470
        %v1472 = vand.u32 %v1471, 4294901760
        %1473 = vmatpush.msra.mxu0 %v1472
        %v1474 = vand.u32 %v1179, 4294901760
        %v1475 = vsub.f32 %v1179, %v1474
        %v1476 = vand.u32 %v1475, 4294901760
        %1477 = vmatpush.msra.mxu0 %v1476
        %v1478 = vand.u32 %v1178, 4294901760
        %v1479 = vsub.f32 %v1178, %v1478
        %v1480 = vand.u32 %v1479, 4294901760
        %1481 = vmatpush.msra.mxu0 %v1480
        %v1482 = vand.u32 %v1177, 4294901760
        %v1483 = vsub.f32 %v1177, %v1482
        %v1484 = vand.u32 %v1483, 4294901760
        %1485 = vmatpush.msra.mxu0 %v1484
        %v1486 = vand.u32 %v1176, 4294901760
        %v1487 = vsub.f32 %v1176, %v1486
        %v1488 = vand.u32 %v1487, 4294901760
        %1489 = vmatpush.msra.mxu0 %v1488
        %v1490 = vand.u32 %v1175, 4294901760
        %v1491 = vsub.f32 %v1175, %v1490
        %v1492 = vand.u32 %v1491, 4294901760
        %1493 = vmatpush.msra.mxu0 %v1492
        %v1494 = vand.u32 %v1174, 4294901760
        %1495 = vmatmul.f32.gmra.mxu0 %v1494
        %v1496 = vpop.f32.mrf.mxu0
        %v1497 = vadd.f32 %v1428, %v1496
        %1498 = vdwg.mxu0
        %v1499 = vand.u32 %v1190, 4294901760
        %1500 = vmatpush.msra.mxu0 %v1499
        %v1501 = vand.u32 %v1189, 4294901760
        %1502 = vmatpush.msra.mxu0 %v1501
        %v1503 = vand.u32 %v1188, 4294901760
        %1504 = vmatpush.msra.mxu0 %v1503
        %v1505 = vand.u32 %v1187, 4294901760
        %1506 = vmatpush.msra.mxu0 %v1505
        %v1507 = vand.u32 %v1186, 4294901760
        %1508 = vmatpush.msra.mxu0 %v1507
        %v1509 = vand.u32 %v1185, 4294901760
        %1510 = vmatpush.msra.mxu0 %v1509
        %v1511 = vand.u32 %v1184, 4294901760
        %1512 = vmatpush.msra.mxu0 %v1511
        %v1513 = vand.u32 %v1183, 4294901760
        %1514 = vmatpush.msra.mxu0 %v1513
        %v1515 = vand.u32 %v1182, 4294901760
        %1516 = vmatpush.msra.mxu0 %v1515
        %v1517 = vand.u32 %v1181, 4294901760
        %1518 = vmatpush.msra.mxu0 %v1517
        %v1519 = vand.u32 %v1180, 4294901760
        %1520 = vmatpush.msra.mxu0 %v1519
        %v1521 = vand.u32 %v1179, 4294901760
        %1522 = vmatpush.msra.mxu0 %v1521
        %v1523 = vand.u32 %v1178, 4294901760
        %1524 = vmatpush.msra.mxu0 %v1523
        %v1525 = vand.u32 %v1177, 4294901760
        %1526 = vmatpush.msra.mxu0 %v1525
        %v1527 = vand.u32 %v1176, 4294901760
        %1528 = vmatpush.msra.mxu0 %v1527
        %v1529 = vand.u32 %v1175, 4294901760
        %1530 = vmatpush.msra.mxu0 %v1529
        %v1531 = vand.u32 %v1174, 4294901760
        %1532 = vmatmul.f32.gmra.mxu0 %v1531
        %v1533 = vpop.f32.mrf.mxu0
        %v1534 = vadd.f32 %v1497, %v1533
        %1535 = vdwg.mxu0
        %v1536 = vmax.f32 %v1534, 0.0
        %v1537 = vand.u32 2147483647, %v1534
        %v1538 = vsub.f32 0.0, %v1537
        %v1539 = vmul.f32 %v1538, 1.442695
        %v1540 = vpow.pop %v1539
        %v1541 = vadd.f32 %v1540, 1.0
        %v1542 = vlog2.pop %v1541
        %v1543 = vmul.f32 %v1542, 0.6931472
        %v1544 = vadd.f32 %v1536, %v1543
        %v1545 = vld [vmem:[%s8] sm:$0xff]
        %v1546 = vld [vmem:[%s8 + $0x8] sm:$0xff]
        %v1547 = vld [vmem:[%s8 + $0x10] sm:$0xff]
        %v1548 = vld [vmem:[%s8 + $0x18] sm:$0xff]
        %v1549 = vld [vmem:[%s8 + $0x20] sm:$0xff]
        %v1550 = vld [vmem:[%s8 + $0x28] sm:$0xff]
        %v1551 = vld [vmem:[%s8 + $0x30] sm:$0xff]
        %v1552 = vld [vmem:[%s8 + $0x38] sm:$0xff]
        %v1553 = vld [vmem:[%s8 + $0x40] sm:$0xff]
        %v1554 = vld [vmem:[%s8 + $0x48] sm:$0xff]
        %v1555 = vld [vmem:[%s8 + $0x50] sm:$0xff]
        %v1556 = vld [vmem:[%s8 + $0x58] sm:$0xff]
        %v1557 = vld [vmem:[%s8 + $0x60] sm:$0xff]
        %v1558 = vld [vmem:[%s8 + $0x68] sm:$0xff]
        %v1559 = vld [vmem:[%s8 + $0x70] sm:$0xff]
        %v1560 = vld [vmem:[%s8 + $0x78] sm:$0xff]
        %v1561 = vand.u32 %v1560, 4294901760
        %1562 = vmatpush.msra.mxu0 %v1561
        %v1563 = vand.u32 %v1559, 4294901760
        %1564 = vmatpush.msra.mxu0 %v1563
        %v1565 = vand.u32 %v1558, 4294901760
        %1566 = vmatpush.msra.mxu0 %v1565
        %v1567 = vand.u32 %v1557, 4294901760
        %1568 = vmatpush.msra.mxu0 %v1567
        %v1569 = vand.u32 %v1556, 4294901760
        %1570 = vmatpush.msra.mxu0 %v1569
        %v1571 = vand.u32 %v1555, 4294901760
        %1572 = vmatpush.msra.mxu0 %v1571
        %v1573 = vand.u32 %v1554, 4294901760
        %1574 = vmatpush.msra.mxu0 %v1573
        %v1575 = vand.u32 %v1553, 4294901760
        %1576 = vmatpush.msra.mxu0 %v1575
        %v1577 = vand.u32 %v1552, 4294901760
        %1578 = vmatpush.msra.mxu0 %v1577
        %v1579 = vand.u32 %v1551, 4294901760
        %1580 = vmatpush.msra.mxu0 %v1579
        %v1581 = vand.u32 %v1550, 4294901760
        %1582 = vmatpush.msra.mxu0 %v1581
        %v1583 = vand.u32 %v1549, 4294901760
        %1584 = vmatpush.msra.mxu0 %v1583
        %v1585 = vand.u32 %v1548, 4294901760
        %1586 = vmatpush.msra.mxu0 %v1585
        %v1587 = vand.u32 %v1547, 4294901760
        %1588 = vmatpush.msra.mxu0 %v1587
        %v1589 = vand.u32 %v1546, 4294901760
        %1590 = vmatpush.msra.mxu0 %v1589
        %v1591 = vand.u32 %v1545, 4294901760
        %1592 = vmatpush.msra.mxu0 %v1591
        %v1593 = vand.u32 %v1174, 4294901760
        %v1594 = vsub.f32 %v1174, %v1593
        %v1595 = vand.u32 %v1594, 4294901760
        %v1596 = vsub.f32 %v1594, %v1595
        %v1597 = vand.u32 %v1596, 4294901760
        %1598 = vmatmul.f32.gmra.mxu0 %v1597
        %v1599 = vpop.f32.mrf.mxu0
        %v1600 = vadd.f32 0.0, %v1599
        %1601 = vdwg.mxu0
        %v1602 = vand.u32 %v1560, 4294901760
        %v1603 = vsub.f32 %v1560, %v1602
        %v1604 = vand.u32 %v1603, 4294901760
        %v1605 = vsub.f32 %v1603, %v1604
        %v1606 = vand.u32 %v1605, 4294901760
        %1607 = vmatpush.msra.mxu0 %v1606
        %v1608 = vand.u32 %v1559, 4294901760
        %v1609 = vsub.f32 %v1559, %v1608
        %v1610 = vand.u32 %v1609, 4294901760
        %v1611 = vsub.f32 %v1609, %v1610
        %v1612 = vand.u32 %v1611, 4294901760
        %1613 = vmatpush.msra.mxu0 %v1612
        %v1614 = vand.u32 %v1558, 4294901760
        %v1615 = vsub.f32 %v1558, %v1614
        %v1616 = vand.u32 %v1615, 4294901760
        %v1617 = vsub.f32 %v1615, %v1616
        %v1618 = vand.u32 %v1617, 4294901760
        %1619 = vmatpush.msra.mxu0 %v1618
        %v1620 = vand.u32 %v1557, 4294901760
        %v1621 = vsub.f32 %v1557, %v1620
        %v1622 = vand.u32 %v1621, 4294901760
        %v1623 = vsub.f32 %v1621, %v1622
        %v1624 = vand.u32 %v1623, 4294901760
        %1625 = vmatpush.msra.mxu0 %v1624
        %v1626 = vand.u32 %v1556, 4294901760
        %v1627 = vsub.f32 %v1556, %v1626
        %v1628 = vand.u32 %v1627, 4294901760
        %v1629 = vsub.f32 %v1627, %v1628
        %v1630 = vand.u32 %v1629, 4294901760
        %1631 = vmatpush.msra.mxu0 %v1630
        %v1632 = vand.u32 %v1555, 4294901760
        %v1633 = vsub.f32 %v1555, %v1632
        %v1634 = vand.u32 %v1633, 4294901760
        %v1635 = vsub.f32 %v1633, %v1634
        %v1636 = vand.u32 %v1635, 4294901760
        %1637 = vmatpush.msra.mxu0 %v1636
        %v1638 = vand.u32 %v1554, 4294901760
        %v1639 = vsub.f32 %v1554, %v1638
        %v1640 = vand.u32 %v1639, 4294901760
        %v1641 = vsub.f32 %v1639, %v1640
        %v1642 = vand.u32 %v1641, 4294901760
        %1643 = vmatpush.msra.mxu0 %v1642
        %v1644 = vand.u32 %v1553, 4294901760
        %v1645 = vsub.f32 %v1553, %v1644
        %v1646 = vand.u32 %v1645, 4294901760
        %v1647 = vsub.f32 %v1645, %v1646
        %v1648 = vand.u32 %v1647, 4294901760
        %1649 = vmatpush.msra.mxu0 %v1648
        %v1650 = vand.u32 %v1552, 4294901760
        %v1651 = vsub.f32 %v1552, %v1650
        %v1652 = vand.u32 %v1651, 4294901760
        %v1653 = vsub.f32 %v1651, %v1652
        %v1654 = vand.u32 %v1653, 4294901760
        %1655 = vmatpush.msra.mxu0 %v1654
        %v1656 = vand.u32 %v1551, 4294901760
        %v1657 = vsub.f32 %v1551, %v1656
        %v1658 = vand.u32 %v1657, 4294901760
        %v1659 = vsub.f32 %v1657, %v1658
        %v1660 = vand.u32 %v1659, 4294901760
        %1661 = vmatpush.msra.mxu0 %v1660
        %v1662 = vand.u32 %v1550, 4294901760
        %v1663 = vsub.f32 %v1550, %v1662
        %v1664 = vand.u32 %v1663, 4294901760
        %v1665 = vsub.f32 %v1663, %v1664
        %v1666 = vand.u32 %v1665, 4294901760
        %1667 = vmatpush.msra.mxu0 %v1666
        %v1668 = vand.u32 %v1549, 4294901760
        %v1669 = vsub.f32 %v1549, %v1668
        %v1670 = vand.u32 %v1669, 4294901760
        %v1671 = vsub.f32 %v1669, %v1670
        %v1672 = vand.u32 %v1671, 4294901760
        %1673 = vmatpush.msra.mxu0 %v1672
        %v1674 = vand.u32 %v1548, 4294901760
        %v1675 = vsub.f32 %v1548, %v1674
        %v1676 = vand.u32 %v1675, 4294901760
        %v1677 = vsub.f32 %v1675, %v1676
        %v1678 = vand.u32 %v1677, 4294901760
        %1679 = vmatpush.msra.mxu0 %v1678
        %v1680 = vand.u32 %v1547, 4294901760
        %v1681 = vsub.f32 %v1547, %v1680
        %v1682 = vand.u32 %v1681, 4294901760
        %v1683 = vsub.f32 %v1681, %v1682
        %v1684 = vand.u32 %v1683, 4294901760
        %1685 = vmatpush.msra.mxu0 %v1684
        %v1686 = vand.u32 %v1546, 4294901760
        %v1687 = vsub.f32 %v1546, %v1686
        %v1688 = vand.u32 %v1687, 4294901760
        %v1689 = vsub.f32 %v1687, %v1688
        %v1690 = vand.u32 %v1689, 4294901760
        %1691 = vmatpush.msra.mxu0 %v1690
        %v1692 = vand.u32 %v1545, 4294901760
        %v1693 = vsub.f32 %v1545, %v1692
        %v1694 = vand.u32 %v1693, 4294901760
        %v1695 = vsub.f32 %v1693, %v1694
        %v1696 = vand.u32 %v1695, 4294901760
        %1697 = vmatpush.msra.mxu0 %v1696
        %v1698 = vand.u32 %v1174, 4294901760
        %1699 = vmatmul.f32.gmra.mxu0 %v1698
        %v1700 = vpop.f32.mrf.mxu0
        %v1701 = vadd.f32 %v1600, %v1700
        %1702 = vdwg.mxu0
        %v1703 = vand.u32 %v1560, 4294901760
        %v1704 = vsub.f32 %v1560, %v1703
        %1705 = vmatpush.msra.mxu0 %v1704
        %v1706 = vand.u32 %v1559, 4294901760
        %v1707 = vsub.f32 %v1559, %v1706
        %1708 = vmatpush.msra.mxu0 %v1707
        %v1709 = vand.u32 %v1558, 4294901760
        %v1710 = vsub.f32 %v1558, %v1709
        %1711 = vmatpush.msra.mxu0 %v1710
        %v1712 = vand.u32 %v1557, 4294901760
        %v1713 = vsub.f32 %v1557, %v1712
        %1714 = vmatpush.msra.mxu0 %v1713
        %v1715 = vand.u32 %v1556, 4294901760
        %v1716 = vsub.f32 %v1556, %v1715
        %1717 = vmatpush.msra.mxu0 %v1716
        %v1718 = vand.u32 %v1555, 4294901760
        %v1719 = vsub.f32 %v1555, %v1718
        %1720 = vmatpush.msra.mxu0 %v1719
        %v1721 = vand.u32 %v1554, 4294901760
        %v1722 = vsub.f32 %v1554, %v1721
        %1723 = vmatpush.msra.mxu0 %v1722
        %v1724 = vand.u32 %v1553, 4294901760
        %v1725 = vsub.f32 %v1553, %v1724
        %1726 = vmatpush.msra.mxu0 %v1725
        %v1727 = vand.u32 %v1552, 4294901760
        %v1728 = vsub.f32 %v1552, %v1727
        %1729 = vmatpush.msra.mxu0 %v1728
        %v1730 = vand.u32 %v1551, 4294901760
        %v1731 = vsub.f32 %v1551, %v1730
        %1732 = vmatpush.msra.mxu0 %v1731
        %v1733 = vand.u32 %v1550, 4294901760
        %v1734 = vsub.f32 %v1550, %v1733
        %1735 = vmatpush.msra.mxu0 %v1734
        %v1736 = vand.u32 %v1549, 4294901760
        %v1737 = vsub.f32 %v1549, %v1736
        %1738 = vmatpush.msra.mxu0 %v1737
        %v1739 = vand.u32 %v1548, 4294901760
        %v1740 = vsub.f32 %v1548, %v1739
        %1741 = vmatpush.msra.mxu0 %v1740
        %v1742 = vand.u32 %v1547, 4294901760
        %v1743 = vsub.f32 %v1547, %v1742
        %1744 = vmatpush.msra.mxu0 %v1743
        %v1745 = vand.u32 %v1546, 4294901760
        %v1746 = vsub.f32 %v1546, %v1745
        %1747 = vmatpush.msra.mxu0 %v1746
        %v1748 = vand.u32 %v1545, 4294901760
        %v1749 = vsub.f32 %v1545, %v1748
        %1750 = vmatpush.msra.mxu0 %v1749
        %v1751 = vand.u32 %v1174, 4294901760
        %v1752 = vsub.f32 %v1174, %v1751
        %1753 = vmatmul.f32.gmra.mxu0 %v1752
        %v1754 = vpop.f32.mrf.mxu0
        %v1755 = vadd.f32 %v1701, %v1754
        %1756 = vdwg.mxu0
        %v1757 = vand.u32 %v1560, 4294901760
        %1758 = vmatpush.msra.mxu0 %v1757
        %v1759 = vand.u32 %v1559, 4294901760
        %1760 = vmatpush.msra.mxu0 %v1759
        %v1761 = vand.u32 %v1558, 4294901760
        %1762 = vmatpush.msra.mxu0 %v1761
        %v1763 = vand.u32 %v1557, 4294901760
        %1764 = vmatpush.msra.mxu0 %v1763
        %v1765 = vand.u32 %v1556, 4294901760
        %1766 = vmatpush.msra.mxu0 %v1765
        %v1767 = vand.u32 %v1555, 4294901760
        %1768 = vmatpush.msra.mxu0 %v1767
        %v1769 = vand.u32 %v1554, 4294901760
        %1770 = vmatpush.msra.mxu0 %v1769
        %v1771 = vand.u32 %v1553, 4294901760
        %1772 = vmatpush.msra.mxu0 %v1771
        %v1773 = vand.u32 %v1552, 4294901760
        %1774 = vmatpush.msra.mxu0 %v1773
        %v1775 = vand.u32 %v1551, 4294901760
        %1776 = vmatpush.msra.mxu0 %v1775
        %v1777 = vand.u32 %v1550, 4294901760
        %1778 = vmatpush.msra.mxu0 %v1777
        %v1779 = vand.u32 %v1549, 4294901760
        %1780 = vmatpush.msra.mxu0 %v1779
        %v1781 = vand.u32 %v1548, 4294901760
        %1782 = vmatpush.msra.mxu0 %v1781
        %v1783 = vand.u32 %v1547, 4294901760
        %1784 = vmatpush.msra.mxu0 %v1783
        %v1785 = vand.u32 %v1546, 4294901760
        %1786 = vmatpush.msra.mxu0 %v1785
        %v1787 = vand.u32 %v1545, 4294901760
        %1788 = vmatpush.msra.mxu0 %v1787
        %v1789 = vand.u32 %v1174, 4294901760
        %v1790 = vsub.f32 %v1174, %v1789
        %v1791 = vand.u32 %v1790, 4294901760
        %1792 = vmatmul.f32.gmra.mxu0 %v1791
        %v1793 = vpop.f32.mrf.mxu0
        %v1794 = vadd.f32 %v1755, %v1793
        %1795 = vdwg.mxu0
        %v1796 = vand.u32 %v1560, 4294901760
        %v1797 = vsub.f32 %v1560, %v1796
        %v1798 = vand.u32 %v1797, 4294901760
        %1799 = vmatpush.msra.mxu0 %v1798
        %v1800 = vand.u32 %v1559, 4294901760
        %v1801 = vsub.f32 %v1559, %v1800
        %v1802 = vand.u32 %v1801, 4294901760
        %1803 = vmatpush.msra.mxu0 %v1802
        %v1804 = vand.u32 %v1558, 4294901760
        %v1805 = vsub.f32 %v1558, %v1804
        %v1806 = vand.u32 %v1805, 4294901760
        %1807 = vmatpush.msra.mxu0 %v1806
        %v1808 = vand.u32 %v1557, 4294901760
        %v1809 = vsub.f32 %v1557, %v1808
        %v1810 = vand.u32 %v1809, 4294901760
        %1811 = vmatpush.msra.mxu0 %v1810
        %v1812 = vand.u32 %v1556, 4294901760
        %v1813 = vsub.f32 %v1556, %v1812
        %v1814 = vand.u32 %v1813, 4294901760
        %1815 = vmatpush.msra.mxu0 %v1814
        %v1816 = vand.u32 %v1555, 4294901760
        %v1817 = vsub.f32 %v1555, %v1816
        %v1818 = vand.u32 %v1817, 4294901760
        %1819 = vmatpush.msra.mxu0 %v1818
        %v1820 = vand.u32 %v1554, 4294901760
        %v1821 = vsub.f32 %v1554, %v1820
        %v1822 = vand.u32 %v1821, 4294901760
        %1823 = vmatpush.msra.mxu0 %v1822
        %v1824 = vand.u32 %v1553, 4294901760
        %v1825 = vsub.f32 %v1553, %v1824
        %v1826 = vand.u32 %v1825, 4294901760
        %1827 = vmatpush.msra.mxu0 %v1826
        %v1828 = vand.u32 %v1552, 4294901760
        %v1829 = vsub.f32 %v1552, %v1828
        %v1830 = vand.u32 %v1829, 4294901760
        %1831 = vmatpush.msra.mxu0 %v1830
        %v1832 = vand.u32 %v1551, 4294901760
        %v1833 = vsub.f32 %v1551, %v1832
        %v1834 = vand.u32 %v1833, 4294901760
        %1835 = vmatpush.msra.mxu0 %v1834
        %v1836 = vand.u32 %v1550, 4294901760
        %v1837 = vsub.f32 %v1550, %v1836
        %v1838 = vand.u32 %v1837, 4294901760
        %1839 = vmatpush.msra.mxu0 %v1838
        %v1840 = vand.u32 %v1549, 4294901760
        %v1841 = vsub.f32 %v1549, %v1840
        %v1842 = vand.u32 %v1841, 4294901760
        %1843 = vmatpush.msra.mxu0 %v1842
        %v1844 = vand.u32 %v1548, 4294901760
        %v1845 = vsub.f32 %v1548, %v1844
        %v1846 = vand.u32 %v1845, 4294901760
        %1847 = vmatpush.msra.mxu0 %v1846
        %v1848 = vand.u32 %v1547, 4294901760
        %v1849 = vsub.f32 %v1547, %v1848
        %v1850 = vand.u32 %v1849, 4294901760
        %1851 = vmatpush.msra.mxu0 %v1850
        %v1852 = vand.u32 %v1546, 4294901760
        %v1853 = vsub.f32 %v1546, %v1852
        %v1854 = vand.u32 %v1853, 4294901760
        %1855 = vmatpush.msra.mxu0 %v1854
        %v1856 = vand.u32 %v1545, 4294901760
        %v1857 = vsub.f32 %v1545, %v1856
        %v1858 = vand.u32 %v1857, 4294901760
        %1859 = vmatpush.msra.mxu0 %v1858
        %v1860 = vand.u32 %v1174, 4294901760
        %1861 = vmatmul.f32.gmra.mxu0 %v1860
        %v1862 = vpop.f32.mrf.mxu0
        %v1863 = vadd.f32 %v1794, %v1862
        %1864 = vdwg.mxu0
        %v1865 = vand.u32 %v1560, 4294901760
        %1866 = vmatpush.msra.mxu0 %v1865
        %v1867 = vand.u32 %v1559, 4294901760
        %1868 = vmatpush.msra.mxu0 %v1867
        %v1869 = vand.u32 %v1558, 4294901760
        %1870 = vmatpush.msra.mxu0 %v1869
        %v1871 = vand.u32 %v1557, 4294901760
        %1872 = vmatpush.msra.mxu0 %v1871
        %v1873 = vand.u32 %v1556, 4294901760
        %1874 = vmatpush.msra.mxu0 %v1873
        %v1875 = vand.u32 %v1555, 4294901760
        %1876 = vmatpush.msra.mxu0 %v1875
        %v1877 = vand.u32 %v1554, 4294901760
        %1878 = vmatpush.msra.mxu0 %v1877
        %v1879 = vand.u32 %v1553, 4294901760
        %1880 = vmatpush.msra.mxu0 %v1879
        %v1881 = vand.u32 %v1552, 4294901760
        %1882 = vmatpush.msra.mxu0 %v1881
        %v1883 = vand.u32 %v1551, 4294901760
        %1884 = vmatpush.msra.mxu0 %v1883
        %v1885 = vand.u32 %v1550, 4294901760
        %1886 = vmatpush.msra.mxu0 %v1885
        %v1887 = vand.u32 %v1549, 4294901760
        %1888 = vmatpush.msra.mxu0 %v1887
        %v1889 = vand.u32 %v1548, 4294901760
        %1890 = vmatpush.msra.mxu0 %v1889
        %v1891 = vand.u32 %v1547, 4294901760
        %1892 = vmatpush.msra.mxu0 %v1891
        %v1893 = vand.u32 %v1546, 4294901760
        %1894 = vmatpush.msra.mxu0 %v1893
        %v1895 = vand.u32 %v1545, 4294901760
        %1896 = vmatpush.msra.mxu0 %v1895
        %v1897 = vand.u32 %v1174, 4294901760
        %1898 = vmatmul.f32.gmra.mxu0 %v1897
        %v1899 = vpop.f32.mrf.mxu0
        %v1900 = vadd.f32 %v1863, %v1899
        %1901 = vdwg.mxu0
        %v1902 = vld [vmem:[%s9] sm:$0xff]
        %v1903 = vld [vmem:[%s9 + $0x8] sm:$0xff]
        %v1904 = vld [vmem:[%s9 + $0x10] sm:$0xff]
        %v1905 = vld [vmem:[%s9 + $0x18] sm:$0xff]
        %v1906 = vld [vmem:[%s9 + $0x20] sm:$0xff]
        %v1907 = vld [vmem:[%s9 + $0x28] sm:$0xff]
        %v1908 = vld [vmem:[%s9 + $0x30] sm:$0xff]
        %v1909 = vld [vmem:[%s9 + $0x38] sm:$0xff]
        %v1910 = vld [vmem:[%s9 + $0x40] sm:$0xff]
        %v1911 = vld [vmem:[%s9 + $0x48] sm:$0xff]
        %v1912 = vld [vmem:[%s9 + $0x50] sm:$0xff]
        %v1913 = vld [vmem:[%s9 + $0x58] sm:$0xff]
        %v1914 = vld [vmem:[%s9 + $0x60] sm:$0xff]
        %v1915 = vld [vmem:[%s9 + $0x68] sm:$0xff]
        %v1916 = vld [vmem:[%s9 + $0x70] sm:$0xff]
        %v1917 = vld [vmem:[%s9 + $0x78] sm:$0xff]
        %v1918 = vand.u32 %v1917, 4294901760
        %1919 = vmatpush.msra.mxu0 %v1918
        %v1920 = vand.u32 %v1916, 4294901760
        %1921 = vmatpush.msra.mxu0 %v1920
        %v1922 = vand.u32 %v1915, 4294901760
        %1923 = vmatpush.msra.mxu0 %v1922
        %v1924 = vand.u32 %v1914, 4294901760
        %1925 = vmatpush.msra.mxu0 %v1924
        %v1926 = vand.u32 %v1913, 4294901760
        %1927 = vmatpush.msra.mxu0 %v1926
        %v1928 = vand.u32 %v1912, 4294901760
        %1929 = vmatpush.msra.mxu0 %v1928
        %v1930 = vand.u32 %v1911, 4294901760
        %1931 = vmatpush.msra.mxu0 %v1930
        %v1932 = vand.u32 %v1910, 4294901760
        %1933 = vmatpush.msra.mxu0 %v1932
        %v1934 = vand.u32 %v1909, 4294901760
        %1935 = vmatpush.msra.mxu0 %v1934
        %v1936 = vand.u32 %v1908, 4294901760
        %1937 = vmatpush.msra.mxu0 %v1936
        %v1938 = vand.u32 %v1907, 4294901760
        %1939 = vmatpush.msra.mxu0 %v1938
        %v1940 = vand.u32 %v1906, 4294901760
        %1941 = vmatpush.msra.mxu0 %v1940
        %v1942 = vand.u32 %v1905, 4294901760
        %1943 = vmatpush.msra.mxu0 %v1942
        %v1944 = vand.u32 %v1904, 4294901760
        %1945 = vmatpush.msra.mxu0 %v1944
        %v1946 = vand.u32 %v1903, 4294901760
        %1947 = vmatpush.msra.mxu0 %v1946
        %v1948 = vand.u32 %v1902, 4294901760
        %1949 = vmatpush.msra.mxu0 %v1948
        %v1950 = vand.u32 %v1174, 4294901760
        %v1951 = vsub.f32 %v1174, %v1950
        %v1952 = vand.u32 %v1951, 4294901760
        %v1953 = vsub.f32 %v1951, %v1952
        %v1954 = vand.u32 %v1953, 4294901760
        %1955 = vmatmul.f32.gmra.mxu0 %v1954
        %v1956 = vpop.f32.mrf.mxu0
        %v1957 = vadd.f32 0.0, %v1956
        %1958 = vdwg.mxu0
        %v1959 = vand.u32 %v1917, 4294901760
        %v1960 = vsub.f32 %v1917, %v1959
        %v1961 = vand.u32 %v1960, 4294901760
        %v1962 = vsub.f32 %v1960, %v1961
        %v1963 = vand.u32 %v1962, 4294901760
        %1964 = vmatpush.msra.mxu0 %v1963
        %v1965 = vand.u32 %v1916, 4294901760
        %v1966 = vsub.f32 %v1916, %v1965
        %v1967 = vand.u32 %v1966, 4294901760
        %v1968 = vsub.f32 %v1966, %v1967
        %v1969 = vand.u32 %v1968, 4294901760
        %1970 = vmatpush.msra.mxu0 %v1969
        %v1971 = vand.u32 %v1915, 4294901760
        %v1972 = vsub.f32 %v1915, %v1971
        %v1973 = vand.u32 %v1972, 4294901760
        %v1974 = vsub.f32 %v1972, %v1973
        %v1975 = vand.u32 %v1974, 4294901760
        %1976 = vmatpush.msra.mxu0 %v1975
        %v1977 = vand.u32 %v1914, 4294901760
        %v1978 = vsub.f32 %v1914, %v1977
        %v1979 = vand.u32 %v1978, 4294901760
        %v1980 = vsub.f32 %v1978, %v1979
        %v1981 = vand.u32 %v1980, 4294901760
        %1982 = vmatpush.msra.mxu0 %v1981
        %v1983 = vand.u32 %v1913, 4294901760
        %v1984 = vsub.f32 %v1913, %v1983
        %v1985 = vand.u32 %v1984, 4294901760
        %v1986 = vsub.f32 %v1984, %v1985
        %v1987 = vand.u32 %v1986, 4294901760
        %1988 = vmatpush.msra.mxu0 %v1987
        %v1989 = vand.u32 %v1912, 4294901760
        %v1990 = vsub.f32 %v1912, %v1989
        %v1991 = vand.u32 %v1990, 4294901760
        %v1992 = vsub.f32 %v1990, %v1991
        %v1993 = vand.u32 %v1992, 4294901760
        %1994 = vmatpush.msra.mxu0 %v1993
        %v1995 = vand.u32 %v1911, 4294901760
        %v1996 = vsub.f32 %v1911, %v1995
        %v1997 = vand.u32 %v1996, 4294901760
        %v1998 = vsub.f32 %v1996, %v1997
        %v1999 = vand.u32 %v1998, 4294901760
        %2000 = vmatpush.msra.mxu0 %v1999
        %v2001 = vand.u32 %v1910, 4294901760
        %v2002 = vsub.f32 %v1910, %v2001
        %v2003 = vand.u32 %v2002, 4294901760
        %v2004 = vsub.f32 %v2002, %v2003
        %v2005 = vand.u32 %v2004, 4294901760
        %2006 = vmatpush.msra.mxu0 %v2005
        %v2007 = vand.u32 %v1909, 4294901760
        %v2008 = vsub.f32 %v1909, %v2007
        %v2009 = vand.u32 %v2008, 4294901760
        %v2010 = vsub.f32 %v2008, %v2009
        %v2011 = vand.u32 %v2010, 4294901760
        %2012 = vmatpush.msra.mxu0 %v2011
        %v2013 = vand.u32 %v1908, 4294901760
        %v2014 = vsub.f32 %v1908, %v2013
        %v2015 = vand.u32 %v2014, 4294901760
        %v2016 = vsub.f32 %v2014, %v2015
        %v2017 = vand.u32 %v2016, 4294901760
        %2018 = vmatpush.msra.mxu0 %v2017
        %v2019 = vand.u32 %v1907, 4294901760
        %v2020 = vsub.f32 %v1907, %v2019
        %v2021 = vand.u32 %v2020, 4294901760
        %v2022 = vsub.f32 %v2020, %v2021
        %v2023 = vand.u32 %v2022, 4294901760
        %2024 = vmatpush.msra.mxu0 %v2023
        %v2025 = vand.u32 %v1906, 4294901760
        %v2026 = vsub.f32 %v1906, %v2025
        %v2027 = vand.u32 %v2026, 4294901760
        %v2028 = vsub.f32 %v2026, %v2027
        %v2029 = vand.u32 %v2028, 4294901760
        %2030 = vmatpush.msra.mxu0 %v2029
        %v2031 = vand.u32 %v1905, 4294901760
        %v2032 = vsub.f32 %v1905, %v2031
        %v2033 = vand.u32 %v2032, 4294901760
        %v2034 = vsub.f32 %v2032, %v2033
        %v2035 = vand.u32 %v2034, 4294901760
        %2036 = vmatpush.msra.mxu0 %v2035
        %v2037 = vand.u32 %v1904, 4294901760
        %v2038 = vsub.f32 %v1904, %v2037
        %v2039 = vand.u32 %v2038, 4294901760
        %v2040 = vsub.f32 %v2038, %v2039
        %v2041 = vand.u32 %v2040, 4294901760
        %2042 = vmatpush.msra.mxu0 %v2041
        %v2043 = vand.u32 %v1903, 4294901760
        %v2044 = vsub.f32 %v1903, %v2043
        %v2045 = vand.u32 %v2044, 4294901760
        %v2046 = vsub.f32 %v2044, %v2045
        %v2047 = vand.u32 %v2046, 4294901760
        %2048 = vmatpush.msra.mxu0 %v2047
        %v2049 = vand.u32 %v1902, 4294901760
        %v2050 = vsub.f32 %v1902, %v2049
        %v2051 = vand.u32 %v2050, 4294901760
        %v2052 = vsub.f32 %v2050, %v2051
        %v2053 = vand.u32 %v2052, 4294901760
        %2054 = vmatpush.msra.mxu0 %v2053
        %v2055 = vand.u32 %v1174, 4294901760
        %2056 = vmatmul.f32.gmra.mxu0 %v2055
        %v2057 = vpop.f32.mrf.mxu0
        %v2058 = vadd.f32 %v1957, %v2057
        %2059 = vdwg.mxu0
        %v2060 = vand.u32 %v1917, 4294901760
        %v2061 = vsub.f32 %v1917, %v2060
        %2062 = vmatpush.msra.mxu0 %v2061
        %v2063 = vand.u32 %v1916, 4294901760
        %v2064 = vsub.f32 %v1916, %v2063
        %2065 = vmatpush.msra.mxu0 %v2064
        %v2066 = vand.u32 %v1915, 4294901760
        %v2067 = vsub.f32 %v1915, %v2066
        %2068 = vmatpush.msra.mxu0 %v2067
        %v2069 = vand.u32 %v1914, 4294901760
        %v2070 = vsub.f32 %v1914, %v2069
        %2071 = vmatpush.msra.mxu0 %v2070
        %v2072 = vand.u32 %v1913, 4294901760
        %v2073 = vsub.f32 %v1913, %v2072
        %2074 = vmatpush.msra.mxu0 %v2073
        %v2075 = vand.u32 %v1912, 4294901760
        %v2076 = vsub.f32 %v1912, %v2075
        %2077 = vmatpush.msra.mxu0 %v2076
        %v2078 = vand.u32 %v1911, 4294901760
        %v2079 = vsub.f32 %v1911, %v2078
        %2080 = vmatpush.msra.mxu0 %v2079
        %v2081 = vand.u32 %v1910, 4294901760
        %v2082 = vsub.f32 %v1910, %v2081
        %2083 = vmatpush.msra.mxu0 %v2082
        %v2084 = vand.u32 %v1909, 4294901760
        %v2085 = vsub.f32 %v1909, %v2084
        %2086 = vmatpush.msra.mxu0 %v2085
        %v2087 = vand.u32 %v1908, 4294901760
        %v2088 = vsub.f32 %v1908, %v2087
        %2089 = vmatpush.msra.mxu0 %v2088
        %v2090 = vand.u32 %v1907, 4294901760
        %v2091 = vsub.f32 %v1907, %v2090
        %2092 = vmatpush.msra.mxu0 %v2091
        %v2093 = vand.u32 %v1906, 4294901760
        %v2094 = vsub.f32 %v1906, %v2093
        %2095 = vmatpush.msra.mxu0 %v2094
        %v2096 = vand.u32 %v1905, 4294901760
        %v2097 = vsub.f32 %v1905, %v2096
        %2098 = vmatpush.msra.mxu0 %v2097
        %v2099 = vand.u32 %v1904, 4294901760
        %v2100 = vsub.f32 %v1904, %v2099
        %2101 = vmatpush.msra.mxu0 %v2100
        %v2102 = vand.u32 %v1903, 4294901760
        %v2103 = vsub.f32 %v1903, %v2102
        %2104 = vmatpush.msra.mxu0 %v2103
        %v2105 = vand.u32 %v1902, 4294901760
        %v2106 = vsub.f32 %v1902, %v2105
        %2107 = vmatpush.msra.mxu0 %v2106
        %v2108 = vand.u32 %v1174, 4294901760
        %v2109 = vsub.f32 %v1174, %v2108
        %2110 = vmatmul.f32.gmra.mxu0 %v2109
        %v2111 = vpop.f32.mrf.mxu0
        %v2112 = vadd.f32 %v2058, %v2111
        %2113 = vdwg.mxu0
        %v2114 = vand.u32 %v1917, 4294901760
        %2115 = vmatpush.msra.mxu0 %v2114
        %v2116 = vand.u32 %v1916, 4294901760
        %2117 = vmatpush.msra.mxu0 %v2116
        %v2118 = vand.u32 %v1915, 4294901760
        %2119 = vmatpush.msra.mxu0 %v2118
        %v2120 = vand.u32 %v1914, 4294901760
        %2121 = vmatpush.msra.mxu0 %v2120
        %v2122 = vand.u32 %v1913, 4294901760
        %2123 = vmatpush.msra.mxu0 %v2122
        %v2124 = vand.u32 %v1912, 4294901760
        %2125 = vmatpush.msra.mxu0 %v2124
        %v2126 = vand.u32 %v1911, 4294901760
        %2127 = vmatpush.msra.mxu0 %v2126
        %v2128 = vand.u32 %v1910, 4294901760
        %2129 = vmatpush.msra.mxu0 %v2128
        %v2130 = vand.u32 %v1909, 4294901760
        %2131 = vmatpush.msra.mxu0 %v2130
        %v2132 = vand.u32 %v1908, 4294901760
        %2133 = vmatpush.msra.mxu0 %v2132
        %v2134 = vand.u32 %v1907, 4294901760
        %2135 = vmatpush.msra.mxu0 %v2134
        %v2136 = vand.u32 %v1906, 4294901760
        %2137 = vmatpush.msra.mxu0 %v2136
        %v2138 = vand.u32 %v1905, 4294901760
        %2139 = vmatpush.msra.mxu0 %v2138
        %v2140 = vand.u32 %v1904, 4294901760
        %2141 = vmatpush.msra.mxu0 %v2140
        %v2142 = vand.u32 %v1903, 4294901760
        %2143 = vmatpush.msra.mxu0 %v2142
        %v2144 = vand.u32 %v1902, 4294901760
        %2145 = vmatpush.msra.mxu0 %v2144
        %v2146 = vand.u32 %v1174, 4294901760
        %v2147 = vsub.f32 %v1174, %v2146
        %v2148 = vand.u32 %v2147, 4294901760
        %2149 = vmatmul.f32.gmra.mxu0 %v2148
        %v2150 = vpop.f32.mrf.mxu0
        %v2151 = vadd.f32 %v2112, %v2150
        %2152 = vdwg.mxu0
        %v2153 = vand.u32 %v1917, 4294901760
        %v2154 = vsub.f32 %v1917, %v2153
        %v2155 = vand.u32 %v2154, 4294901760
        %2156 = vmatpush.msra.mxu0 %v2155
        %v2157 = vand.u32 %v1916, 4294901760
        %v2158 = vsub.f32 %v1916, %v2157
        %v2159 = vand.u32 %v2158, 4294901760
        %2160 = vmatpush.msra.mxu0 %v2159
        %v2161 = vand.u32 %v1915, 4294901760
        %v2162 = vsub.f32 %v1915, %v2161
        %v2163 = vand.u32 %v2162, 4294901760
        %2164 = vmatpush.msra.mxu0 %v2163
        %v2165 = vand.u32 %v1914, 4294901760
        %v2166 = vsub.f32 %v1914, %v2165
        %v2167 = vand.u32 %v2166, 4294901760
        %2168 = vmatpush.msra.mxu0 %v2167
        %v2169 = vand.u32 %v1913, 4294901760
        %v2170 = vsub.f32 %v1913, %v2169
        %v2171 = vand.u32 %v2170, 4294901760
        %2172 = vmatpush.msra.mxu0 %v2171
        %v2173 = vand.u32 %v1912, 4294901760
        %v2174 = vsub.f32 %v1912, %v2173
        %v2175 = vand.u32 %v2174, 4294901760
        %2176 = vmatpush.msra.mxu0 %v2175
        %v2177 = vand.u32 %v1911, 4294901760
        %v2178 = vsub.f32 %v1911, %v2177
        %v2179 = vand.u32 %v2178, 4294901760
        %2180 = vmatpush.msra.mxu0 %v2179
        %v2181 = vand.u32 %v1910, 4294901760
        %v2182 = vsub.f32 %v1910, %v2181
        %v2183 = vand.u32 %v2182, 4294901760
        %2184 = vmatpush.msra.mxu0 %v2183
        %v2185 = vand.u32 %v1909, 4294901760
        %v2186 = vsub.f32 %v1909, %v2185
        %v2187 = vand.u32 %v2186, 4294901760
        %2188 = vmatpush.msra.mxu0 %v2187
        %v2189 = vand.u32 %v1908, 4294901760
        %v2190 = vsub.f32 %v1908, %v2189
        %v2191 = vand.u32 %v2190, 4294901760
        %2192 = vmatpush.msra.mxu0 %v2191
        %v2193 = vand.u32 %v1907, 4294901760
        %v2194 = vsub.f32 %v1907, %v2193
        %v2195 = vand.u32 %v2194, 4294901760
        %2196 = vmatpush.msra.mxu0 %v2195
        %v2197 = vand.u32 %v1906, 4294901760
        %v2198 = vsub.f32 %v1906, %v2197
        %v2199 = vand.u32 %v2198, 4294901760
        %2200 = vmatpush.msra.mxu0 %v2199
        %v2201 = vand.u32 %v1905, 4294901760
        %v2202 = vsub.f32 %v1905, %v2201
        %v2203 = vand.u32 %v2202, 4294901760
        %2204 = vmatpush.msra.mxu0 %v2203
        %v2205 = vand.u32 %v1904, 4294901760
        %v2206 = vsub.f32 %v1904, %v2205
        %v2207 = vand.u32 %v2206, 4294901760
        %2208 = vmatpush.msra.mxu0 %v2207
        %v2209 = vand.u32 %v1903, 4294901760
        %v2210 = vsub.f32 %v1903, %v2209
        %v2211 = vand.u32 %v2210, 4294901760
        %2212 = vmatpush.msra.mxu0 %v2211
        %v2213 = vand.u32 %v1902, 4294901760
        %v2214 = vsub.f32 %v1902, %v2213
        %v2215 = vand.u32 %v2214, 4294901760
        %2216 = vmatpush.msra.mxu0 %v2215
        %v2217 = vand.u32 %v1174, 4294901760
        %2218 = vmatmul.f32.gmra.mxu0 %v2217
        %v2219 = vpop.f32.mrf.mxu0
        %v2220 = vadd.f32 %v2151, %v2219
        %2221 = vdwg.mxu0
        %v2222 = vand.u32 %v1917, 4294901760
        %2223 = vmatpush.msra.mxu0 %v2222
        %v2224 = vand.u32 %v1916, 4294901760
        %2225 = vmatpush.msra.mxu0 %v2224
        %v2226 = vand.u32 %v1915, 4294901760
        %2227 = vmatpush.msra.mxu0 %v2226
        %v2228 = vand.u32 %v1914, 4294901760
        %2229 = vmatpush.msra.mxu0 %v2228
        %v2230 = vand.u32 %v1913, 4294901760
        %2231 = vmatpush.msra.mxu0 %v2230
        %v2232 = vand.u32 %v1912, 4294901760
        %2233 = vmatpush.msra.mxu0 %v2232
        %v2234 = vand.u32 %v1911, 4294901760
        %2235 = vmatpush.msra.mxu0 %v2234
        %v2236 = vand.u32 %v1910, 4294901760
        %2237 = vmatpush.msra.mxu0 %v2236
        %v2238 = vand.u32 %v1909, 4294901760
        %2239 = vmatpush.msra.mxu0 %v2238
        %v2240 = vand.u32 %v1908, 4294901760
        %2241 = vmatpush.msra.mxu0 %v2240
        %v2242 = vand.u32 %v1907, 4294901760
        %2243 = vmatpush.msra.mxu0 %v2242
        %v2244 = vand.u32 %v1906, 4294901760
        %2245 = vmatpush.msra.mxu0 %v2244
        %v2246 = vand.u32 %v1905, 4294901760
        %2247 = vmatpush.msra.mxu0 %v2246
        %v2248 = vand.u32 %v1904, 4294901760
        %2249 = vmatpush.msra.mxu0 %v2248
        %v2250 = vand.u32 %v1903, 4294901760
        %2251 = vmatpush.msra.mxu0 %v2250
        %v2252 = vand.u32 %v1902, 4294901760
        %2253 = vmatpush.msra.mxu0 %v2252
        %v2254 = vand.u32 %v1174, 4294901760
        %2255 = vmatmul.f32.gmra.mxu0 %v2254
        %v2256 = vpop.f32.mrf.mxu0
        %v2257 = vadd.f32 %v2220, %v2256
        %2258 = vdwg.mxu0
        %v2259 = vmul.f32 %v1544, %v1174
        %v2260 = vld [vmem:[%s10] sm:$0xff]
        %v2261 = vld [vmem:[%s10 + $0x8] sm:$0xff]
        %v2262 = vperm.slane %v2260, 0
        %v2263 = vmul.f32 %v1544, %v2262
        %v2264 = vmul.f32 %v2263, 1.442695
        %v2265 = vpow.pop %v2264
        %v2266 = vperm.slane %v2260, 1
        %v2267 = vmul.f32 %v1544, %v2266
        %v2268 = vmul.f32 %v2267, 1.442695
        %v2269 = vpow.pop %v2268
        %v2270 = vperm.slane %v2260, 2
        %v2271 = vmul.f32 %v1544, %v2270
        %v2272 = vmul.f32 %v2271, 1.442695
        %v2273 = vpow.pop %v2272
        %v2274 = vperm.slane %v2260, 3
        %v2275 = vmul.f32 %v1544, %v2274
        %v2276 = vmul.f32 %v2275, 1.442695
        %v2277 = vpow.pop %v2276
        %v2278 = vperm.slane %v2260, 4
        %v2279 = vmul.f32 %v1544, %v2278
        %v2280 = vmul.f32 %v2279, 1.442695
        %v2281 = vpow.pop %v2280
        %v2282 = vperm.slane %v2260, 5
        %v2283 = vmul.f32 %v1544, %v2282
        %v2284 = vmul.f32 %v2283, 1.442695
        %v2285 = vpow.pop %v2284
        %v2286 = vperm.slane %v2260, 6
        %v2287 = vmul.f32 %v1544, %v2286
        %v2288 = vmul.f32 %v2287, 1.442695
        %v2289 = vpow.pop %v2288
        %v2290 = vperm.slane %v2260, 7
        %v2291 = vmul.f32 %v1544, %v2290
        %v2292 = vmul.f32 %v2291, 1.442695
        %v2293 = vpow.pop %v2292
        %v2294 = vperm.slane %v2261, 0
        %v2295 = vmul.f32 %v1544, %v2294
        %v2296 = vmul.f32 %v2295, 1.442695
        %v2297 = vpow.pop %v2296
        %v2298 = vperm.slane %v2261, 1
        %v2299 = vmul.f32 %v1544, %v2298
        %v2300 = vmul.f32 %v2299, 1.442695
        %v2301 = vpow.pop %v2300
        %v2302 = vperm.slane %v2261, 2
        %v2303 = vmul.f32 %v1544, %v2302
        %v2304 = vmul.f32 %v2303, 1.442695
        %v2305 = vpow.pop %v2304
        %v2306 = vperm.slane %v2261, 3
        %v2307 = vmul.f32 %v1544, %v2306
        %v2308 = vmul.f32 %v2307, 1.442695
        %v2309 = vpow.pop %v2308
        %v2310 = vperm.slane %v2261, 4
        %v2311 = vmul.f32 %v1544, %v2310
        %v2312 = vmul.f32 %v2311, 1.442695
        %v2313 = vpow.pop %v2312
        %v2314 = vperm.slane %v2261, 5
        %v2315 = vmul.f32 %v1544, %v2314
        %v2316 = vmul.f32 %v2315, 1.442695
        %v2317 = vpow.pop %v2316
        %v2318 = vperm.slane %v2261, 6
        %v2319 = vmul.f32 %v1544, %v2318
        %v2320 = vmul.f32 %v2319, 1.442695
        %v2321 = vpow.pop %v2320
        %v2322 = vperm.slane %v2261, 7
        %v2323 = vmul.f32 %v1544, %v2322
        %v2324 = vmul.f32 %v2323, 1.442695
        %v2325 = vpow.pop %v2324
        %2326 = vst [vmem:[#allocation2] sm:$0xff] %v2265
        %2327 = vst [vmem:[#allocation2 + $0x8] sm:$0xff] %v2269
        %2328 = vst [vmem:[#allocation2 + $0x10] sm:$0xff] %v2273
        %2329 = vst [vmem:[#allocation2 + $0x18] sm:$0xff] %v2277
        %2330 = vst [vmem:[#allocation2 + $0x20] sm:$0xff] %v2281
        %2331 = vst [vmem:[#allocation2 + $0x28] sm:$0xff] %v2285
        %2332 = vst [vmem:[#allocation2 + $0x30] sm:$0xff] %v2289
        %2333 = vst [vmem:[#allocation2 + $0x38] sm:$0xff] %v2293
        %2334 = vst [vmem:[#allocation2 + $0x40] sm:$0xff] %v2297
        %2335 = vst [vmem:[#allocation2 + $0x48] sm:$0xff] %v2301
        %2336 = vst [vmem:[#allocation2 + $0x50] sm:$0xff] %v2305
        %2337 = vst [vmem:[#allocation2 + $0x58] sm:$0xff] %v2309
        %2338 = vst [vmem:[#allocation2 + $0x60] sm:$0xff] %v2313
        %2339 = vst [vmem:[#allocation2 + $0x68] sm:$0xff] %v2317
        %2340 = vst [vmem:[#allocation2 + $0x70] sm:$0xff] %v2321
        %2341 = vst [vmem:[#allocation2 + $0x78] sm:$0xff] %v2325
        %2343 = vset.pattern.permute.xlu0 0
        %2344 = vperm.xlu0 %2343, %v1900
        %v2345 = vpop.permute.xlu0 %2344
        %v2347 = vmul.f32 %v2345, %v2259
        %2348 = vset.pattern.permute.xlu0 1
        %2349 = vperm.xlu0 %2348, %v1900
        %v2350 = vpop.permute.xlu0 %2349
        %v2352 = vmul.f32 %v2350, %v2259
        %2353 = vset.pattern.permute.xlu0 2
        %2354 = vperm.xlu0 %2353, %v1900
        %v2355 = vpop.permute.xlu0 %2354
        %v2357 = vmul.f32 %v2355, %v2259
        %2358 = vset.pattern.permute.xlu0 3
        %2359 = vperm.xlu0 %2358, %v1900
        %v2360 = vpop.permute.xlu0 %2359
        %v2362 = vmul.f32 %v2360, %v2259
        %2363 = vset.pattern.permute.xlu0 4
        %2364 = vperm.xlu0 %2363, %v1900
        %v2365 = vpop.permute.xlu0 %2364
        %v2367 = vmul.f32 %v2365, %v2259
        %2368 = vset.pattern.permute.xlu0 5
        %2369 = vperm.xlu0 %2368, %v1900
        %v2370 = vpop.permute.xlu0 %2369
        %v2372 = vmul.f32 %v2370, %v2259
        %2373 = vset.pattern.permute.xlu0 6
        %2374 = vperm.xlu0 %2373, %v1900
        %v2375 = vpop.permute.xlu0 %2374
        %v2377 = vmul.f32 %v2375, %v2259
        %2378 = vset.pattern.permute.xlu0 7
        %2379 = vperm.xlu0 %2378, %v1900
        %v2380 = vpop.permute.xlu0 %2379
        %v2382 = vmul.f32 %v2380, %v2259
        %2383 = vset.pattern.permute.xlu0 8
        %2384 = vperm.xlu0 %2383, %v1900
        %v2385 = vpop.permute.xlu0 %2384
        %v2387 = vmul.f32 %v2385, %v2259
        %2388 = vset.pattern.permute.xlu0 9
        %2389 = vperm.xlu0 %2388, %v1900
        %v2390 = vpop.permute.xlu0 %2389
        %v2392 = vmul.f32 %v2390, %v2259
        %2393 = vset.pattern.permute.xlu0 10
        %2394 = vperm.xlu0 %2393, %v1900
        %v2395 = vpop.permute.xlu0 %2394
        %v2397 = vmul.f32 %v2395, %v2259
        %2398 = vset.pattern.permute.xlu0 11
        %2399 = vperm.xlu0 %2398, %v1900
        %v2400 = vpop.permute.xlu0 %2399
        %v2402 = vmul.f32 %v2400, %v2259
        %2403 = vset.pattern.permute.xlu0 12
        %2404 = vperm.xlu0 %2403, %v1900
        %v2405 = vpop.permute.xlu0 %2404
        %v2407 = vmul.f32 %v2405, %v2259
        %2408 = vset.pattern.permute.xlu0 13
        %2409 = vperm.xlu0 %2408, %v1900
        %v2410 = vpop.permute.xlu0 %2409
        %v2412 = vmul.f32 %v2410, %v2259
        %2413 = vset.pattern.permute.xlu0 14
        %2414 = vperm.xlu0 %2413, %v1900
        %v2415 = vpop.permute.xlu0 %2414
        %v2417 = vmul.f32 %v2415, %v2259
        %2418 = vset.pattern.permute.xlu0 15
        %2419 = vperm.xlu0 %2418, %v1900
        %v2420 = vpop.permute.xlu0 %2419
        %v2422 = vmul.f32 %v2420, %v2259
        %2423 = vst [vmem:[#allocation3] sm:$0xff] %v2347
        %2424 = vst [vmem:[#allocation3 + $0x8] sm:$0xff] %v2352
        %2425 = vst [vmem:[#allocation3 + $0x10] sm:$0xff] %v2357
        %2426 = vst [vmem:[#allocation3 + $0x18] sm:$0xff] %v2362
        %2427 = vst [vmem:[#allocation3 + $0x20] sm:$0xff] %v2367
        %2428 = vst [vmem:[#allocation3 + $0x28] sm:$0xff] %v2372
        %2429 = vst [vmem:[#allocation3 + $0x30] sm:$0xff] %v2377
        %2430 = vst [vmem:[#allocation3 + $0x38] sm:$0xff] %v2382
        %2431 = vst [vmem:[#allocation3 + $0x40] sm:$0xff] %v2387
        %2432 = vst [vmem:[#allocation3 + $0x48] sm:$0xff] %v2392
        %2433 = vst [vmem:[#allocation3 + $0x50] sm:$0xff] %v2397
        %2434 = vst [vmem:[#allocation3 + $0x58] sm:$0xff] %v2402
        %2435 = vst [vmem:[#allocation3 + $0x60] sm:$0xff] %v2407
        %2436 = vst [vmem:[#allocation3 + $0x68] sm:$0xff] %v2412
        %2437 = vst [vmem:[#allocation3 + $0x70] sm:$0xff] %v2417
        %2438 = vst [vmem:[#allocation3 + $0x78] sm:$0xff] %v2422
        %v2439 = vld [vmem:[#allocation2] ss:$8 sm:$0xf]
        %v2440 = vld [vmem:[#allocation2] ss:$8 sm:$0xf0]
        %v2441 = vor.u32 %v2439, %v2440
        %s2442 = scalar_lea.vmem [#allocation2], 64
        %v2443 = vld [vmem:[%s2442] ss:$8 sm:$0xf]
        %v2444 = vld [vmem:[%s2442] ss:$8 sm:$0xf0]
        %v2445 = vor.u32 %v2443, %v2444
        %v2446 = vmul.f32 %v2441, 0.0
        %v2447 = vmul.f32 %v2445, 0.0
        %v2448 = vld [vmem:[#allocation3] ss:$8 sm:$0xf]
        %v2449 = vld [vmem:[#allocation3] ss:$8 sm:$0xf0]
        %v2450 = vor.u32 %v2448, %v2449
        %s2451 = scalar_lea.vmem [#allocation3], 64
        %v2452 = vld [vmem:[%s2451] ss:$8 sm:$0xf]
        %v2453 = vld [vmem:[%s2451] ss:$8 sm:$0xf0]
        %v2454 = vor.u32 %v2452, %v2453
        %v2455 = vadd.f32 %v2446, %v2450
        %v2456 = vadd.f32 %v2447, %v2454
        %2457 = vst [vmem:[#allocation4] ss:$8 sm:$0xf] %v2455
        %2458 = vst [vmem:[#allocation4] ss:$8 sm:$0xf0] %v2455
        %s2459 = scalar_lea.vmem [#allocation4], 64
        %2460 = vst [vmem:[%s2459] ss:$8 sm:$0xf] %v2456
        %2461 = vst [vmem:[%s2459] ss:$8 sm:$0xf0] %v2456
        %s2462 = scalar_lea.vmem [#allocation2], 1
        %v2463 = vld [vmem:[%s2462] ss:$8 sm:$0xf]
        %v2464 = vld [vmem:[%s2462] ss:$8 sm:$0xf0]
        %v2465 = vor.u32 %v2463, %v2464
        %s2466 = scalar_lea.vmem [#allocation2], 65
        %v2467 = vld [vmem:[%s2466] ss:$8 sm:$0xf]
        %v2468 = vld [vmem:[%s2466] ss:$8 sm:$0xf0]
        %v2469 = vor.u32 %v2467, %v2468
        %v2470 = vmul.f32 %v2465, %v2455
        %v2471 = vmul.f32 %v2469, %v2456
        %s2472 = scalar_lea.vmem [#allocation3], 1
        %v2473 = vld [vmem:[%s2472] ss:$8 sm:$0xf]
        %v2474 = vld [vmem:[%s2472] ss:$8 sm:$0xf0]
        %v2475 = vor.u32 %v2473, %v2474
        %s2476 = scalar_lea.vmem [#allocation3], 65
        %v2477 = vld [vmem:[%s2476] ss:$8 sm:$0xf]
        %v2478 = vld [vmem:[%s2476] ss:$8 sm:$0xf0]
        %v2479 = vor.u32 %v2477, %v2478
        %v2480 = vadd.f32 %v2470, %v2475
        %v2481 = vadd.f32 %v2471, %v2479
        %s2482 = scalar_lea.vmem [#allocation4], 1
        %2483 = vst [vmem:[%s2482] ss:$8 sm:$0xf] %v2480
        %2484 = vst [vmem:[%s2482] ss:$8 sm:$0xf0] %v2480
        %s2485 = scalar_lea.vmem [#allocation4], 65
        %2486 = vst [vmem:[%s2485] ss:$8 sm:$0xf] %v2481
        %2487 = vst [vmem:[%s2485] ss:$8 sm:$0xf0] %v2481
        %s2488 = scalar_lea.vmem [#allocation2], 2
        %v2489 = vld [vmem:[%s2488] ss:$8 sm:$0xf]
        %v2490 = vld [vmem:[%s2488] ss:$8 sm:$0xf0]
        %v2491 = vor.u32 %v2489, %v2490
        %s2492 = scalar_lea.vmem [#allocation2], 66
        %v2493 = vld [vmem:[%s2492] ss:$8 sm:$0xf]
        %v2494 = vld [vmem:[%s2492] ss:$8 sm:$0xf0]
        %v2495 = vor.u32 %v2493, %v2494
        %v2496 = vmul.f32 %v2491, %v2480
        %v2497 = vmul.f32 %v2495, %v2481
        %s2498 = scalar_lea.vmem [#allocation3], 2
        %v2499 = vld [vmem:[%s2498] ss:$8 sm:$0xf]
        %v2500 = vld [vmem:[%s2498] ss:$8 sm:$0xf0]
        %v2501 = vor.u32 %v2499, %v2500
        %s2502 = scalar_lea.vmem [#allocation3], 66
        %v2503 = vld [vmem:[%s2502] ss:$8 sm:$0xf]
        %v2504 = vld [vmem:[%s2502] ss:$8 sm:$0xf0]
        %v2505 = vor.u32 %v2503, %v2504
        %v2506 = vadd.f32 %v2496, %v2501
        %v2507 = vadd.f32 %v2497, %v2505
        %s2508 = scalar_lea.vmem [#allocation4], 2
        %2509 = vst [vmem:[%s2508] ss:$8 sm:$0xf] %v2506
        %2510 = vst [vmem:[%s2508] ss:$8 sm:$0xf0] %v2506
        %s2511 = scalar_lea.vmem [#allocation4], 66
        %2512 = vst [vmem:[%s2511] ss:$8 sm:$0xf] %v2507
        %2513 = vst [vmem:[%s2511] ss:$8 sm:$0xf0] %v2507
        %s2514 = scalar_lea.vmem [#allocation2], 3
        %v2515 = vld [vmem:[%s2514] ss:$8 sm:$0xf]
        %v2516 = vld [vmem:[%s2514] ss:$8 sm:$0xf0]
        %v2517 = vor.u32 %v2515, %v2516
        %s2518 = scalar_lea.vmem [#allocation2], 67
        %v2519 = vld [vmem:[%s2518] ss:$8 sm:$0xf]
        %v2520 = vld [vmem:[%s2518] ss:$8 sm:$0xf0]
        %v2521 = vor.u32 %v2519, %v2520
        %v2522 = vmul.f32 %v2517, %v2506
        %v2523 = vmul.f32 %v2521, %v2507
        %s2524 = scalar_lea.vmem [#allocation3], 3
        %v2525 = vld [vmem:[%s2524] ss:$8 sm:$0xf]
        %v2526 = vld [vmem:[%s2524] ss:$8 sm:$0xf0]
        %v2527 = vor.u32 %v2525, %v2526
        %s2528 = scalar_lea.vmem [#allocation3], 67
        %v2529 = vld [vmem:[%s2528] ss:$8 sm:$0xf]
        %v2530 = vld [vmem:[%s2528] ss:$8 sm:$0xf0]
        %v2531 = vor.u32 %v2529, %v2530
        %v2532 = vadd.f32 %v2522, %v2527
        %v2533 = vadd.f32 %v2523, %v2531
        %s2534 = scalar_lea.vmem [#allocation4], 3
        %2535 = vst [vmem:[%s2534] ss:$8 sm:$0xf] %v2532
        %2536 = vst [vmem:[%s2534] ss:$8 sm:$0xf0] %v2532
        %s2537 = scalar_lea.vmem [#allocation4], 67
        %2538 = vst [vmem:[%s2537] ss:$8 sm:$0xf] %v2533
        %2539 = vst [vmem:[%s2537] ss:$8 sm:$0xf0] %v2533
        %s2540 = scalar_lea.vmem [#allocation2], 4
        %v2541 = vld [vmem:[%s2540] ss:$8 sm:$0xf]
        %v2542 = vld [vmem:[%s2540] ss:$8 sm:$0xf0]
        %v2543 = vor.u32 %v2541, %v2542
        %s2544 = scalar_lea.vmem [#allocation2], 68
        %v2545 = vld [vmem:[%s2544] ss:$8 sm:$0xf]
        %v2546 = vld [vmem:[%s2544] ss:$8 sm:$0xf0]
        %v2547 = vor.u32 %v2545, %v2546
        %v2548 = vmul.f32 %v2543, %v2532
        %v2549 = vmul.f32 %v2547, %v2533
        %s2550 = scalar_lea.vmem [#allocation3], 4
        %v2551 = vld [vmem:[%s2550] ss:$8 sm:$0xf]
        %v2552 = vld [vmem:[%s2550] ss:$8 sm:$0xf0]
        %v2553 = vor.u32 %v2551, %v2552
        %s2554 = scalar_lea.vmem [#allocation3], 68
        %v2555 = vld [vmem:[%s2554] ss:$8 sm:$0xf]
        %v2556 = vld [vmem:[%s2554] ss:$8 sm:$0xf0]
        %v2557 = vor.u32 %v2555, %v2556
        %v2558 = vadd.f32 %v2548, %v2553
        %v2559 = vadd.f32 %v2549, %v2557
        %s2560 = scalar_lea.vmem [#allocation4], 4
        %2561 = vst [vmem:[%s2560] ss:$8 sm:$0xf] %v2558
        %2562 = vst [vmem:[%s2560] ss:$8 sm:$0xf0] %v2558
        %s2563 = scalar_lea.vmem [#allocation4], 68
        %2564 = vst [vmem:[%s2563] ss:$8 sm:$0xf] %v2559
        %2565 = vst [vmem:[%s2563] ss:$8 sm:$0xf0] %v2559
        %s2566 = scalar_lea.vmem [#allocation2], 5
        %v2567 = vld [vmem:[%s2566] ss:$8 sm:$0xf]
        %v2568 = vld [vmem:[%s2566] ss:$8 sm:$0xf0]
        %v2569 = vor.u32 %v2567, %v2568
        %s2570 = scalar_lea.vmem [#allocation2], 69
        %v2571 = vld [vmem:[%s2570] ss:$8 sm:$0xf]
        %v2572 = vld [vmem:[%s2570] ss:$8 sm:$0xf0]
        %v2573 = vor.u32 %v2571, %v2572
        %v2574 = vmul.f32 %v2569, %v2558
        %v2575 = vmul.f32 %v2573, %v2559
        %s2576 = scalar_lea.vmem [#allocation3], 5
        %v2577 = vld [vmem:[%s2576] ss:$8 sm:$0xf]
        %v2578 = vld [vmem:[%s2576] ss:$8 sm:$0xf0]
        %v2579 = vor.u32 %v2577, %v2578
        %s2580 = scalar_lea.vmem [#allocation3], 69
        %v2581 = vld [vmem:[%s2580] ss:$8 sm:$0xf]
        %v2582 = vld [vmem:[%s2580] ss:$8 sm:$0xf0]
        %v2583 = vor.u32 %v2581, %v2582
        %v2584 = vadd.f32 %v2574, %v2579
        %v2585 = vadd.f32 %v2575, %v2583
        %s2586 = scalar_lea.vmem [#allocation4], 5
        %2587 = vst [vmem:[%s2586] ss:$8 sm:$0xf] %v2584
        %2588 = vst [vmem:[%s2586] ss:$8 sm:$0xf0] %v2584
        %s2589 = scalar_lea.vmem [#allocation4], 69
        %2590 = vst [vmem:[%s2589] ss:$8 sm:$0xf] %v2585
        %2591 = vst [vmem:[%s2589] ss:$8 sm:$0xf0] %v2585
        %s2592 = scalar_lea.vmem [#allocation2], 6
        %v2593 = vld [vmem:[%s2592] ss:$8 sm:$0xf]
        %v2594 = vld [vmem:[%s2592] ss:$8 sm:$0xf0]
        %v2595 = vor.u32 %v2593, %v2594
        %s2596 = scalar_lea.vmem [#allocation2], 70
        %v2597 = vld [vmem:[%s2596] ss:$8 sm:$0xf]
        %v2598 = vld [vmem:[%s2596] ss:$8 sm:$0xf0]
        %v2599 = vor.u32 %v2597, %v2598
        %v2600 = vmul.f32 %v2595, %v2584
        %v2601 = vmul.f32 %v2599, %v2585
        %s2602 = scalar_lea.vmem [#allocation3], 6
        %v2603 = vld [vmem:[%s2602] ss:$8 sm:$0xf]
        %v2604 = vld [vmem:[%s2602] ss:$8 sm:$0xf0]
        %v2605 = vor.u32 %v2603, %v2604
        %s2606 = scalar_lea.vmem [#allocation3], 70
        %v2607 = vld [vmem:[%s2606] ss:$8 sm:$0xf]
        %v2608 = vld [vmem:[%s2606] ss:$8 sm:$0xf0]
        %v2609 = vor.u32 %v2607, %v2608
        %v2610 = vadd.f32 %v2600, %v2605
        %v2611 = vadd.f32 %v2601, %v2609
        %s2612 = scalar_lea.vmem [#allocation4], 6
        %2613 = vst [vmem:[%s2612] ss:$8 sm:$0xf] %v2610
        %2614 = vst [vmem:[%s2612] ss:$8 sm:$0xf0] %v2610
        %s2615 = scalar_lea.vmem [#allocation4], 70
        %2616 = vst [vmem:[%s2615] ss:$8 sm:$0xf] %v2611
        %2617 = vst [vmem:[%s2615] ss:$8 sm:$0xf0] %v2611
        %s2618 = scalar_lea.vmem [#allocation2], 7
        %v2619 = vld [vmem:[%s2618] ss:$8 sm:$0xf]
        %v2620 = vld [vmem:[%s2618] ss:$8 sm:$0xf0]
        %v2621 = vor.u32 %v2619, %v2620
        %s2622 = scalar_lea.vmem [#allocation2], 71
        %v2623 = vld [vmem:[%s2622] ss:$8 sm:$0xf]
        %v2624 = vld [vmem:[%s2622] ss:$8 sm:$0xf0]
        %v2625 = vor.u32 %v2623, %v2624
        %v2626 = vmul.f32 %v2621, %v2610
        %v2627 = vmul.f32 %v2625, %v2611
        %s2628 = scalar_lea.vmem [#allocation3], 7
        %v2629 = vld [vmem:[%s2628] ss:$8 sm:$0xf]
        %v2630 = vld [vmem:[%s2628] ss:$8 sm:$0xf0]
        %v2631 = vor.u32 %v2629, %v2630
        %s2632 = scalar_lea.vmem [#allocation3], 71
        %v2633 = vld [vmem:[%s2632] ss:$8 sm:$0xf]
        %v2634 = vld [vmem:[%s2632] ss:$8 sm:$0xf0]
        %v2635 = vor.u32 %v2633, %v2634
        %v2636 = vadd.f32 %v2626, %v2631
        %v2637 = vadd.f32 %v2627, %v2635
        %s2638 = scalar_lea.vmem [#allocation4], 7
        %2639 = vst [vmem:[%s2638] ss:$8 sm:$0xf] %v2636
        %2640 = vst [vmem:[%s2638] ss:$8 sm:$0xf0] %v2636
        %s2641 = scalar_lea.vmem [#allocation4], 71
        %2642 = vst [vmem:[%s2641] ss:$8 sm:$0xf] %v2637
        %2643 = vst [vmem:[%s2641] ss:$8 sm:$0xf0] %v2637
        %v2644 = vld [vmem:[#allocation4] sm:$0xff]
        %v2645 = vld [vmem:[#allocation4 + $0x8] sm:$0xff]
        %v2646 = vld [vmem:[#allocation4 + $0x10] sm:$0xff]
        %v2647 = vld [vmem:[#allocation4 + $0x18] sm:$0xff]
        %v2648 = vld [vmem:[#allocation4 + $0x20] sm:$0xff]
        %v2649 = vld [vmem:[#allocation4 + $0x28] sm:$0xff]
        %v2650 = vld [vmem:[#allocation4 + $0x30] sm:$0xff]
        %v2651 = vld [vmem:[#allocation4 + $0x38] sm:$0xff]
        %v2652 = vld [vmem:[#allocation4 + $0x40] sm:$0xff]
        %v2653 = vld [vmem:[#allocation4 + $0x48] sm:$0xff]
        %v2654 = vld [vmem:[#allocation4 + $0x50] sm:$0xff]
        %v2655 = vld [vmem:[#allocation4 + $0x58] sm:$0xff]
        %v2656 = vld [vmem:[#allocation4 + $0x60] sm:$0xff]
        %v2657 = vld [vmem:[#allocation4 + $0x68] sm:$0xff]
        %v2658 = vld [vmem:[#allocation4 + $0x70] sm:$0xff]
        %v2659 = vld [vmem:[#allocation4 + $0x78] sm:$0xff]
        %v2660 = vld [vmem:[%s11] sm:$0x1]
        %v2662 = vperm.slane %v2660, 0
        %v2664 = vmul.f32 %v2662, %v1174
        %2666 = vset.pattern.permute.xlu0 0
        %2667 = vperm.xlu0 %2666, %v2257
        %v2668 = vpop.permute.xlu0 %2667
        %v2670 = vmul.f32 %v2668, %v2644
        %v2671 = vadd.f32 %v2664, %v2670
        %2672 = vset.pattern.permute.xlu0 1
        %2673 = vperm.xlu0 %2672, %v2257
        %v2674 = vpop.permute.xlu0 %2673
        %v2676 = vmul.f32 %v2674, %v2645
        %v2677 = vadd.f32 %v2671, %v2676
        %2678 = vset.pattern.permute.xlu0 2
        %2679 = vperm.xlu0 %2678, %v2257
        %v2680 = vpop.permute.xlu0 %2679
        %v2682 = vmul.f32 %v2680, %v2646
        %v2683 = vadd.f32 %v2677, %v2682
        %2684 = vset.pattern.permute.xlu0 3
        %2685 = vperm.xlu0 %2684, %v2257
        %v2686 = vpop.permute.xlu0 %2685
        %v2688 = vmul.f32 %v2686, %v2647
        %v2689 = vadd.f32 %v2683, %v2688
        %2690 = vset.pattern.permute.xlu0 4
        %2691 = vperm.xlu0 %2690, %v2257
        %v2692 = vpop.permute.xlu0 %2691
        %v2694 = vmul.f32 %v2692, %v2648
        %v2695 = vadd.f32 %v2689, %v2694
        %2696 = vset.pattern.permute.xlu0 5
        %2697 = vperm.xlu0 %2696, %v2257
        %v2698 = vpop.permute.xlu0 %2697
        %v2700 = vmul.f32 %v2698, %v2649
        %v2701 = vadd.f32 %v2695, %v2700
        %2702 = vset.pattern.permute.xlu0 6
        %2703 = vperm.xlu0 %2702, %v2257
        %v2704 = vpop.permute.xlu0 %2703
        %v2706 = vmul.f32 %v2704, %v2650
        %v2707 = vadd.f32 %v2701, %v2706
        %2708 = vset.pattern.permute.xlu0 7
        %2709 = vperm.xlu0 %2708, %v2257
        %v2710 = vpop.permute.xlu0 %2709
        %v2712 = vmul.f32 %v2710, %v2651
        %v2713 = vadd.f32 %v2707, %v2712
        %2714 = vset.pattern.permute.xlu0 8
        %2715 = vperm.xlu0 %2714, %v2257
        %v2716 = vpop.permute.xlu0 %2715
        %v2718 = vmul.f32 %v2716, %v2652
        %v2719 = vadd.f32 %v2713, %v2718
        %2720 = vset.pattern.permute.xlu0 9
        %2721 = vperm.xlu0 %2720, %v2257
        %v2722 = vpop.permute.xlu0 %2721
        %v2724 = vmul.f32 %v2722, %v2653
        %v2725 = vadd.f32 %v2719, %v2724
        %2726 = vset.pattern.permute.xlu0 10
        %2727 = vperm.xlu0 %2726, %v2257
        %v2728 = vpop.permute.xlu0 %2727
        %v2730 = vmul.f32 %v2728, %v2654
        %v2731 = vadd.f32 %v2725, %v2730
        %2732 = vset.pattern.permute.xlu0 11
        %2733 = vperm.xlu0 %2732, %v2257
        %v2734 = vpop.permute.xlu0 %2733
        %v2736 = vmul.f32 %v2734, %v2655
        %v2737 = vadd.f32 %v2731, %v2736
        %2738 = vset.pattern.permute.xlu0 12
        %2739 = vperm.xlu0 %2738, %v2257
        %v2740 = vpop.permute.xlu0 %2739
        %v2742 = vmul.f32 %v2740, %v2656
        %v2743 = vadd.f32 %v2737, %v2742
        %2744 = vset.pattern.permute.xlu0 13
        %2745 = vperm.xlu0 %2744, %v2257
        %v2746 = vpop.permute.xlu0 %2745
        %v2748 = vmul.f32 %v2746, %v2657
        %v2749 = vadd.f32 %v2743, %v2748
        %2750 = vset.pattern.permute.xlu0 14
        %2751 = vperm.xlu0 %2750, %v2257
        %v2752 = vpop.permute.xlu0 %2751
        %v2754 = vmul.f32 %v2752, %v2658
        %v2755 = vadd.f32 %v2749, %v2754
        %2756 = vset.pattern.permute.xlu0 15
        %2757 = vperm.xlu0 %2756, %v2257
        %v2758 = vpop.permute.xlu0 %2757
        %v2760 = vmul.f32 %v2758, %v2659
        %v2761 = vadd.f32 %v2755, %v2760
        %v2762 = vld [vmem:[%s12] sm:$0xf]
        %v2763 = vld [vmem:[%s13] sm:$0x1]
        %v2765 = vperm.slane %v2763, 0
        %v2767 = vadd.f32 %v2765, 0.0
        %vm2768 = vcmp.lt.s32.totalorder %v1121, 5
        %v2769 = vrot.slane %v873, 3
        %v2770 = vsel %vm2768, 1, 0
        %vm2771 = vcmp.eq.s32.totalorder %v2770, 1
        %v2772 = vsel %vm2771, %v2769, 0.0
        %v2773 = vperm.slane %v2762, 0
        %v2774 = vmul.f32 %v2772, %v2773
        %v2775 = vadd.f32 %v2767, %v2774
        %vm2776 = vcmp.lt.s32.totalorder %v1121, 6
        %v2777 = vrot.slane %v873, 2
        %v2778 = vsel %vm2776, 1, 0
        %vm2779 = vcmp.eq.s32.totalorder %v2778, 1
        %v2780 = vsel %vm2779, %v2777, 0.0
        %v2781 = vperm.slane %v2762, 1
        %v2782 = vmul.f32 %v2780, %v2781
        %v2783 = vadd.f32 %v2775, %v2782
        %vm2784 = vcmp.lt.s32.totalorder %v1121, 7
        %v2785 = vrot.slane %v873, 1
        %v2786 = vsel %vm2784, 1, 0
        %vm2787 = vcmp.eq.s32.totalorder %v2786, 1
        %v2788 = vsel %vm2787, %v2785, 0.0
        %v2789 = vperm.slane %v2762, 2
        %v2790 = vmul.f32 %v2788, %v2789
        %v2791 = vadd.f32 %v2783, %v2790
        %v2792 = vperm.slane %v2762, 3
        %v2793 = vmul.f32 %v873, %v2792
        %v2794 = vadd.f32 %v2791, %v2793
        %v2795 = vsub.f32 0.0, %v2794
        %v2796 = vmul.f32 %v2795, 1.442695
        %v2797 = vpow.pop %v2796
        %v2798 = vadd.f32 %v2797, 1.0
        %v2799 = vrcp.pop %v2798
        %v2800 = vmul.f32 %v2798, %v2799
        %v2801 = vsub.f32 1.0, %v2800
        %v2802 = vmul.f32 %v2799, %v2801
        %v2803 = vadd.f32 %v2799, %v2802
        %vm2804 = vweird.f32 %v2798
        %vm2805 = vweird.f32 %v2799
        %vm2806 = vmor %vm2804, %vm2805
        %v2807 = vsel %vm2806, %v2799, %v2803
        %v2808 = vand.u32 2147483647, %v2798
        %vm2809 = vcmp.eq.f32.partialorder %v2808, 8.507059e+37
        %v2810 = vand.u32 %v2798, 2147483648
        %v2811 = vor.u32 1.1754944e-38, %v2810
        %v2812 = vsel %vm2809, %v2811, %v2807
        %v2813 = vmul.f32 1.0, %v2812
        %v2814 = vmul.f32 %v2794, %v2813
        %v2815 = vld [vmem:[%s14] sm:$0xff]
        %v2816 = vld [vmem:[%s14 + $0x8] sm:$0xff]
        %v2817 = vld [vmem:[%s14 + $0x10] sm:$0xff]
        %v2818 = vld [vmem:[%s14 + $0x18] sm:$0xff]
        %v2819 = vld [vmem:[%s14 + $0x20] sm:$0xff]
        %v2820 = vld [vmem:[%s14 + $0x28] sm:$0xff]
        %v2821 = vld [vmem:[%s14 + $0x30] sm:$0xff]
        %v2822 = vld [vmem:[%s14 + $0x38] sm:$0xff]
        %v2823 = vld [vmem:[%s14 + $0x40] sm:$0xff]
        %v2824 = vld [vmem:[%s14 + $0x48] sm:$0xff]
        %v2825 = vld [vmem:[%s14 + $0x50] sm:$0xff]
        %v2826 = vld [vmem:[%s14 + $0x58] sm:$0xff]
        %v2827 = vld [vmem:[%s14 + $0x60] sm:$0xff]
        %v2828 = vld [vmem:[%s14 + $0x68] sm:$0xff]
        %v2829 = vld [vmem:[%s14 + $0x70] sm:$0xff]
        %v2830 = vld [vmem:[%s14 + $0x78] sm:$0xff]
        %v2831 = vld [vmem:[%s15] sm:$0x1]
        %v2833 = vperm.slane %v2831, 0
        %v2835 = vand.u32 %v2830, 4294901760
        %2836 = vmatpush.msra.mxu0 %v2835
        %v2837 = vand.u32 %v2829, 4294901760
        %2838 = vmatpush.msra.mxu0 %v2837
        %v2839 = vand.u32 %v2828, 4294901760
        %2840 = vmatpush.msra.mxu0 %v2839
        %v2841 = vand.u32 %v2827, 4294901760
        %2842 = vmatpush.msra.mxu0 %v2841
        %v2843 = vand.u32 %v2826, 4294901760
        %2844 = vmatpush.msra.mxu0 %v2843
        %v2845 = vand.u32 %v2825, 4294901760
        %2846 = vmatpush.msra.mxu0 %v2845
        %v2847 = vand.u32 %v2824, 4294901760
        %2848 = vmatpush.msra.mxu0 %v2847
        %v2849 = vand.u32 %v2823, 4294901760
        %2850 = vmatpush.msra.mxu0 %v2849
        %v2851 = vand.u32 %v2822, 4294901760
        %2852 = vmatpush.msra.mxu0 %v2851
        %v2853 = vand.u32 %v2821, 4294901760
        %2854 = vmatpush.msra.mxu0 %v2853
        %v2855 = vand.u32 %v2820, 4294901760
        %2856 = vmatpush.msra.mxu0 %v2855
        %v2857 = vand.u32 %v2819, 4294901760
        %2858 = vmatpush.msra.mxu0 %v2857
        %v2859 = vand.u32 %v2818, 4294901760
        %2860 = vmatpush.msra.mxu0 %v2859
        %v2861 = vand.u32 %v2817, 4294901760
        %2862 = vmatpush.msra.mxu0 %v2861
        %v2863 = vand.u32 %v2816, 4294901760
        %2864 = vmatpush.msra.mxu0 %v2863
        %v2865 = vand.u32 %v2815, 4294901760
        %2866 = vmatpush.msra.mxu0 %v2865
        %v2867 = vand.u32 %v2814, 4294901760
        %v2868 = vsub.f32 %v2814, %v2867
        %v2869 = vand.u32 %v2868, 4294901760
        %v2870 = vsub.f32 %v2868, %v2869
        %v2871 = vand.u32 %v2870, 4294901760
        %2872 = vmatmul.f32.gmra.mxu0 %v2871
        %v2873 = vpop.f32.mrf.mxu0
        %v2874 = vadd.f32 %v2833, %v2873
        %2875 = vdwg.mxu0
        %v2876 = vand.u32 %v2830, 4294901760
        %v2877 = vsub.f32 %v2830, %v2876
        %v2878 = vand.u32 %v2877, 4294901760
        %v2879 = vsub.f32 %v2877, %v2878
        %v2880 = vand.u32 %v2879, 4294901760
        %2881 = vmatpush.msra.mxu0 %v2880
        %v2882 = vand.u32 %v2829, 4294901760
        %v2883 = vsub.f32 %v2829, %v2882
        %v2884 = vand.u32 %v2883, 4294901760
        %v2885 = vsub.f32 %v2883, %v2884
        %v2886 = vand.u32 %v2885, 4294901760
        %2887 = vmatpush.msra.mxu0 %v2886
        %v2888 = vand.u32 %v2828, 4294901760
        %v2889 = vsub.f32 %v2828, %v2888
        %v2890 = vand.u32 %v2889, 4294901760
        %v2891 = vsub.f32 %v2889, %v2890
        %v2892 = vand.u32 %v2891, 4294901760
        %2893 = vmatpush.msra.mxu0 %v2892
        %v2894 = vand.u32 %v2827, 4294901760
        %v2895 = vsub.f32 %v2827, %v2894
        %v2896 = vand.u32 %v2895, 4294901760
        %v2897 = vsub.f32 %v2895, %v2896
        %v2898 = vand.u32 %v2897, 4294901760
        %2899 = vmatpush.msra.mxu0 %v2898
        %v2900 = vand.u32 %v2826, 4294901760
        %v2901 = vsub.f32 %v2826, %v2900
        %v2902 = vand.u32 %v2901, 4294901760
        %v2903 = vsub.f32 %v2901, %v2902
        %v2904 = vand.u32 %v2903, 4294901760
        %2905 = vmatpush.msra.mxu0 %v2904
        %v2906 = vand.u32 %v2825, 4294901760
        %v2907 = vsub.f32 %v2825, %v2906
        %v2908 = vand.u32 %v2907, 4294901760
        %v2909 = vsub.f32 %v2907, %v2908
        %v2910 = vand.u32 %v2909, 4294901760
        %2911 = vmatpush.msra.mxu0 %v2910
        %v2912 = vand.u32 %v2824, 4294901760
        %v2913 = vsub.f32 %v2824, %v2912
        %v2914 = vand.u32 %v2913, 4294901760
        %v2915 = vsub.f32 %v2913, %v2914
        %v2916 = vand.u32 %v2915, 4294901760
        %2917 = vmatpush.msra.mxu0 %v2916
        %v2918 = vand.u32 %v2823, 4294901760
        %v2919 = vsub.f32 %v2823, %v2918
        %v2920 = vand.u32 %v2919, 4294901760
        %v2921 = vsub.f32 %v2919, %v2920
        %v2922 = vand.u32 %v2921, 4294901760
        %2923 = vmatpush.msra.mxu0 %v2922
        %v2924 = vand.u32 %v2822, 4294901760
        %v2925 = vsub.f32 %v2822, %v2924
        %v2926 = vand.u32 %v2925, 4294901760
        %v2927 = vsub.f32 %v2925, %v2926
        %v2928 = vand.u32 %v2927, 4294901760
        %2929 = vmatpush.msra.mxu0 %v2928
        %v2930 = vand.u32 %v2821, 4294901760
        %v2931 = vsub.f32 %v2821, %v2930
        %v2932 = vand.u32 %v2931, 4294901760
        %v2933 = vsub.f32 %v2931, %v2932
        %v2934 = vand.u32 %v2933, 4294901760
        %2935 = vmatpush.msra.mxu0 %v2934
        %v2936 = vand.u32 %v2820, 4294901760
        %v2937 = vsub.f32 %v2820, %v2936
        %v2938 = vand.u32 %v2937, 4294901760
        %v2939 = vsub.f32 %v2937, %v2938
        %v2940 = vand.u32 %v2939, 4294901760
        %2941 = vmatpush.msra.mxu0 %v2940
        %v2942 = vand.u32 %v2819, 4294901760
        %v2943 = vsub.f32 %v2819, %v2942
        %v2944 = vand.u32 %v2943, 4294901760
        %v2945 = vsub.f32 %v2943, %v2944
        %v2946 = vand.u32 %v2945, 4294901760
        %2947 = vmatpush.msra.mxu0 %v2946
        %v2948 = vand.u32 %v2818, 4294901760
        %v2949 = vsub.f32 %v2818, %v2948
        %v2950 = vand.u32 %v2949, 4294901760
        %v2951 = vsub.f32 %v2949, %v2950
        %v2952 = vand.u32 %v2951, 4294901760
        %2953 = vmatpush.msra.mxu0 %v2952
        %v2954 = vand.u32 %v2817, 4294901760
        %v2955 = vsub.f32 %v2817, %v2954
        %v2956 = vand.u32 %v2955, 4294901760
        %v2957 = vsub.f32 %v2955, %v2956
        %v2958 = vand.u32 %v2957, 4294901760
        %2959 = vmatpush.msra.mxu0 %v2958
        %v2960 = vand.u32 %v2816, 4294901760
        %v2961 = vsub.f32 %v2816, %v2960
        %v2962 = vand.u32 %v2961, 4294901760
        %v2963 = vsub.f32 %v2961, %v2962
        %v2964 = vand.u32 %v2963, 4294901760
        %2965 = vmatpush.msra.mxu0 %v2964
        %v2966 = vand.u32 %v2815, 4294901760
        %v2967 = vsub.f32 %v2815, %v2966
        %v2968 = vand.u32 %v2967, 4294901760
        %v2969 = vsub.f32 %v2967, %v2968
        %v2970 = vand.u32 %v2969, 4294901760
        %2971 = vmatpush.msra.mxu0 %v2970
        %v2972 = vand.u32 %v2814, 4294901760
        %2973 = vmatmul.f32.gmra.mxu0 %v2972
        %v2974 = vpop.f32.mrf.mxu0
        %v2975 = vadd.f32 %v2874, %v2974
        %2976 = vdwg.mxu0
        %v2977 = vand.u32 %v2830, 4294901760
        %v2978 = vsub.f32 %v2830, %v2977
        %2979 = vmatpush.msra.mxu0 %v2978
        %v2980 = vand.u32 %v2829, 4294901760
        %v2981 = vsub.f32 %v2829, %v2980
        %2982 = vmatpush.msra.mxu0 %v2981
        %v2983 = vand.u32 %v2828, 4294901760
        %v2984 = vsub.f32 %v2828, %v2983
        %2985 = vmatpush.msra.mxu0 %v2984
        %v2986 = vand.u32 %v2827, 4294901760
        %v2987 = vsub.f32 %v2827, %v2986
        %2988 = vmatpush.msra.mxu0 %v2987
        %v2989 = vand.u32 %v2826, 4294901760
        %v2990 = vsub.f32 %v2826, %v2989
        %2991 = vmatpush.msra.mxu0 %v2990
        %v2992 = vand.u32 %v2825, 4294901760
        %v2993 = vsub.f32 %v2825, %v2992
        %2994 = vmatpush.msra.mxu0 %v2993
        %v2995 = vand.u32 %v2824, 4294901760
        %v2996 = vsub.f32 %v2824, %v2995
        %2997 = vmatpush.msra.mxu0 %v2996
        %v2998 = vand.u32 %v2823, 4294901760
        %v2999 = vsub.f32 %v2823, %v2998
        %3000 = vmatpush.msra.mxu0 %v2999
        %v3001 = vand.u32 %v2822, 4294901760
        %v3002 = vsub.f32 %v2822, %v3001
        %3003 = vmatpush.msra.mxu0 %v3002
        %v3004 = vand.u32 %v2821, 4294901760
        %v3005 = vsub.f32 %v2821, %v3004
        %3006 = vmatpush.msra.mxu0 %v3005
        %v3007 = vand.u32 %v2820, 4294901760
        %v3008 = vsub.f32 %v2820, %v3007
        %3009 = vmatpush.msra.mxu0 %v3008
        %v3010 = vand.u32 %v2819, 4294901760
        %v3011 = vsub.f32 %v2819, %v3010
        %3012 = vmatpush.msra.mxu0 %v3011
        %v3013 = vand.u32 %v2818, 4294901760
        %v3014 = vsub.f32 %v2818, %v3013
        %3015 = vmatpush.msra.mxu0 %v3014
        %v3016 = vand.u32 %v2817, 4294901760
        %v3017 = vsub.f32 %v2817, %v3016
        %3018 = vmatpush.msra.mxu0 %v3017
        %v3019 = vand.u32 %v2816, 4294901760
        %v3020 = vsub.f32 %v2816, %v3019
        %3021 = vmatpush.msra.mxu0 %v3020
        %v3022 = vand.u32 %v2815, 4294901760
        %v3023 = vsub.f32 %v2815, %v3022
        %3024 = vmatpush.msra.mxu0 %v3023
        %v3025 = vand.u32 %v2814, 4294901760
        %v3026 = vsub.f32 %v2814, %v3025
        %3027 = vmatmul.f32.gmra.mxu0 %v3026
        %v3028 = vpop.f32.mrf.mxu0
        %v3029 = vadd.f32 %v2975, %v3028
        %3030 = vdwg.mxu0
        %v3031 = vand.u32 %v2830, 4294901760
        %3032 = vmatpush.msra.mxu0 %v3031
        %v3033 = vand.u32 %v2829, 4294901760
        %3034 = vmatpush.msra.mxu0 %v3033
        %v3035 = vand.u32 %v2828, 4294901760
        %3036 = vmatpush.msra.mxu0 %v3035
        %v3037 = vand.u32 %v2827, 4294901760
        %3038 = vmatpush.msra.mxu0 %v3037
        %v3039 = vand.u32 %v2826, 4294901760
        %3040 = vmatpush.msra.mxu0 %v3039
        %v3041 = vand.u32 %v2825, 4294901760
        %3042 = vmatpush.msra.mxu0 %v3041
        %v3043 = vand.u32 %v2824, 4294901760
        %3044 = vmatpush.msra.mxu0 %v3043
        %v3045 = vand.u32 %v2823, 4294901760
        %3046 = vmatpush.msra.mxu0 %v3045
        %v3047 = vand.u32 %v2822, 4294901760
        %3048 = vmatpush.msra.mxu0 %v3047
        %v3049 = vand.u32 %v2821, 4294901760
        %3050 = vmatpush.msra.mxu0 %v3049
        %v3051 = vand.u32 %v2820, 4294901760
        %3052 = vmatpush.msra.mxu0 %v3051
        %v3053 = vand.u32 %v2819, 4294901760
        %3054 = vmatpush.msra.mxu0 %v3053
        %v3055 = vand.u32 %v2818, 4294901760
        %3056 = vmatpush.msra.mxu0 %v3055
        %v3057 = vand.u32 %v2817, 4294901760
        %3058 = vmatpush.msra.mxu0 %v3057
        %v3059 = vand.u32 %v2816, 4294901760
        %3060 = vmatpush.msra.mxu0 %v3059
        %v3061 = vand.u32 %v2815, 4294901760
        %3062 = vmatpush.msra.mxu0 %v3061
        %v3063 = vand.u32 %v2814, 4294901760
        %v3064 = vsub.f32 %v2814, %v3063
        %v3065 = vand.u32 %v3064, 4294901760
        %3066 = vmatmul.f32.gmra.mxu0 %v3065
        %v3067 = vpop.f32.mrf.mxu0
        %v3068 = vadd.f32 %v3029, %v3067
        %3069 = vdwg.mxu0
        %v3070 = vand.u32 %v2830, 4294901760
        %v3071 = vsub.f32 %v2830, %v3070
        %v3072 = vand.u32 %v3071, 4294901760
        %3073 = vmatpush.msra.mxu0 %v3072
        %v3074 = vand.u32 %v2829, 4294901760
        %v3075 = vsub.f32 %v2829, %v3074
        %v3076 = vand.u32 %v3075, 4294901760
        %3077 = vmatpush.msra.mxu0 %v3076
        %v3078 = vand.u32 %v2828, 4294901760
        %v3079 = vsub.f32 %v2828, %v3078
        %v3080 = vand.u32 %v3079, 4294901760
        %3081 = vmatpush.msra.mxu0 %v3080
        %v3082 = vand.u32 %v2827, 4294901760
        %v3083 = vsub.f32 %v2827, %v3082
        %v3084 = vand.u32 %v3083, 4294901760
        %3085 = vmatpush.msra.mxu0 %v3084
        %v3086 = vand.u32 %v2826, 4294901760
        %v3087 = vsub.f32 %v2826, %v3086
        %v3088 = vand.u32 %v3087, 4294901760
        %3089 = vmatpush.msra.mxu0 %v3088
        %v3090 = vand.u32 %v2825, 4294901760
        %v3091 = vsub.f32 %v2825, %v3090
        %v3092 = vand.u32 %v3091, 4294901760
        %3093 = vmatpush.msra.mxu0 %v3092
        %v3094 = vand.u32 %v2824, 4294901760
        %v3095 = vsub.f32 %v2824, %v3094
        %v3096 = vand.u32 %v3095, 4294901760
        %3097 = vmatpush.msra.mxu0 %v3096
        %v3098 = vand.u32 %v2823, 4294901760
        %v3099 = vsub.f32 %v2823, %v3098
        %v3100 = vand.u32 %v3099, 4294901760
        %3101 = vmatpush.msra.mxu0 %v3100
        %v3102 = vand.u32 %v2822, 4294901760
        %v3103 = vsub.f32 %v2822, %v3102
        %v3104 = vand.u32 %v3103, 4294901760
        %3105 = vmatpush.msra.mxu0 %v3104
        %v3106 = vand.u32 %v2821, 4294901760
        %v3107 = vsub.f32 %v2821, %v3106
        %v3108 = vand.u32 %v3107, 4294901760
        %3109 = vmatpush.msra.mxu0 %v3108
        %v3110 = vand.u32 %v2820, 4294901760
        %v3111 = vsub.f32 %v2820, %v3110
        %v3112 = vand.u32 %v3111, 4294901760
        %3113 = vmatpush.msra.mxu0 %v3112
        %v3114 = vand.u32 %v2819, 4294901760
        %v3115 = vsub.f32 %v2819, %v3114
        %v3116 = vand.u32 %v3115, 4294901760
        %3117 = vmatpush.msra.mxu0 %v3116
        %v3118 = vand.u32 %v2818, 4294901760
        %v3119 = vsub.f32 %v2818, %v3118
        %v3120 = vand.u32 %v3119, 4294901760
        %3121 = vmatpush.msra.mxu0 %v3120
        %v3122 = vand.u32 %v2817, 4294901760
        %v3123 = vsub.f32 %v2817, %v3122
        %v3124 = vand.u32 %v3123, 4294901760
        %3125 = vmatpush.msra.mxu0 %v3124
        %v3126 = vand.u32 %v2816, 4294901760
        %v3127 = vsub.f32 %v2816, %v3126
        %v3128 = vand.u32 %v3127, 4294901760
        %3129 = vmatpush.msra.mxu0 %v3128
        %v3130 = vand.u32 %v2815, 4294901760
        %v3131 = vsub.f32 %v2815, %v3130
        %v3132 = vand.u32 %v3131, 4294901760
        %3133 = vmatpush.msra.mxu0 %v3132
        %v3134 = vand.u32 %v2814, 4294901760
        %3135 = vmatmul.f32.gmra.mxu0 %v3134
        %v3136 = vpop.f32.mrf.mxu0
        %v3137 = vadd.f32 %v3068, %v3136
        %3138 = vdwg.mxu0
        %v3139 = vand.u32 %v2830, 4294901760
        %3140 = vmatpush.msra.mxu0 %v3139
        %v3141 = vand.u32 %v2829, 4294901760
        %3142 = vmatpush.msra.mxu0 %v3141
        %v3143 = vand.u32 %v2828, 4294901760
        %3144 = vmatpush.msra.mxu0 %v3143
        %v3145 = vand.u32 %v2827, 4294901760
        %3146 = vmatpush.msra.mxu0 %v3145
        %v3147 = vand.u32 %v2826, 4294901760
        %3148 = vmatpush.msra.mxu0 %v3147
        %v3149 = vand.u32 %v2825, 4294901760
        %3150 = vmatpush.msra.mxu0 %v3149
        %v3151 = vand.u32 %v2824, 4294901760
        %3152 = vmatpush.msra.mxu0 %v3151
        %v3153 = vand.u32 %v2823, 4294901760
        %3154 = vmatpush.msra.mxu0 %v3153
        %v3155 = vand.u32 %v2822, 4294901760
        %3156 = vmatpush.msra.mxu0 %v3155
        %v3157 = vand.u32 %v2821, 4294901760
        %3158 = vmatpush.msra.mxu0 %v3157
        %v3159 = vand.u32 %v2820, 4294901760
        %3160 = vmatpush.msra.mxu0 %v3159
        %v3161 = vand.u32 %v2819, 4294901760
        %3162 = vmatpush.msra.mxu0 %v3161
        %v3163 = vand.u32 %v2818, 4294901760
        %3164 = vmatpush.msra.mxu0 %v3163
        %v3165 = vand.u32 %v2817, 4294901760
        %3166 = vmatpush.msra.mxu0 %v3165
        %v3167 = vand.u32 %v2816, 4294901760
        %3168 = vmatpush.msra.mxu0 %v3167
        %v3169 = vand.u32 %v2815, 4294901760
        %3170 = vmatpush.msra.mxu0 %v3169
        %v3171 = vand.u32 %v2814, 4294901760
        %3172 = vmatmul.f32.gmra.mxu0 %v3171
        %v3173 = vpop.f32.mrf.mxu0
        %v3174 = vadd.f32 %v3137, %v3173
        %3175 = vdwg.mxu0
        %v3176 = vmax.f32 %v3174, 0.0
        %v3177 = vand.u32 2147483647, %v3174
        %v3178 = vsub.f32 0.0, %v3177
        %v3179 = vmul.f32 %v3178, 1.442695
        %v3180 = vpow.pop %v3179
        %v3181 = vadd.f32 %v3180, 1.0
        %v3182 = vlog2.pop %v3181
        %v3183 = vmul.f32 %v3182, 0.6931472
        %v3184 = vadd.f32 %v3176, %v3183
        %v3185 = vld [vmem:[%s16] sm:$0xff]
        %v3186 = vld [vmem:[%s16 + $0x8] sm:$0xff]
        %v3187 = vld [vmem:[%s16 + $0x10] sm:$0xff]
        %v3188 = vld [vmem:[%s16 + $0x18] sm:$0xff]
        %v3189 = vld [vmem:[%s16 + $0x20] sm:$0xff]
        %v3190 = vld [vmem:[%s16 + $0x28] sm:$0xff]
        %v3191 = vld [vmem:[%s16 + $0x30] sm:$0xff]
        %v3192 = vld [vmem:[%s16 + $0x38] sm:$0xff]
        %v3193 = vld [vmem:[%s16 + $0x40] sm:$0xff]
        %v3194 = vld [vmem:[%s16 + $0x48] sm:$0xff]
        %v3195 = vld [vmem:[%s16 + $0x50] sm:$0xff]
        %v3196 = vld [vmem:[%s16 + $0x58] sm:$0xff]
        %v3197 = vld [vmem:[%s16 + $0x60] sm:$0xff]
        %v3198 = vld [vmem:[%s16 + $0x68] sm:$0xff]
        %v3199 = vld [vmem:[%s16 + $0x70] sm:$0xff]
        %v3200 = vld [vmem:[%s16 + $0x78] sm:$0xff]
        %v3201 = vand.u32 %v3200, 4294901760
        %3202 = vmatpush.msra.mxu0 %v3201
        %v3203 = vand.u32 %v3199, 4294901760
        %3204 = vmatpush.msra.mxu0 %v3203
        %v3205 = vand.u32 %v3198, 4294901760
        %3206 = vmatpush.msra.mxu0 %v3205
        %v3207 = vand.u32 %v3197, 4294901760
        %3208 = vmatpush.msra.mxu0 %v3207
        %v3209 = vand.u32 %v3196, 4294901760
        %3210 = vmatpush.msra.mxu0 %v3209
        %v3211 = vand.u32 %v3195, 4294901760
        %3212 = vmatpush.msra.mxu0 %v3211
        %v3213 = vand.u32 %v3194, 4294901760
        %3214 = vmatpush.msra.mxu0 %v3213
        %v3215 = vand.u32 %v3193, 4294901760
        %3216 = vmatpush.msra.mxu0 %v3215
        %v3217 = vand.u32 %v3192, 4294901760
        %3218 = vmatpush.msra.mxu0 %v3217
        %v3219 = vand.u32 %v3191, 4294901760
        %3220 = vmatpush.msra.mxu0 %v3219
        %v3221 = vand.u32 %v3190, 4294901760
        %3222 = vmatpush.msra.mxu0 %v3221
        %v3223 = vand.u32 %v3189, 4294901760
        %3224 = vmatpush.msra.mxu0 %v3223
        %v3225 = vand.u32 %v3188, 4294901760
        %3226 = vmatpush.msra.mxu0 %v3225
        %v3227 = vand.u32 %v3187, 4294901760
        %3228 = vmatpush.msra.mxu0 %v3227
        %v3229 = vand.u32 %v3186, 4294901760
        %3230 = vmatpush.msra.mxu0 %v3229
        %v3231 = vand.u32 %v3185, 4294901760
        %3232 = vmatpush.msra.mxu0 %v3231
        %v3233 = vand.u32 %v2814, 4294901760
        %v3234 = vsub.f32 %v2814, %v3233
        %v3235 = vand.u32 %v3234, 4294901760
        %v3236 = vsub.f32 %v3234, %v3235
        %v3237 = vand.u32 %v3236, 4294901760
        %3238 = vmatmul.f32.gmra.mxu0 %v3237
        %v3239 = vpop.f32.mrf.mxu0
        %v3240 = vadd.f32 0.0, %v3239
        %3241 = vdwg.mxu0
        %v3242 = vand.u32 %v3200, 4294901760
        %v3243 = vsub.f32 %v3200, %v3242
        %v3244 = vand.u32 %v3243, 4294901760
        %v3245 = vsub.f32 %v3243, %v3244
        %v3246 = vand.u32 %v3245, 4294901760
        %3247 = vmatpush.msra.mxu0 %v3246
        %v3248 = vand.u32 %v3199, 4294901760
        %v3249 = vsub.f32 %v3199, %v3248
        %v3250 = vand.u32 %v3249, 4294901760
        %v3251 = vsub.f32 %v3249, %v3250
        %v3252 = vand.u32 %v3251, 4294901760
        %3253 = vmatpush.msra.mxu0 %v3252
        %v3254 = vand.u32 %v3198, 4294901760
        %v3255 = vsub.f32 %v3198, %v3254
        %v3256 = vand.u32 %v3255, 4294901760
        %v3257 = vsub.f32 %v3255, %v3256
        %v3258 = vand.u32 %v3257, 4294901760
        %3259 = vmatpush.msra.mxu0 %v3258
        %v3260 = vand.u32 %v3197, 4294901760
        %v3261 = vsub.f32 %v3197, %v3260
        %v3262 = vand.u32 %v3261, 4294901760
        %v3263 = vsub.f32 %v3261, %v3262
        %v3264 = vand.u32 %v3263, 4294901760
        %3265 = vmatpush.msra.mxu0 %v3264
        %v3266 = vand.u32 %v3196, 4294901760
        %v3267 = vsub.f32 %v3196, %v3266
        %v3268 = vand.u32 %v3267, 4294901760
        %v3269 = vsub.f32 %v3267, %v3268
        %v3270 = vand.u32 %v3269, 4294901760
        %3271 = vmatpush.msra.mxu0 %v3270
        %v3272 = vand.u32 %v3195, 4294901760
        %v3273 = vsub.f32 %v3195, %v3272
        %v3274 = vand.u32 %v3273, 4294901760
        %v3275 = vsub.f32 %v3273, %v3274
        %v3276 = vand.u32 %v3275, 4294901760
        %3277 = vmatpush.msra.mxu0 %v3276
        %v3278 = vand.u32 %v3194, 4294901760
        %v3279 = vsub.f32 %v3194, %v3278
        %v3280 = vand.u32 %v3279, 4294901760
        %v3281 = vsub.f32 %v3279, %v3280
        %v3282 = vand.u32 %v3281, 4294901760
        %3283 = vmatpush.msra.mxu0 %v3282
        %v3284 = vand.u32 %v3193, 4294901760
        %v3285 = vsub.f32 %v3193, %v3284
        %v3286 = vand.u32 %v3285, 4294901760
        %v3287 = vsub.f32 %v3285, %v3286
        %v3288 = vand.u32 %v3287, 4294901760
        %3289 = vmatpush.msra.mxu0 %v3288
        %v3290 = vand.u32 %v3192, 4294901760
        %v3291 = vsub.f32 %v3192, %v3290
        %v3292 = vand.u32 %v3291, 4294901760
        %v3293 = vsub.f32 %v3291, %v3292
        %v3294 = vand.u32 %v3293, 4294901760
        %3295 = vmatpush.msra.mxu0 %v3294
        %v3296 = vand.u32 %v3191, 4294901760
        %v3297 = vsub.f32 %v3191, %v3296
        %v3298 = vand.u32 %v3297, 4294901760
        %v3299 = vsub.f32 %v3297, %v3298
        %v3300 = vand.u32 %v3299, 4294901760
        %3301 = vmatpush.msra.mxu0 %v3300
        %v3302 = vand.u32 %v3190, 4294901760
        %v3303 = vsub.f32 %v3190, %v3302
        %v3304 = vand.u32 %v3303, 4294901760
        %v3305 = vsub.f32 %v3303, %v3304
        %v3306 = vand.u32 %v3305, 4294901760
        %3307 = vmatpush.msra.mxu0 %v3306
        %v3308 = vand.u32 %v3189, 4294901760
        %v3309 = vsub.f32 %v3189, %v3308
        %v3310 = vand.u32 %v3309, 4294901760
        %v3311 = vsub.f32 %v3309, %v3310
        %v3312 = vand.u32 %v3311, 4294901760
        %3313 = vmatpush.msra.mxu0 %v3312
        %v3314 = vand.u32 %v3188, 4294901760
        %v3315 = vsub.f32 %v3188, %v3314
        %v3316 = vand.u32 %v3315, 4294901760
        %v3317 = vsub.f32 %v3315, %v3316
        %v3318 = vand.u32 %v3317, 4294901760
        %3319 = vmatpush.msra.mxu0 %v3318
        %v3320 = vand.u32 %v3187, 4294901760
        %v3321 = vsub.f32 %v3187, %v3320
        %v3322 = vand.u32 %v3321, 4294901760
        %v3323 = vsub.f32 %v3321, %v3322
        %v3324 = vand.u32 %v3323, 4294901760
        %3325 = vmatpush.msra.mxu0 %v3324
        %v3326 = vand.u32 %v3186, 4294901760
        %v3327 = vsub.f32 %v3186, %v3326
        %v3328 = vand.u32 %v3327, 4294901760
        %v3329 = vsub.f32 %v3327, %v3328
        %v3330 = vand.u32 %v3329, 4294901760
        %3331 = vmatpush.msra.mxu0 %v3330
        %v3332 = vand.u32 %v3185, 4294901760
        %v3333 = vsub.f32 %v3185, %v3332
        %v3334 = vand.u32 %v3333, 4294901760
        %v3335 = vsub.f32 %v3333, %v3334
        %v3336 = vand.u32 %v3335, 4294901760
        %3337 = vmatpush.msra.mxu0 %v3336
        %v3338 = vand.u32 %v2814, 4294901760
        %3339 = vmatmul.f32.gmra.mxu0 %v3338
        %v3340 = vpop.f32.mrf.mxu0
        %v3341 = vadd.f32 %v3240, %v3340
        %3342 = vdwg.mxu0
        %v3343 = vand.u32 %v3200, 4294901760
        %v3344 = vsub.f32 %v3200, %v3343
        %3345 = vmatpush.msra.mxu0 %v3344
        %v3346 = vand.u32 %v3199, 4294901760
        %v3347 = vsub.f32 %v3199, %v3346
        %3348 = vmatpush.msra.mxu0 %v3347
        %v3349 = vand.u32 %v3198, 4294901760
        %v3350 = vsub.f32 %v3198, %v3349
        %3351 = vmatpush.msra.mxu0 %v3350
        %v3352 = vand.u32 %v3197, 4294901760
        %v3353 = vsub.f32 %v3197, %v3352
        %3354 = vmatpush.msra.mxu0 %v3353
        %v3355 = vand.u32 %v3196, 4294901760
        %v3356 = vsub.f32 %v3196, %v3355
        %3357 = vmatpush.msra.mxu0 %v3356
        %v3358 = vand.u32 %v3195, 4294901760
        %v3359 = vsub.f32 %v3195, %v3358
        %3360 = vmatpush.msra.mxu0 %v3359
        %v3361 = vand.u32 %v3194, 4294901760
        %v3362 = vsub.f32 %v3194, %v3361
        %3363 = vmatpush.msra.mxu0 %v3362
        %v3364 = vand.u32 %v3193, 4294901760
        %v3365 = vsub.f32 %v3193, %v3364
        %3366 = vmatpush.msra.mxu0 %v3365
        %v3367 = vand.u32 %v3192, 4294901760
        %v3368 = vsub.f32 %v3192, %v3367
        %3369 = vmatpush.msra.mxu0 %v3368
        %v3370 = vand.u32 %v3191, 4294901760
        %v3371 = vsub.f32 %v3191, %v3370
        %3372 = vmatpush.msra.mxu0 %v3371
        %v3373 = vand.u32 %v3190, 4294901760
        %v3374 = vsub.f32 %v3190, %v3373
        %3375 = vmatpush.msra.mxu0 %v3374
        %v3376 = vand.u32 %v3189, 4294901760
        %v3377 = vsub.f32 %v3189, %v3376
        %3378 = vmatpush.msra.mxu0 %v3377
        %v3379 = vand.u32 %v3188, 4294901760
        %v3380 = vsub.f32 %v3188, %v3379
        %3381 = vmatpush.msra.mxu0 %v3380
        %v3382 = vand.u32 %v3187, 4294901760
        %v3383 = vsub.f32 %v3187, %v3382
        %3384 = vmatpush.msra.mxu0 %v3383
        %v3385 = vand.u32 %v3186, 4294901760
        %v3386 = vsub.f32 %v3186, %v3385
        %3387 = vmatpush.msra.mxu0 %v3386
        %v3388 = vand.u32 %v3185, 4294901760
        %v3389 = vsub.f32 %v3185, %v3388
        %3390 = vmatpush.msra.mxu0 %v3389
        %v3391 = vand.u32 %v2814, 4294901760
        %v3392 = vsub.f32 %v2814, %v3391
        %3393 = vmatmul.f32.gmra.mxu0 %v3392
        %v3394 = vpop.f32.mrf.mxu0
        %v3395 = vadd.f32 %v3341, %v3394
        %3396 = vdwg.mxu0
        %v3397 = vand.u32 %v3200, 4294901760
        %3398 = vmatpush.msra.mxu0 %v3397
        %v3399 = vand.u32 %v3199, 4294901760
        %3400 = vmatpush.msra.mxu0 %v3399
        %v3401 = vand.u32 %v3198, 4294901760
        %3402 = vmatpush.msra.mxu0 %v3401
        %v3403 = vand.u32 %v3197, 4294901760
        %3404 = vmatpush.msra.mxu0 %v3403
        %v3405 = vand.u32 %v3196, 4294901760
        %3406 = vmatpush.msra.mxu0 %v3405
        %v3407 = vand.u32 %v3195, 4294901760
        %3408 = vmatpush.msra.mxu0 %v3407
        %v3409 = vand.u32 %v3194, 4294901760
        %3410 = vmatpush.msra.mxu0 %v3409
        %v3411 = vand.u32 %v3193, 4294901760
        %3412 = vmatpush.msra.mxu0 %v3411
        %v3413 = vand.u32 %v3192, 4294901760
        %3414 = vmatpush.msra.mxu0 %v3413
        %v3415 = vand.u32 %v3191, 4294901760
        %3416 = vmatpush.msra.mxu0 %v3415
        %v3417 = vand.u32 %v3190, 4294901760
        %3418 = vmatpush.msra.mxu0 %v3417
        %v3419 = vand.u32 %v3189, 4294901760
        %3420 = vmatpush.msra.mxu0 %v3419
        %v3421 = vand.u32 %v3188, 4294901760
        %3422 = vmatpush.msra.mxu0 %v3421
        %v3423 = vand.u32 %v3187, 4294901760
        %3424 = vmatpush.msra.mxu0 %v3423
        %v3425 = vand.u32 %v3186, 4294901760
        %3426 = vmatpush.msra.mxu0 %v3425
        %v3427 = vand.u32 %v3185, 4294901760
        %3428 = vmatpush.msra.mxu0 %v3427
        %v3429 = vand.u32 %v2814, 4294901760
        %v3430 = vsub.f32 %v2814, %v3429
        %v3431 = vand.u32 %v3430, 4294901760
        %3432 = vmatmul.f32.gmra.mxu0 %v3431
        %v3433 = vpop.f32.mrf.mxu0
        %v3434 = vadd.f32 %v3395, %v3433
        %3435 = vdwg.mxu0
        %v3436 = vand.u32 %v3200, 4294901760
        %v3437 = vsub.f32 %v3200, %v3436
        %v3438 = vand.u32 %v3437, 4294901760
        %3439 = vmatpush.msra.mxu0 %v3438
        %v3440 = vand.u32 %v3199, 4294901760
        %v3441 = vsub.f32 %v3199, %v3440
        %v3442 = vand.u32 %v3441, 4294901760
        %3443 = vmatpush.msra.mxu0 %v3442
        %v3444 = vand.u32 %v3198, 4294901760
        %v3445 = vsub.f32 %v3198, %v3444
        %v3446 = vand.u32 %v3445, 4294901760
        %3447 = vmatpush.msra.mxu0 %v3446
        %v3448 = vand.u32 %v3197, 4294901760
        %v3449 = vsub.f32 %v3197, %v3448
        %v3450 = vand.u32 %v3449, 4294901760
        %3451 = vmatpush.msra.mxu0 %v3450
        %v3452 = vand.u32 %v3196, 4294901760
        %v3453 = vsub.f32 %v3196, %v3452
        %v3454 = vand.u32 %v3453, 4294901760
        %3455 = vmatpush.msra.mxu0 %v3454
        %v3456 = vand.u32 %v3195, 4294901760
        %v3457 = vsub.f32 %v3195, %v3456
        %v3458 = vand.u32 %v3457, 4294901760
        %3459 = vmatpush.msra.mxu0 %v3458
        %v3460 = vand.u32 %v3194, 4294901760
        %v3461 = vsub.f32 %v3194, %v3460
        %v3462 = vand.u32 %v3461, 4294901760
        %3463 = vmatpush.msra.mxu0 %v3462
        %v3464 = vand.u32 %v3193, 4294901760
        %v3465 = vsub.f32 %v3193, %v3464
        %v3466 = vand.u32 %v3465, 4294901760
        %3467 = vmatpush.msra.mxu0 %v3466
        %v3468 = vand.u32 %v3192, 4294901760
        %v3469 = vsub.f32 %v3192, %v3468
        %v3470 = vand.u32 %v3469, 4294901760
        %3471 = vmatpush.msra.mxu0 %v3470
        %v3472 = vand.u32 %v3191, 4294901760
        %v3473 = vsub.f32 %v3191, %v3472
        %v3474 = vand.u32 %v3473, 4294901760
        %3475 = vmatpush.msra.mxu0 %v3474
        %v3476 = vand.u32 %v3190, 4294901760
        %v3477 = vsub.f32 %v3190, %v3476
        %v3478 = vand.u32 %v3477, 4294901760
        %3479 = vmatpush.msra.mxu0 %v3478
        %v3480 = vand.u32 %v3189, 4294901760
        %v3481 = vsub.f32 %v3189, %v3480
        %v3482 = vand.u32 %v3481, 4294901760
        %3483 = vmatpush.msra.mxu0 %v3482
        %v3484 = vand.u32 %v3188, 4294901760
        %v3485 = vsub.f32 %v3188, %v3484
        %v3486 = vand.u32 %v3485, 4294901760
        %3487 = vmatpush.msra.mxu0 %v3486
        %v3488 = vand.u32 %v3187, 4294901760
        %v3489 = vsub.f32 %v3187, %v3488
        %v3490 = vand.u32 %v3489, 4294901760
        %3491 = vmatpush.msra.mxu0 %v3490
        %v3492 = vand.u32 %v3186, 4294901760
        %v3493 = vsub.f32 %v3186, %v3492
        %v3494 = vand.u32 %v3493, 4294901760
        %3495 = vmatpush.msra.mxu0 %v3494
        %v3496 = vand.u32 %v3185, 4294901760
        %v3497 = vsub.f32 %v3185, %v3496
        %v3498 = vand.u32 %v3497, 4294901760
        %3499 = vmatpush.msra.mxu0 %v3498
        %v3500 = vand.u32 %v2814, 4294901760
        %3501 = vmatmul.f32.gmra.mxu0 %v3500
        %v3502 = vpop.f32.mrf.mxu0
        %v3503 = vadd.f32 %v3434, %v3502
        %3504 = vdwg.mxu0
        %v3505 = vand.u32 %v3200, 4294901760
        %3506 = vmatpush.msra.mxu0 %v3505
        %v3507 = vand.u32 %v3199, 4294901760
        %3508 = vmatpush.msra.mxu0 %v3507
        %v3509 = vand.u32 %v3198, 4294901760
        %3510 = vmatpush.msra.mxu0 %v3509
        %v3511 = vand.u32 %v3197, 4294901760
        %3512 = vmatpush.msra.mxu0 %v3511
        %v3513 = vand.u32 %v3196, 4294901760
        %3514 = vmatpush.msra.mxu0 %v3513
        %v3515 = vand.u32 %v3195, 4294901760
        %3516 = vmatpush.msra.mxu0 %v3515
        %v3517 = vand.u32 %v3194, 4294901760
        %3518 = vmatpush.msra.mxu0 %v3517
        %v3519 = vand.u32 %v3193, 4294901760
        %3520 = vmatpush.msra.mxu0 %v3519
        %v3521 = vand.u32 %v3192, 4294901760
        %3522 = vmatpush.msra.mxu0 %v3521
        %v3523 = vand.u32 %v3191, 4294901760
        %3524 = vmatpush.msra.mxu0 %v3523
        %v3525 = vand.u32 %v3190, 4294901760
        %3526 = vmatpush.msra.mxu0 %v3525
        %v3527 = vand.u32 %v3189, 4294901760
        %3528 = vmatpush.msra.mxu0 %v3527
        %v3529 = vand.u32 %v3188, 4294901760
        %3530 = vmatpush.msra.mxu0 %v3529
        %v3531 = vand.u32 %v3187, 4294901760
        %3532 = vmatpush.msra.mxu0 %v3531
        %v3533 = vand.u32 %v3186, 4294901760
        %3534 = vmatpush.msra.mxu0 %v3533
        %v3535 = vand.u32 %v3185, 4294901760
        %3536 = vmatpush.msra.mxu0 %v3535
        %v3537 = vand.u32 %v2814, 4294901760
        %3538 = vmatmul.f32.gmra.mxu0 %v3537
        %v3539 = vpop.f32.mrf.mxu0
        %v3540 = vadd.f32 %v3503, %v3539
        %3541 = vdwg.mxu0
        %v3542 = vld [vmem:[%s17] sm:$0xff]
        %v3543 = vld [vmem:[%s17 + $0x8] sm:$0xff]
        %v3544 = vld [vmem:[%s17 + $0x10] sm:$0xff]
        %v3545 = vld [vmem:[%s17 + $0x18] sm:$0xff]
        %v3546 = vld [vmem:[%s17 + $0x20] sm:$0xff]
        %v3547 = vld [vmem:[%s17 + $0x28] sm:$0xff]
        %v3548 = vld [vmem:[%s17 + $0x30] sm:$0xff]
        %v3549 = vld [vmem:[%s17 + $0x38] sm:$0xff]
        %v3550 = vld [vmem:[%s17 + $0x40] sm:$0xff]
        %v3551 = vld [vmem:[%s17 + $0x48] sm:$0xff]
        %v3552 = vld [vmem:[%s17 + $0x50] sm:$0xff]
        %v3553 = vld [vmem:[%s17 + $0x58] sm:$0xff]
        %v3554 = vld [vmem:[%s17 + $0x60] sm:$0xff]
        %v3555 = vld [vmem:[%s17 + $0x68] sm:$0xff]
        %v3556 = vld [vmem:[%s17 + $0x70] sm:$0xff]
        %v3557 = vld [vmem:[%s17 + $0x78] sm:$0xff]
        %v3558 = vand.u32 %v3557, 4294901760
        %3559 = vmatpush.msra.mxu0 %v3558
        %v3560 = vand.u32 %v3556, 4294901760
        %3561 = vmatpush.msra.mxu0 %v3560
        %v3562 = vand.u32 %v3555, 4294901760
        %3563 = vmatpush.msra.mxu0 %v3562
        %v3564 = vand.u32 %v3554, 4294901760
        %3565 = vmatpush.msra.mxu0 %v3564
        %v3566 = vand.u32 %v3553, 4294901760
        %3567 = vmatpush.msra.mxu0 %v3566
        %v3568 = vand.u32 %v3552, 4294901760
        %3569 = vmatpush.msra.mxu0 %v3568
        %v3570 = vand.u32 %v3551, 4294901760
        %3571 = vmatpush.msra.mxu0 %v3570
        %v3572 = vand.u32 %v3550, 4294901760
        %3573 = vmatpush.msra.mxu0 %v3572
        %v3574 = vand.u32 %v3549, 4294901760
        %3575 = vmatpush.msra.mxu0 %v3574
        %v3576 = vand.u32 %v3548, 4294901760
        %3577 = vmatpush.msra.mxu0 %v3576
        %v3578 = vand.u32 %v3547, 4294901760
        %3579 = vmatpush.msra.mxu0 %v3578
        %v3580 = vand.u32 %v3546, 4294901760
        %3581 = vmatpush.msra.mxu0 %v3580
        %v3582 = vand.u32 %v3545, 4294901760
        %3583 = vmatpush.msra.mxu0 %v3582
        %v3584 = vand.u32 %v3544, 4294901760
        %3585 = vmatpush.msra.mxu0 %v3584
        %v3586 = vand.u32 %v3543, 4294901760
        %3587 = vmatpush.msra.mxu0 %v3586
        %v3588 = vand.u32 %v3542, 4294901760
        %3589 = vmatpush.msra.mxu0 %v3588
        %v3590 = vand.u32 %v2814, 4294901760
        %v3591 = vsub.f32 %v2814, %v3590
        %v3592 = vand.u32 %v3591, 4294901760
        %v3593 = vsub.f32 %v3591, %v3592
        %v3594 = vand.u32 %v3593, 4294901760
        %3595 = vmatmul.f32.gmra.mxu0 %v3594
        %v3596 = vpop.f32.mrf.mxu0
        %v3597 = vadd.f32 0.0, %v3596
        %3598 = vdwg.mxu0
        %v3599 = vand.u32 %v3557, 4294901760
        %v3600 = vsub.f32 %v3557, %v3599
        %v3601 = vand.u32 %v3600, 4294901760
        %v3602 = vsub.f32 %v3600, %v3601
        %v3603 = vand.u32 %v3602, 4294901760
        %3604 = vmatpush.msra.mxu0 %v3603
        %v3605 = vand.u32 %v3556, 4294901760
        %v3606 = vsub.f32 %v3556, %v3605
        %v3607 = vand.u32 %v3606, 4294901760
        %v3608 = vsub.f32 %v3606, %v3607
        %v3609 = vand.u32 %v3608, 4294901760
        %3610 = vmatpush.msra.mxu0 %v3609
        %v3611 = vand.u32 %v3555, 4294901760
        %v3612 = vsub.f32 %v3555, %v3611
        %v3613 = vand.u32 %v3612, 4294901760
        %v3614 = vsub.f32 %v3612, %v3613
        %v3615 = vand.u32 %v3614, 4294901760
        %3616 = vmatpush.msra.mxu0 %v3615
        %v3617 = vand.u32 %v3554, 4294901760
        %v3618 = vsub.f32 %v3554, %v3617
        %v3619 = vand.u32 %v3618, 4294901760
        %v3620 = vsub.f32 %v3618, %v3619
        %v3621 = vand.u32 %v3620, 4294901760
        %3622 = vmatpush.msra.mxu0 %v3621
        %v3623 = vand.u32 %v3553, 4294901760
        %v3624 = vsub.f32 %v3553, %v3623
        %v3625 = vand.u32 %v3624, 4294901760
        %v3626 = vsub.f32 %v3624, %v3625
        %v3627 = vand.u32 %v3626, 4294901760
        %3628 = vmatpush.msra.mxu0 %v3627
        %v3629 = vand.u32 %v3552, 4294901760
        %v3630 = vsub.f32 %v3552, %v3629
        %v3631 = vand.u32 %v3630, 4294901760
        %v3632 = vsub.f32 %v3630, %v3631
        %v3633 = vand.u32 %v3632, 4294901760
        %3634 = vmatpush.msra.mxu0 %v3633
        %v3635 = vand.u32 %v3551, 4294901760
        %v3636 = vsub.f32 %v3551, %v3635
        %v3637 = vand.u32 %v3636, 4294901760
        %v3638 = vsub.f32 %v3636, %v3637
        %v3639 = vand.u32 %v3638, 4294901760
        %3640 = vmatpush.msra.mxu0 %v3639
        %v3641 = vand.u32 %v3550, 4294901760
        %v3642 = vsub.f32 %v3550, %v3641
        %v3643 = vand.u32 %v3642, 4294901760
        %v3644 = vsub.f32 %v3642, %v3643
        %v3645 = vand.u32 %v3644, 4294901760
        %3646 = vmatpush.msra.mxu0 %v3645
        %v3647 = vand.u32 %v3549, 4294901760
        %v3648 = vsub.f32 %v3549, %v3647
        %v3649 = vand.u32 %v3648, 4294901760
        %v3650 = vsub.f32 %v3648, %v3649
        %v3651 = vand.u32 %v3650, 4294901760
        %3652 = vmatpush.msra.mxu0 %v3651
        %v3653 = vand.u32 %v3548, 4294901760
        %v3654 = vsub.f32 %v3548, %v3653
        %v3655 = vand.u32 %v3654, 4294901760
        %v3656 = vsub.f32 %v3654, %v3655
        %v3657 = vand.u32 %v3656, 4294901760
        %3658 = vmatpush.msra.mxu0 %v3657
        %v3659 = vand.u32 %v3547, 4294901760
        %v3660 = vsub.f32 %v3547, %v3659
        %v3661 = vand.u32 %v3660, 4294901760
        %v3662 = vsub.f32 %v3660, %v3661
        %v3663 = vand.u32 %v3662, 4294901760
        %3664 = vmatpush.msra.mxu0 %v3663
        %v3665 = vand.u32 %v3546, 4294901760
        %v3666 = vsub.f32 %v3546, %v3665
        %v3667 = vand.u32 %v3666, 4294901760
        %v3668 = vsub.f32 %v3666, %v3667
        %v3669 = vand.u32 %v3668, 4294901760
        %3670 = vmatpush.msra.mxu0 %v3669
        %v3671 = vand.u32 %v3545, 4294901760
        %v3672 = vsub.f32 %v3545, %v3671
        %v3673 = vand.u32 %v3672, 4294901760
        %v3674 = vsub.f32 %v3672, %v3673
        %v3675 = vand.u32 %v3674, 4294901760
        %3676 = vmatpush.msra.mxu0 %v3675
        %v3677 = vand.u32 %v3544, 4294901760
        %v3678 = vsub.f32 %v3544, %v3677
        %v3679 = vand.u32 %v3678, 4294901760
        %v3680 = vsub.f32 %v3678, %v3679
        %v3681 = vand.u32 %v3680, 4294901760
        %3682 = vmatpush.msra.mxu0 %v3681
        %v3683 = vand.u32 %v3543, 4294901760
        %v3684 = vsub.f32 %v3543, %v3683
        %v3685 = vand.u32 %v3684, 4294901760
        %v3686 = vsub.f32 %v3684, %v3685
        %v3687 = vand.u32 %v3686, 4294901760
        %3688 = vmatpush.msra.mxu0 %v3687
        %v3689 = vand.u32 %v3542, 4294901760
        %v3690 = vsub.f32 %v3542, %v3689
        %v3691 = vand.u32 %v3690, 4294901760
        %v3692 = vsub.f32 %v3690, %v3691
        %v3693 = vand.u32 %v3692, 4294901760
        %3694 = vmatpush.msra.mxu0 %v3693
        %v3695 = vand.u32 %v2814, 4294901760
        %3696 = vmatmul.f32.gmra.mxu0 %v3695
        %v3697 = vpop.f32.mrf.mxu0
        %v3698 = vadd.f32 %v3597, %v3697
        %3699 = vdwg.mxu0
        %v3700 = vand.u32 %v3557, 4294901760
        %v3701 = vsub.f32 %v3557, %v3700
        %3702 = vmatpush.msra.mxu0 %v3701
        %v3703 = vand.u32 %v3556, 4294901760
        %v3704 = vsub.f32 %v3556, %v3703
        %3705 = vmatpush.msra.mxu0 %v3704
        %v3706 = vand.u32 %v3555, 4294901760
        %v3707 = vsub.f32 %v3555, %v3706
        %3708 = vmatpush.msra.mxu0 %v3707
        %v3709 = vand.u32 %v3554, 4294901760
        %v3710 = vsub.f32 %v3554, %v3709
        %3711 = vmatpush.msra.mxu0 %v3710
        %v3712 = vand.u32 %v3553, 4294901760
        %v3713 = vsub.f32 %v3553, %v3712
        %3714 = vmatpush.msra.mxu0 %v3713
        %v3715 = vand.u32 %v3552, 4294901760
        %v3716 = vsub.f32 %v3552, %v3715
        %3717 = vmatpush.msra.mxu0 %v3716
        %v3718 = vand.u32 %v3551, 4294901760
        %v3719 = vsub.f32 %v3551, %v3718
        %3720 = vmatpush.msra.mxu0 %v3719
        %v3721 = vand.u32 %v3550, 4294901760
        %v3722 = vsub.f32 %v3550, %v3721
        %3723 = vmatpush.msra.mxu0 %v3722
        %v3724 = vand.u32 %v3549, 4294901760
        %v3725 = vsub.f32 %v3549, %v3724
        %3726 = vmatpush.msra.mxu0 %v3725
        %v3727 = vand.u32 %v3548, 4294901760
        %v3728 = vsub.f32 %v3548, %v3727
        %3729 = vmatpush.msra.mxu0 %v3728
        %v3730 = vand.u32 %v3547, 4294901760
        %v3731 = vsub.f32 %v3547, %v3730
        %3732 = vmatpush.msra.mxu0 %v3731
        %v3733 = vand.u32 %v3546, 4294901760
        %v3734 = vsub.f32 %v3546, %v3733
        %3735 = vmatpush.msra.mxu0 %v3734
        %v3736 = vand.u32 %v3545, 4294901760
        %v3737 = vsub.f32 %v3545, %v3736
        %3738 = vmatpush.msra.mxu0 %v3737
        %v3739 = vand.u32 %v3544, 4294901760
        %v3740 = vsub.f32 %v3544, %v3739
        %3741 = vmatpush.msra.mxu0 %v3740
        %v3742 = vand.u32 %v3543, 4294901760
        %v3743 = vsub.f32 %v3543, %v3742
        %3744 = vmatpush.msra.mxu0 %v3743
        %v3745 = vand.u32 %v3542, 4294901760
        %v3746 = vsub.f32 %v3542, %v3745
        %3747 = vmatpush.msra.mxu0 %v3746
        %v3748 = vand.u32 %v2814, 4294901760
        %v3749 = vsub.f32 %v2814, %v3748
        %3750 = vmatmul.f32.gmra.mxu0 %v3749
        %v3751 = vpop.f32.mrf.mxu0
        %v3752 = vadd.f32 %v3698, %v3751
        %3753 = vdwg.mxu0
        %v3754 = vand.u32 %v3557, 4294901760
        %3755 = vmatpush.msra.mxu0 %v3754
        %v3756 = vand.u32 %v3556, 4294901760
        %3757 = vmatpush.msra.mxu0 %v3756
        %v3758 = vand.u32 %v3555, 4294901760
        %3759 = vmatpush.msra.mxu0 %v3758
        %v3760 = vand.u32 %v3554, 4294901760
        %3761 = vmatpush.msra.mxu0 %v3760
        %v3762 = vand.u32 %v3553, 4294901760
        %3763 = vmatpush.msra.mxu0 %v3762
        %v3764 = vand.u32 %v3552, 4294901760
        %3765 = vmatpush.msra.mxu0 %v3764
        %v3766 = vand.u32 %v3551, 4294901760
        %3767 = vmatpush.msra.mxu0 %v3766
        %v3768 = vand.u32 %v3550, 4294901760
        %3769 = vmatpush.msra.mxu0 %v3768
        %v3770 = vand.u32 %v3549, 4294901760
        %3771 = vmatpush.msra.mxu0 %v3770
        %v3772 = vand.u32 %v3548, 4294901760
        %3773 = vmatpush.msra.mxu0 %v3772
        %v3774 = vand.u32 %v3547, 4294901760
        %3775 = vmatpush.msra.mxu0 %v3774
        %v3776 = vand.u32 %v3546, 4294901760
        %3777 = vmatpush.msra.mxu0 %v3776
        %v3778 = vand.u32 %v3545, 4294901760
        %3779 = vmatpush.msra.mxu0 %v3778
        %v3780 = vand.u32 %v3544, 4294901760
        %3781 = vmatpush.msra.mxu0 %v3780
        %v3782 = vand.u32 %v3543, 4294901760
        %3783 = vmatpush.msra.mxu0 %v3782
        %v3784 = vand.u32 %v3542, 4294901760
        %3785 = vmatpush.msra.mxu0 %v3784
        %v3786 = vand.u32 %v2814, 4294901760
        %v3787 = vsub.f32 %v2814, %v3786
        %v3788 = vand.u32 %v3787, 4294901760
        %3789 = vmatmul.f32.gmra.mxu0 %v3788
        %v3790 = vpop.f32.mrf.mxu0
        %v3791 = vadd.f32 %v3752, %v3790
        %3792 = vdwg.mxu0
        %v3793 = vand.u32 %v3557, 4294901760
        %v3794 = vsub.f32 %v3557, %v3793
        %v3795 = vand.u32 %v3794, 4294901760
        %3796 = vmatpush.msra.mxu0 %v3795
        %v3797 = vand.u32 %v3556, 4294901760
        %v3798 = vsub.f32 %v3556, %v3797
        %v3799 = vand.u32 %v3798, 4294901760
        %3800 = vmatpush.msra.mxu0 %v3799
        %v3801 = vand.u32 %v3555, 4294901760
        %v3802 = vsub.f32 %v3555, %v3801
        %v3803 = vand.u32 %v3802, 4294901760
        %3804 = vmatpush.msra.mxu0 %v3803
        %v3805 = vand.u32 %v3554, 4294901760
        %v3806 = vsub.f32 %v3554, %v3805
        %v3807 = vand.u32 %v3806, 4294901760
        %3808 = vmatpush.msra.mxu0 %v3807
        %v3809 = vand.u32 %v3553, 4294901760
        %v3810 = vsub.f32 %v3553, %v3809
        %v3811 = vand.u32 %v3810, 4294901760
        %3812 = vmatpush.msra.mxu0 %v3811
        %v3813 = vand.u32 %v3552, 4294901760
        %v3814 = vsub.f32 %v3552, %v3813
        %v3815 = vand.u32 %v3814, 4294901760
        %3816 = vmatpush.msra.mxu0 %v3815
        %v3817 = vand.u32 %v3551, 4294901760
        %v3818 = vsub.f32 %v3551, %v3817
        %v3819 = vand.u32 %v3818, 4294901760
        %3820 = vmatpush.msra.mxu0 %v3819
        %v3821 = vand.u32 %v3550, 4294901760
        %v3822 = vsub.f32 %v3550, %v3821
        %v3823 = vand.u32 %v3822, 4294901760
        %3824 = vmatpush.msra.mxu0 %v3823
        %v3825 = vand.u32 %v3549, 4294901760
        %v3826 = vsub.f32 %v3549, %v3825
        %v3827 = vand.u32 %v3826, 4294901760
        %3828 = vmatpush.msra.mxu0 %v3827
        %v3829 = vand.u32 %v3548, 4294901760
        %v3830 = vsub.f32 %v3548, %v3829
        %v3831 = vand.u32 %v3830, 4294901760
        %3832 = vmatpush.msra.mxu0 %v3831
        %v3833 = vand.u32 %v3547, 4294901760
        %v3834 = vsub.f32 %v3547, %v3833
        %v3835 = vand.u32 %v3834, 4294901760
        %3836 = vmatpush.msra.mxu0 %v3835
        %v3837 = vand.u32 %v3546, 4294901760
        %v3838 = vsub.f32 %v3546, %v3837
        %v3839 = vand.u32 %v3838, 4294901760
        %3840 = vmatpush.msra.mxu0 %v3839
        %v3841 = vand.u32 %v3545, 4294901760
        %v3842 = vsub.f32 %v3545, %v3841
        %v3843 = vand.u32 %v3842, 4294901760
        %3844 = vmatpush.msra.mxu0 %v3843
        %v3845 = vand.u32 %v3544, 4294901760
        %v3846 = vsub.f32 %v3544, %v3845
        %v3847 = vand.u32 %v3846, 4294901760
        %3848 = vmatpush.msra.mxu0 %v3847
        %v3849 = vand.u32 %v3543, 4294901760
        %v3850 = vsub.f32 %v3543, %v3849
        %v3851 = vand.u32 %v3850, 4294901760
        %3852 = vmatpush.msra.mxu0 %v3851
        %v3853 = vand.u32 %v3542, 4294901760
        %v3854 = vsub.f32 %v3542, %v3853
        %v3855 = vand.u32 %v3854, 4294901760
        %3856 = vmatpush.msra.mxu0 %v3855
        %v3857 = vand.u32 %v2814, 4294901760
        %3858 = vmatmul.f32.gmra.mxu0 %v3857
        %v3859 = vpop.f32.mrf.mxu0
        %v3860 = vadd.f32 %v3791, %v3859
        %3861 = vdwg.mxu0
        %v3862 = vand.u32 %v3557, 4294901760
        %3863 = vmatpush.msra.mxu0 %v3862
        %v3864 = vand.u32 %v3556, 4294901760
        %3865 = vmatpush.msra.mxu0 %v3864
        %v3866 = vand.u32 %v3555, 4294901760
        %3867 = vmatpush.msra.mxu0 %v3866
        %v3868 = vand.u32 %v3554, 4294901760
        %3869 = vmatpush.msra.mxu0 %v3868
        %v3870 = vand.u32 %v3553, 4294901760
        %3871 = vmatpush.msra.mxu0 %v3870
        %v3872 = vand.u32 %v3552, 4294901760
        %3873 = vmatpush.msra.mxu0 %v3872
        %v3874 = vand.u32 %v3551, 4294901760
        %3875 = vmatpush.msra.mxu0 %v3874
        %v3876 = vand.u32 %v3550, 4294901760
        %3877 = vmatpush.msra.mxu0 %v3876
        %v3878 = vand.u32 %v3549, 4294901760
        %3879 = vmatpush.msra.mxu0 %v3878
        %v3880 = vand.u32 %v3548, 4294901760
        %3881 = vmatpush.msra.mxu0 %v3880
        %v3882 = vand.u32 %v3547, 4294901760
        %3883 = vmatpush.msra.mxu0 %v3882
        %v3884 = vand.u32 %v3546, 4294901760
        %3885 = vmatpush.msra.mxu0 %v3884
        %v3886 = vand.u32 %v3545, 4294901760
        %3887 = vmatpush.msra.mxu0 %v3886
        %v3888 = vand.u32 %v3544, 4294901760
        %3889 = vmatpush.msra.mxu0 %v3888
        %v3890 = vand.u32 %v3543, 4294901760
        %3891 = vmatpush.msra.mxu0 %v3890
        %v3892 = vand.u32 %v3542, 4294901760
        %3893 = vmatpush.msra.mxu0 %v3892
        %v3894 = vand.u32 %v2814, 4294901760
        %3895 = vmatmul.f32.gmra.mxu0 %v3894
        %v3896 = vpop.f32.mrf.mxu0
        %v3897 = vadd.f32 %v3860, %v3896
        %3898 = vdwg.mxu0
        %v3899 = vmul.f32 %v3184, %v2814
        %v3900 = vld [vmem:[%s18] sm:$0xff]
        %v3901 = vld [vmem:[%s18 + $0x8] sm:$0xff]
        %v3902 = vperm.slane %v3900, 0
        %v3903 = vmul.f32 %v3184, %v3902
        %v3904 = vmul.f32 %v3903, 1.442695
        %v3905 = vpow.pop %v3904
        %v3906 = vperm.slane %v3900, 1
        %v3907 = vmul.f32 %v3184, %v3906
        %v3908 = vmul.f32 %v3907, 1.442695
        %v3909 = vpow.pop %v3908
        %v3910 = vperm.slane %v3900, 2
        %v3911 = vmul.f32 %v3184, %v3910
        %v3912 = vmul.f32 %v3911, 1.442695
        %v3913 = vpow.pop %v3912
        %v3914 = vperm.slane %v3900, 3
        %v3915 = vmul.f32 %v3184, %v3914
        %v3916 = vmul.f32 %v3915, 1.442695
        %v3917 = vpow.pop %v3916
        %v3918 = vperm.slane %v3900, 4
        %v3919 = vmul.f32 %v3184, %v3918
        %v3920 = vmul.f32 %v3919, 1.442695
        %v3921 = vpow.pop %v3920
        %v3922 = vperm.slane %v3900, 5
        %v3923 = vmul.f32 %v3184, %v3922
        %v3924 = vmul.f32 %v3923, 1.442695
        %v3925 = vpow.pop %v3924
        %v3926 = vperm.slane %v3900, 6
        %v3927 = vmul.f32 %v3184, %v3926
        %v3928 = vmul.f32 %v3927, 1.442695
        %v3929 = vpow.pop %v3928
        %v3930 = vperm.slane %v3900, 7
        %v3931 = vmul.f32 %v3184, %v3930
        %v3932 = vmul.f32 %v3931, 1.442695
        %v3933 = vpow.pop %v3932
        %v3934 = vperm.slane %v3901, 0
        %v3935 = vmul.f32 %v3184, %v3934
        %v3936 = vmul.f32 %v3935, 1.442695
        %v3937 = vpow.pop %v3936
        %v3938 = vperm.slane %v3901, 1
        %v3939 = vmul.f32 %v3184, %v3938
        %v3940 = vmul.f32 %v3939, 1.442695
        %v3941 = vpow.pop %v3940
        %v3942 = vperm.slane %v3901, 2
        %v3943 = vmul.f32 %v3184, %v3942
        %v3944 = vmul.f32 %v3943, 1.442695
        %v3945 = vpow.pop %v3944
        %v3946 = vperm.slane %v3901, 3
        %v3947 = vmul.f32 %v3184, %v3946
        %v3948 = vmul.f32 %v3947, 1.442695
        %v3949 = vpow.pop %v3948
        %v3950 = vperm.slane %v3901, 4
        %v3951 = vmul.f32 %v3184, %v3950
        %v3952 = vmul.f32 %v3951, 1.442695
        %v3953 = vpow.pop %v3952
        %v3954 = vperm.slane %v3901, 5
        %v3955 = vmul.f32 %v3184, %v3954
        %v3956 = vmul.f32 %v3955, 1.442695
        %v3957 = vpow.pop %v3956
        %v3958 = vperm.slane %v3901, 6
        %v3959 = vmul.f32 %v3184, %v3958
        %v3960 = vmul.f32 %v3959, 1.442695
        %v3961 = vpow.pop %v3960
        %v3962 = vperm.slane %v3901, 7
        %v3963 = vmul.f32 %v3184, %v3962
        %v3964 = vmul.f32 %v3963, 1.442695
        %v3965 = vpow.pop %v3964
        %3966 = vst [vmem:[#allocation2] sm:$0xff] %v3905
        %3967 = vst [vmem:[#allocation2 + $0x8] sm:$0xff] %v3909
        %3968 = vst [vmem:[#allocation2 + $0x10] sm:$0xff] %v3913
        %3969 = vst [vmem:[#allocation2 + $0x18] sm:$0xff] %v3917
        %3970 = vst [vmem:[#allocation2 + $0x20] sm:$0xff] %v3921
        %3971 = vst [vmem:[#allocation2 + $0x28] sm:$0xff] %v3925
        %3972 = vst [vmem:[#allocation2 + $0x30] sm:$0xff] %v3929
        %3973 = vst [vmem:[#allocation2 + $0x38] sm:$0xff] %v3933
        %3974 = vst [vmem:[#allocation2 + $0x40] sm:$0xff] %v3937
        %3975 = vst [vmem:[#allocation2 + $0x48] sm:$0xff] %v3941
        %3976 = vst [vmem:[#allocation2 + $0x50] sm:$0xff] %v3945
        %3977 = vst [vmem:[#allocation2 + $0x58] sm:$0xff] %v3949
        %3978 = vst [vmem:[#allocation2 + $0x60] sm:$0xff] %v3953
        %3979 = vst [vmem:[#allocation2 + $0x68] sm:$0xff] %v3957
        %3980 = vst [vmem:[#allocation2 + $0x70] sm:$0xff] %v3961
        %3981 = vst [vmem:[#allocation2 + $0x78] sm:$0xff] %v3965
        %3983 = vset.pattern.permute.xlu0 0
        %3984 = vperm.xlu0 %3983, %v3540
        %v3985 = vpop.permute.xlu0 %3984
        %v3987 = vmul.f32 %v3985, %v3899
        %3988 = vset.pattern.permute.xlu0 1
        %3989 = vperm.xlu0 %3988, %v3540
        %v3990 = vpop.permute.xlu0 %3989
        %v3992 = vmul.f32 %v3990, %v3899
        %3993 = vset.pattern.permute.xlu0 2
        %3994 = vperm.xlu0 %3993, %v3540
        %v3995 = vpop.permute.xlu0 %3994
        %v3997 = vmul.f32 %v3995, %v3899
        %3998 = vset.pattern.permute.xlu0 3
        %3999 = vperm.xlu0 %3998, %v3540
        %v4000 = vpop.permute.xlu0 %3999
        %v4002 = vmul.f32 %v4000, %v3899
        %4003 = vset.pattern.permute.xlu0 4
        %4004 = vperm.xlu0 %4003, %v3540
        %v4005 = vpop.permute.xlu0 %4004
        %v4007 = vmul.f32 %v4005, %v3899
        %4008 = vset.pattern.permute.xlu0 5
        %4009 = vperm.xlu0 %4008, %v3540
        %v4010 = vpop.permute.xlu0 %4009
        %v4012 = vmul.f32 %v4010, %v3899
        %4013 = vset.pattern.permute.xlu0 6
        %4014 = vperm.xlu0 %4013, %v3540
        %v4015 = vpop.permute.xlu0 %4014
        %v4017 = vmul.f32 %v4015, %v3899
        %4018 = vset.pattern.permute.xlu0 7
        %4019 = vperm.xlu0 %4018, %v3540
        %v4020 = vpop.permute.xlu0 %4019
        %v4022 = vmul.f32 %v4020, %v3899
        %4023 = vset.pattern.permute.xlu0 8
        %4024 = vperm.xlu0 %4023, %v3540
        %v4025 = vpop.permute.xlu0 %4024
        %v4027 = vmul.f32 %v4025, %v3899
        %4028 = vset.pattern.permute.xlu0 9
        %4029 = vperm.xlu0 %4028, %v3540
        %v4030 = vpop.permute.xlu0 %4029
        %v4032 = vmul.f32 %v4030, %v3899
        %4033 = vset.pattern.permute.xlu0 10
        %4034 = vperm.xlu0 %4033, %v3540
        %v4035 = vpop.permute.xlu0 %4034
        %v4037 = vmul.f32 %v4035, %v3899
        %4038 = vset.pattern.permute.xlu0 11
        %4039 = vperm.xlu0 %4038, %v3540
        %v4040 = vpop.permute.xlu0 %4039
        %v4042 = vmul.f32 %v4040, %v3899
        %4043 = vset.pattern.permute.xlu0 12
        %4044 = vperm.xlu0 %4043, %v3540
        %v4045 = vpop.permute.xlu0 %4044
        %v4047 = vmul.f32 %v4045, %v3899
        %4048 = vset.pattern.permute.xlu0 13
        %4049 = vperm.xlu0 %4048, %v3540
        %v4050 = vpop.permute.xlu0 %4049
        %v4052 = vmul.f32 %v4050, %v3899
        %4053 = vset.pattern.permute.xlu0 14
        %4054 = vperm.xlu0 %4053, %v3540
        %v4055 = vpop.permute.xlu0 %4054
        %v4057 = vmul.f32 %v4055, %v3899
        %4058 = vset.pattern.permute.xlu0 15
        %4059 = vperm.xlu0 %4058, %v3540
        %v4060 = vpop.permute.xlu0 %4059
        %v4062 = vmul.f32 %v4060, %v3899
        %4063 = vst [vmem:[#allocation3] sm:$0xff] %v3987
        %4064 = vst [vmem:[#allocation3 + $0x8] sm:$0xff] %v3992
        %4065 = vst [vmem:[#allocation3 + $0x10] sm:$0xff] %v3997
        %4066 = vst [vmem:[#allocation3 + $0x18] sm:$0xff] %v4002
        %4067 = vst [vmem:[#allocation3 + $0x20] sm:$0xff] %v4007
        %4068 = vst [vmem:[#allocation3 + $0x28] sm:$0xff] %v4012
        %4069 = vst [vmem:[#allocation3 + $0x30] sm:$0xff] %v4017
        %4070 = vst [vmem:[#allocation3 + $0x38] sm:$0xff] %v4022
        %4071 = vst [vmem:[#allocation3 + $0x40] sm:$0xff] %v4027
        %4072 = vst [vmem:[#allocation3 + $0x48] sm:$0xff] %v4032
        %4073 = vst [vmem:[#allocation3 + $0x50] sm:$0xff] %v4037
        %4074 = vst [vmem:[#allocation3 + $0x58] sm:$0xff] %v4042
        %4075 = vst [vmem:[#allocation3 + $0x60] sm:$0xff] %v4047
        %4076 = vst [vmem:[#allocation3 + $0x68] sm:$0xff] %v4052
        %4077 = vst [vmem:[#allocation3 + $0x70] sm:$0xff] %v4057
        %4078 = vst [vmem:[#allocation3 + $0x78] sm:$0xff] %v4062
        %v4079 = vld [vmem:[%s2618] ss:$8 sm:$0xf]
        %v4080 = vld [vmem:[%s2618] ss:$8 sm:$0xf0]
        %v4081 = vor.u32 %v4079, %v4080
        %v4082 = vld [vmem:[%s2622] ss:$8 sm:$0xf]
        %v4083 = vld [vmem:[%s2622] ss:$8 sm:$0xf0]
        %v4084 = vor.u32 %v4082, %v4083
        %v4085 = vmul.f32 %v4081, 0.0
        %v4086 = vmul.f32 %v4084, 0.0
        %v4087 = vld [vmem:[%s2628] ss:$8 sm:$0xf]
        %v4088 = vld [vmem:[%s2628] ss:$8 sm:$0xf0]
        %v4089 = vor.u32 %v4087, %v4088
        %v4090 = vld [vmem:[%s2632] ss:$8 sm:$0xf]
        %v4091 = vld [vmem:[%s2632] ss:$8 sm:$0xf0]
        %v4092 = vor.u32 %v4090, %v4091
        %v4093 = vadd.f32 %v4085, %v4089
        %v4094 = vadd.f32 %v4086, %v4092
        %4095 = vst [vmem:[%s2638] ss:$8 sm:$0xf] %v4093
        %4096 = vst [vmem:[%s2638] ss:$8 sm:$0xf0] %v4093
        %4097 = vst [vmem:[%s2641] ss:$8 sm:$0xf] %v4094
        %4098 = vst [vmem:[%s2641] ss:$8 sm:$0xf0] %v4094
        %v4099 = vld [vmem:[%s2592] ss:$8 sm:$0xf]
        %v4100 = vld [vmem:[%s2592] ss:$8 sm:$0xf0]
        %v4101 = vor.u32 %v4099, %v4100
        %v4102 = vld [vmem:[%s2596] ss:$8 sm:$0xf]
        %v4103 = vld [vmem:[%s2596] ss:$8 sm:$0xf0]
        %v4104 = vor.u32 %v4102, %v4103
        %v4105 = vmul.f32 %v4101, %v4093
        %v4106 = vmul.f32 %v4104, %v4094
        %v4107 = vld [vmem:[%s2602] ss:$8 sm:$0xf]
        %v4108 = vld [vmem:[%s2602] ss:$8 sm:$0xf0]
        %v4109 = vor.u32 %v4107, %v4108
        %v4110 = vld [vmem:[%s2606] ss:$8 sm:$0xf]
        %v4111 = vld [vmem:[%s2606] ss:$8 sm:$0xf0]
        %v4112 = vor.u32 %v4110, %v4111
        %v4113 = vadd.f32 %v4105, %v4109
        %v4114 = vadd.f32 %v4106, %v4112
        %4115 = vst [vmem:[%s2612] ss:$8 sm:$0xf] %v4113
        %4116 = vst [vmem:[%s2612] ss:$8 sm:$0xf0] %v4113
        %4117 = vst [vmem:[%s2615] ss:$8 sm:$0xf] %v4114
        %4118 = vst [vmem:[%s2615] ss:$8 sm:$0xf0] %v4114
        %v4119 = vld [vmem:[%s2566] ss:$8 sm:$0xf]
        %v4120 = vld [vmem:[%s2566] ss:$8 sm:$0xf0]
        %v4121 = vor.u32 %v4119, %v4120
        %v4122 = vld [vmem:[%s2570] ss:$8 sm:$0xf]
        %v4123 = vld [vmem:[%s2570] ss:$8 sm:$0xf0]
        %v4124 = vor.u32 %v4122, %v4123
        %v4125 = vmul.f32 %v4121, %v4113
        %v4126 = vmul.f32 %v4124, %v4114
        %v4127 = vld [vmem:[%s2576] ss:$8 sm:$0xf]
        %v4128 = vld [vmem:[%s2576] ss:$8 sm:$0xf0]
        %v4129 = vor.u32 %v4127, %v4128
        %v4130 = vld [vmem:[%s2580] ss:$8 sm:$0xf]
        %v4131 = vld [vmem:[%s2580] ss:$8 sm:$0xf0]
        %v4132 = vor.u32 %v4130, %v4131
        %v4133 = vadd.f32 %v4125, %v4129
        %v4134 = vadd.f32 %v4126, %v4132
        %4135 = vst [vmem:[%s2586] ss:$8 sm:$0xf] %v4133
        %4136 = vst [vmem:[%s2586] ss:$8 sm:$0xf0] %v4133
        %4137 = vst [vmem:[%s2589] ss:$8 sm:$0xf] %v4134
        %4138 = vst [vmem:[%s2589] ss:$8 sm:$0xf0] %v4134
        %v4139 = vld [vmem:[%s2540] ss:$8 sm:$0xf]
        %v4140 = vld [vmem:[%s2540] ss:$8 sm:$0xf0]
        %v4141 = vor.u32 %v4139, %v4140
        %v4142 = vld [vmem:[%s2544] ss:$8 sm:$0xf]
        %v4143 = vld [vmem:[%s2544] ss:$8 sm:$0xf0]
        %v4144 = vor.u32 %v4142, %v4143
        %v4145 = vmul.f32 %v4141, %v4133
        %v4146 = vmul.f32 %v4144, %v4134
        %v4147 = vld [vmem:[%s2550] ss:$8 sm:$0xf]
        %v4148 = vld [vmem:[%s2550] ss:$8 sm:$0xf0]
        %v4149 = vor.u32 %v4147, %v4148
        %v4150 = vld [vmem:[%s2554] ss:$8 sm:$0xf]
        %v4151 = vld [vmem:[%s2554] ss:$8 sm:$0xf0]
        %v4152 = vor.u32 %v4150, %v4151
        %v4153 = vadd.f32 %v4145, %v4149
        %v4154 = vadd.f32 %v4146, %v4152
        %4155 = vst [vmem:[%s2560] ss:$8 sm:$0xf] %v4153
        %4156 = vst [vmem:[%s2560] ss:$8 sm:$0xf0] %v4153
        %4157 = vst [vmem:[%s2563] ss:$8 sm:$0xf] %v4154
        %4158 = vst [vmem:[%s2563] ss:$8 sm:$0xf0] %v4154
        %v4159 = vld [vmem:[%s2514] ss:$8 sm:$0xf]
        %v4160 = vld [vmem:[%s2514] ss:$8 sm:$0xf0]
        %v4161 = vor.u32 %v4159, %v4160
        %v4162 = vld [vmem:[%s2518] ss:$8 sm:$0xf]
        %v4163 = vld [vmem:[%s2518] ss:$8 sm:$0xf0]
        %v4164 = vor.u32 %v4162, %v4163
        %v4165 = vmul.f32 %v4161, %v4153
        %v4166 = vmul.f32 %v4164, %v4154
        %v4167 = vld [vmem:[%s2524] ss:$8 sm:$0xf]
        %v4168 = vld [vmem:[%s2524] ss:$8 sm:$0xf0]
        %v4169 = vor.u32 %v4167, %v4168
        %v4170 = vld [vmem:[%s2528] ss:$8 sm:$0xf]
        %v4171 = vld [vmem:[%s2528] ss:$8 sm:$0xf0]
        %v4172 = vor.u32 %v4170, %v4171
        %v4173 = vadd.f32 %v4165, %v4169
        %v4174 = vadd.f32 %v4166, %v4172
        %4175 = vst [vmem:[%s2534] ss:$8 sm:$0xf] %v4173
        %4176 = vst [vmem:[%s2534] ss:$8 sm:$0xf0] %v4173
        %4177 = vst [vmem:[%s2537] ss:$8 sm:$0xf] %v4174
        %4178 = vst [vmem:[%s2537] ss:$8 sm:$0xf0] %v4174
        %v4179 = vld [vmem:[%s2488] ss:$8 sm:$0xf]
        %v4180 = vld [vmem:[%s2488] ss:$8 sm:$0xf0]
        %v4181 = vor.u32 %v4179, %v4180
        %v4182 = vld [vmem:[%s2492] ss:$8 sm:$0xf]
        %v4183 = vld [vmem:[%s2492] ss:$8 sm:$0xf0]
        %v4184 = vor.u32 %v4182, %v4183
        %v4185 = vmul.f32 %v4181, %v4173
        %v4186 = vmul.f32 %v4184, %v4174
        %v4187 = vld [vmem:[%s2498] ss:$8 sm:$0xf]
        %v4188 = vld [vmem:[%s2498] ss:$8 sm:$0xf0]
        %v4189 = vor.u32 %v4187, %v4188
        %v4190 = vld [vmem:[%s2502] ss:$8 sm:$0xf]
        %v4191 = vld [vmem:[%s2502] ss:$8 sm:$0xf0]
        %v4192 = vor.u32 %v4190, %v4191
        %v4193 = vadd.f32 %v4185, %v4189
        %v4194 = vadd.f32 %v4186, %v4192
        %4195 = vst [vmem:[%s2508] ss:$8 sm:$0xf] %v4193
        %4196 = vst [vmem:[%s2508] ss:$8 sm:$0xf0] %v4193
        %4197 = vst [vmem:[%s2511] ss:$8 sm:$0xf] %v4194
        %4198 = vst [vmem:[%s2511] ss:$8 sm:$0xf0] %v4194
        %v4199 = vld [vmem:[%s2462] ss:$8 sm:$0xf]
        %v4200 = vld [vmem:[%s2462] ss:$8 sm:$0xf0]
        %v4201 = vor.u32 %v4199, %v4200
        %v4202 = vld [vmem:[%s2466] ss:$8 sm:$0xf]
        %v4203 = vld [vmem:[%s2466] ss:$8 sm:$0xf0]
        %v4204 = vor.u32 %v4202, %v4203
        %v4205 = vmul.f32 %v4201, %v4193
        %v4206 = vmul.f32 %v4204, %v4194
        %v4207 = vld [vmem:[%s2472] ss:$8 sm:$0xf]
        %v4208 = vld [vmem:[%s2472] ss:$8 sm:$0xf0]
        %v4209 = vor.u32 %v4207, %v4208
        %v4210 = vld [vmem:[%s2476] ss:$8 sm:$0xf]
        %v4211 = vld [vmem:[%s2476] ss:$8 sm:$0xf0]
        %v4212 = vor.u32 %v4210, %v4211
        %v4213 = vadd.f32 %v4205, %v4209
        %v4214 = vadd.f32 %v4206, %v4212
        %4215 = vst [vmem:[%s2482] ss:$8 sm:$0xf] %v4213
        %4216 = vst [vmem:[%s2482] ss:$8 sm:$0xf0] %v4213
        %4217 = vst [vmem:[%s2485] ss:$8 sm:$0xf] %v4214
        %4218 = vst [vmem:[%s2485] ss:$8 sm:$0xf0] %v4214
        %v4219 = vld [vmem:[#allocation2] ss:$8 sm:$0xf]
        %v4220 = vld [vmem:[#allocation2] ss:$8 sm:$0xf0]
        %v4221 = vor.u32 %v4219, %v4220
        %v4222 = vld [vmem:[%s2442] ss:$8 sm:$0xf]
        %v4223 = vld [vmem:[%s2442] ss:$8 sm:$0xf0]
        %v4224 = vor.u32 %v4222, %v4223
        %v4225 = vmul.f32 %v4221, %v4213
        %v4226 = vmul.f32 %v4224, %v4214
        %v4227 = vld [vmem:[#allocation3] ss:$8 sm:$0xf]
        %v4228 = vld [vmem:[#allocation3] ss:$8 sm:$0xf0]
        %v4229 = vor.u32 %v4227, %v4228
        %v4230 = vld [vmem:[%s2451] ss:$8 sm:$0xf]
        %v4231 = vld [vmem:[%s2451] ss:$8 sm:$0xf0]
        %v4232 = vor.u32 %v4230, %v4231
        %v4233 = vadd.f32 %v4225, %v4229
        %v4234 = vadd.f32 %v4226, %v4232
        %4235 = vst [vmem:[#allocation4] ss:$8 sm:$0xf] %v4233
        %4236 = vst [vmem:[#allocation4] ss:$8 sm:$0xf0] %v4233
        %4237 = vst [vmem:[%s2459] ss:$8 sm:$0xf] %v4234
        %4238 = vst [vmem:[%s2459] ss:$8 sm:$0xf0] %v4234
        %v4239 = vld [vmem:[#allocation4] sm:$0xff]
        %v4240 = vld [vmem:[#allocation4 + $0x8] sm:$0xff]
        %v4241 = vld [vmem:[#allocation4 + $0x10] sm:$0xff]
        %v4242 = vld [vmem:[#allocation4 + $0x18] sm:$0xff]
        %v4243 = vld [vmem:[#allocation4 + $0x20] sm:$0xff]
        %v4244 = vld [vmem:[#allocation4 + $0x28] sm:$0xff]
        %v4245 = vld [vmem:[#allocation4 + $0x30] sm:$0xff]
        %v4246 = vld [vmem:[#allocation4 + $0x38] sm:$0xff]
        %v4247 = vld [vmem:[#allocation4 + $0x40] sm:$0xff]
        %v4248 = vld [vmem:[#allocation4 + $0x48] sm:$0xff]
        %v4249 = vld [vmem:[#allocation4 + $0x50] sm:$0xff]
        %v4250 = vld [vmem:[#allocation4 + $0x58] sm:$0xff]
        %v4251 = vld [vmem:[#allocation4 + $0x60] sm:$0xff]
        %v4252 = vld [vmem:[#allocation4 + $0x68] sm:$0xff]
        %v4253 = vld [vmem:[#allocation4 + $0x70] sm:$0xff]
        %v4254 = vld [vmem:[#allocation4 + $0x78] sm:$0xff]
        %v4255 = vld [vmem:[%s19] sm:$0x1]
        %v4257 = vperm.slane %v4255, 0
        %v4259 = vmul.f32 %v4257, %v2814
        %4261 = vset.pattern.permute.xlu0 0
        %4262 = vperm.xlu0 %4261, %v3897
        %v4263 = vpop.permute.xlu0 %4262
        %v4265 = vmul.f32 %v4263, %v4239
        %v4266 = vadd.f32 %v4259, %v4265
        %4267 = vset.pattern.permute.xlu0 1
        %4268 = vperm.xlu0 %4267, %v3897
        %v4269 = vpop.permute.xlu0 %4268
        %v4271 = vmul.f32 %v4269, %v4240
        %v4272 = vadd.f32 %v4266, %v4271
        %4273 = vset.pattern.permute.xlu0 2
        %4274 = vperm.xlu0 %4273, %v3897
        %v4275 = vpop.permute.xlu0 %4274
        %v4277 = vmul.f32 %v4275, %v4241
        %v4278 = vadd.f32 %v4272, %v4277
        %4279 = vset.pattern.permute.xlu0 3
        %4280 = vperm.xlu0 %4279, %v3897
        %v4281 = vpop.permute.xlu0 %4280
        %v4283 = vmul.f32 %v4281, %v4242
        %v4284 = vadd.f32 %v4278, %v4283
        %4285 = vset.pattern.permute.xlu0 4
        %4286 = vperm.xlu0 %4285, %v3897
        %v4287 = vpop.permute.xlu0 %4286
        %v4289 = vmul.f32 %v4287, %v4243
        %v4290 = vadd.f32 %v4284, %v4289
        %4291 = vset.pattern.permute.xlu0 5
        %4292 = vperm.xlu0 %4291, %v3897
        %v4293 = vpop.permute.xlu0 %4292
        %v4295 = vmul.f32 %v4293, %v4244
        %v4296 = vadd.f32 %v4290, %v4295
        %4297 = vset.pattern.permute.xlu0 6
        %4298 = vperm.xlu0 %4297, %v3897
        %v4299 = vpop.permute.xlu0 %4298
        %v4301 = vmul.f32 %v4299, %v4245
        %v4302 = vadd.f32 %v4296, %v4301
        %4303 = vset.pattern.permute.xlu0 7
        %4304 = vperm.xlu0 %4303, %v3897
        %v4305 = vpop.permute.xlu0 %4304
        %v4307 = vmul.f32 %v4305, %v4246
        %v4308 = vadd.f32 %v4302, %v4307
        %4309 = vset.pattern.permute.xlu0 8
        %4310 = vperm.xlu0 %4309, %v3897
        %v4311 = vpop.permute.xlu0 %4310
        %v4313 = vmul.f32 %v4311, %v4247
        %v4314 = vadd.f32 %v4308, %v4313
        %4315 = vset.pattern.permute.xlu0 9
        %4316 = vperm.xlu0 %4315, %v3897
        %v4317 = vpop.permute.xlu0 %4316
        %v4319 = vmul.f32 %v4317, %v4248
        %v4320 = vadd.f32 %v4314, %v4319
        %4321 = vset.pattern.permute.xlu0 10
        %4322 = vperm.xlu0 %4321, %v3897
        %v4323 = vpop.permute.xlu0 %4322
        %v4325 = vmul.f32 %v4323, %v4249
        %v4326 = vadd.f32 %v4320, %v4325
        %4327 = vset.pattern.permute.xlu0 11
        %4328 = vperm.xlu0 %4327, %v3897
        %v4329 = vpop.permute.xlu0 %4328
        %v4331 = vmul.f32 %v4329, %v4250
        %v4332 = vadd.f32 %v4326, %v4331
        %4333 = vset.pattern.permute.xlu0 12
        %4334 = vperm.xlu0 %4333, %v3897
        %v4335 = vpop.permute.xlu0 %4334
        %v4337 = vmul.f32 %v4335, %v4251
        %v4338 = vadd.f32 %v4332, %v4337
        %4339 = vset.pattern.permute.xlu0 13
        %4340 = vperm.xlu0 %4339, %v3897
        %v4341 = vpop.permute.xlu0 %4340
        %v4343 = vmul.f32 %v4341, %v4252
        %v4344 = vadd.f32 %v4338, %v4343
        %4345 = vset.pattern.permute.xlu0 14
        %4346 = vperm.xlu0 %4345, %v3897
        %v4347 = vpop.permute.xlu0 %4346
        %v4349 = vmul.f32 %v4347, %v4253
        %v4350 = vadd.f32 %v4344, %v4349
        %4351 = vset.pattern.permute.xlu0 15
        %4352 = vperm.xlu0 %4351, %v3897
        %v4353 = vpop.permute.xlu0 %4352
        %v4355 = vmul.f32 %v4353, %v4254
        %v4356 = vadd.f32 %v4350, %v4355
        %v4357 = vsub.f32 0.0, %v1118
        %v4358 = vmul.f32 %v4357, 1.442695
        %v4359 = vpow.pop %v4358
        %v4360 = vadd.f32 %v4359, 1.0
        %v4361 = vrcp.pop %v4360
        %v4362 = vmul.f32 %v4360, %v4361
        %v4363 = vsub.f32 1.0, %v4362
        %v4364 = vmul.f32 %v4361, %v4363
        %v4365 = vadd.f32 %v4361, %v4364
        %vm4366 = vweird.f32 %v4360
        %vm4367 = vweird.f32 %v4361
        %vm4368 = vmor %vm4366, %vm4367
        %v4369 = vsel %vm4368, %v4361, %v4365
        %v4370 = vand.u32 2147483647, %v4360
        %vm4371 = vcmp.eq.f32.partialorder %v4370, 8.507059e+37
        %v4372 = vand.u32 %v4360, 2147483648
        %v4373 = vor.u32 1.1754944e-38, %v4372
        %v4374 = vsel %vm4371, %v4373, %v4369
        %v4375 = vmul.f32 1.0, %v4374
        %v4376 = vmul.f32 %v1118, %v4375
        %v4377 = vadd.f32 %v2761, %v4356
        %v4378 = vmul.f32 %v4377, %v4376
        %v4379 = vld [vmem:[%s3] sm:$0xff]
        %v4380 = vld [vmem:[%s3 + $0x8] sm:$0xff]
        %v4381 = vld [vmem:[%s3 + $0x10] sm:$0xff]
        %v4382 = vld [vmem:[%s3 + $0x18] sm:$0xff]
        %v4383 = vld [vmem:[%s3 + $0x20] sm:$0xff]
        %v4384 = vld [vmem:[%s3 + $0x28] sm:$0xff]
        %v4385 = vld [vmem:[%s3 + $0x30] sm:$0xff]
        %v4386 = vld [vmem:[%s3 + $0x38] sm:$0xff]
        %v4387 = vld [vmem:[%s3 + $0x40] sm:$0xff]
        %v4388 = vld [vmem:[%s3 + $0x48] sm:$0xff]
        %v4389 = vld [vmem:[%s3 + $0x50] sm:$0xff]
        %v4390 = vld [vmem:[%s3 + $0x58] sm:$0xff]
        %v4391 = vld [vmem:[%s3 + $0x60] sm:$0xff]
        %v4392 = vld [vmem:[%s3 + $0x68] sm:$0xff]
        %v4393 = vld [vmem:[%s3 + $0x70] sm:$0xff]
        %v4394 = vld [vmem:[%s3 + $0x78] sm:$0xff]
        %v4395 = vand.u32 %v4394, 4294901760
        %4396 = vmatpush.msra.mxu0 %v4395
        %v4397 = vand.u32 %v4393, 4294901760
        %4398 = vmatpush.msra.mxu0 %v4397
        %v4399 = vand.u32 %v4392, 4294901760
        %4400 = vmatpush.msra.mxu0 %v4399
        %v4401 = vand.u32 %v4391, 4294901760
        %4402 = vmatpush.msra.mxu0 %v4401
        %v4403 = vand.u32 %v4390, 4294901760
        %4404 = vmatpush.msra.mxu0 %v4403
        %v4405 = vand.u32 %v4389, 4294901760
        %4406 = vmatpush.msra.mxu0 %v4405
        %v4407 = vand.u32 %v4388, 4294901760
        %4408 = vmatpush.msra.mxu0 %v4407
        %v4409 = vand.u32 %v4387, 4294901760
        %4410 = vmatpush.msra.mxu0 %v4409
        %v4411 = vand.u32 %v4386, 4294901760
        %4412 = vmatpush.msra.mxu0 %v4411
        %v4413 = vand.u32 %v4385, 4294901760
        %4414 = vmatpush.msra.mxu0 %v4413
        %v4415 = vand.u32 %v4384, 4294901760
        %4416 = vmatpush.msra.mxu0 %v4415
        %v4417 = vand.u32 %v4383, 4294901760
        %4418 = vmatpush.msra.mxu0 %v4417
        %v4419 = vand.u32 %v4382, 4294901760
        %4420 = vmatpush.msra.mxu0 %v4419
        %v4421 = vand.u32 %v4381, 4294901760
        %4422 = vmatpush.msra.mxu0 %v4421
        %v4423 = vand.u32 %v4380, 4294901760
        %4424 = vmatpush.msra.mxu0 %v4423
        %v4425 = vand.u32 %v4379, 4294901760
        %4426 = vmatpush.msra.mxu0 %v4425
        %v4427 = vand.u32 %v4378, 4294901760
        %v4428 = vsub.f32 %v4378, %v4427
        %v4429 = vand.u32 %v4428, 4294901760
        %v4430 = vsub.f32 %v4428, %v4429
        %v4431 = vand.u32 %v4430, 4294901760
        %4432 = vmatmul.f32.gmra.mxu0 %v4431
        %v4433 = vpop.f32.mrf.mxu0
        %v4434 = vadd.f32 0.0, %v4433
        %4435 = vdwg.mxu0
        %v4436 = vand.u32 %v4394, 4294901760
        %v4437 = vsub.f32 %v4394, %v4436
        %v4438 = vand.u32 %v4437, 4294901760
        %v4439 = vsub.f32 %v4437, %v4438
        %v4440 = vand.u32 %v4439, 4294901760
        %4441 = vmatpush.msra.mxu0 %v4440
        %v4442 = vand.u32 %v4393, 4294901760
        %v4443 = vsub.f32 %v4393, %v4442
        %v4444 = vand.u32 %v4443, 4294901760
        %v4445 = vsub.f32 %v4443, %v4444
        %v4446 = vand.u32 %v4445, 4294901760
        %4447 = vmatpush.msra.mxu0 %v4446
        %v4448 = vand.u32 %v4392, 4294901760
        %v4449 = vsub.f32 %v4392, %v4448
        %v4450 = vand.u32 %v4449, 4294901760
        %v4451 = vsub.f32 %v4449, %v4450
        %v4452 = vand.u32 %v4451, 4294901760
        %4453 = vmatpush.msra.mxu0 %v4452
        %v4454 = vand.u32 %v4391, 4294901760
        %v4455 = vsub.f32 %v4391, %v4454
        %v4456 = vand.u32 %v4455, 4294901760
        %v4457 = vsub.f32 %v4455, %v4456
        %v4458 = vand.u32 %v4457, 4294901760
        %4459 = vmatpush.msra.mxu0 %v4458
        %v4460 = vand.u32 %v4390, 4294901760
        %v4461 = vsub.f32 %v4390, %v4460
        %v4462 = vand.u32 %v4461, 4294901760
        %v4463 = vsub.f32 %v4461, %v4462
        %v4464 = vand.u32 %v4463, 4294901760
        %4465 = vmatpush.msra.mxu0 %v4464
        %v4466 = vand.u32 %v4389, 4294901760
        %v4467 = vsub.f32 %v4389, %v4466
        %v4468 = vand.u32 %v4467, 4294901760
        %v4469 = vsub.f32 %v4467, %v4468
        %v4470 = vand.u32 %v4469, 4294901760
        %4471 = vmatpush.msra.mxu0 %v4470
        %v4472 = vand.u32 %v4388, 4294901760
        %v4473 = vsub.f32 %v4388, %v4472
        %v4474 = vand.u32 %v4473, 4294901760
        %v4475 = vsub.f32 %v4473, %v4474
        %v4476 = vand.u32 %v4475, 4294901760
        %4477 = vmatpush.msra.mxu0 %v4476
        %v4478 = vand.u32 %v4387, 4294901760
        %v4479 = vsub.f32 %v4387, %v4478
        %v4480 = vand.u32 %v4479, 4294901760
        %v4481 = vsub.f32 %v4479, %v4480
        %v4482 = vand.u32 %v4481, 4294901760
        %4483 = vmatpush.msra.mxu0 %v4482
        %v4484 = vand.u32 %v4386, 4294901760
        %v4485 = vsub.f32 %v4386, %v4484
        %v4486 = vand.u32 %v4485, 4294901760
        %v4487 = vsub.f32 %v4485, %v4486
        %v4488 = vand.u32 %v4487, 4294901760
        %4489 = vmatpush.msra.mxu0 %v4488
        %v4490 = vand.u32 %v4385, 4294901760
        %v4491 = vsub.f32 %v4385, %v4490
        %v4492 = vand.u32 %v4491, 4294901760
        %v4493 = vsub.f32 %v4491, %v4492
        %v4494 = vand.u32 %v4493, 4294901760
        %4495 = vmatpush.msra.mxu0 %v4494
        %v4496 = vand.u32 %v4384, 4294901760
        %v4497 = vsub.f32 %v4384, %v4496
        %v4498 = vand.u32 %v4497, 4294901760
        %v4499 = vsub.f32 %v4497, %v4498
        %v4500 = vand.u32 %v4499, 4294901760
        %4501 = vmatpush.msra.mxu0 %v4500
        %v4502 = vand.u32 %v4383, 4294901760
        %v4503 = vsub.f32 %v4383, %v4502
        %v4504 = vand.u32 %v4503, 4294901760
        %v4505 = vsub.f32 %v4503, %v4504
        %v4506 = vand.u32 %v4505, 4294901760
        %4507 = vmatpush.msra.mxu0 %v4506
        %v4508 = vand.u32 %v4382, 4294901760
        %v4509 = vsub.f32 %v4382, %v4508
        %v4510 = vand.u32 %v4509, 4294901760
        %v4511 = vsub.f32 %v4509, %v4510
        %v4512 = vand.u32 %v4511, 4294901760
        %4513 = vmatpush.msra.mxu0 %v4512
        %v4514 = vand.u32 %v4381, 4294901760
        %v4515 = vsub.f32 %v4381, %v4514
        %v4516 = vand.u32 %v4515, 4294901760
        %v4517 = vsub.f32 %v4515, %v4516
        %v4518 = vand.u32 %v4517, 4294901760
        %4519 = vmatpush.msra.mxu0 %v4518
        %v4520 = vand.u32 %v4380, 4294901760
        %v4521 = vsub.f32 %v4380, %v4520
        %v4522 = vand.u32 %v4521, 4294901760
        %v4523 = vsub.f32 %v4521, %v4522
        %v4524 = vand.u32 %v4523, 4294901760
        %4525 = vmatpush.msra.mxu0 %v4524
        %v4526 = vand.u32 %v4379, 4294901760
        %v4527 = vsub.f32 %v4379, %v4526
        %v4528 = vand.u32 %v4527, 4294901760
        %v4529 = vsub.f32 %v4527, %v4528
        %v4530 = vand.u32 %v4529, 4294901760
        %4531 = vmatpush.msra.mxu0 %v4530
        %v4532 = vand.u32 %v4378, 4294901760
        %4533 = vmatmul.f32.gmra.mxu0 %v4532
        %v4534 = vpop.f32.mrf.mxu0
        %v4535 = vadd.f32 %v4434, %v4534
        %4536 = vdwg.mxu0
        %v4537 = vand.u32 %v4394, 4294901760
        %v4538 = vsub.f32 %v4394, %v4537
        %4539 = vmatpush.msra.mxu0 %v4538
        %v4540 = vand.u32 %v4393, 4294901760
        %v4541 = vsub.f32 %v4393, %v4540
        %4542 = vmatpush.msra.mxu0 %v4541
        %v4543 = vand.u32 %v4392, 4294901760
        %v4544 = vsub.f32 %v4392, %v4543
        %4545 = vmatpush.msra.mxu0 %v4544
        %v4546 = vand.u32 %v4391, 4294901760
        %v4547 = vsub.f32 %v4391, %v4546
        %4548 = vmatpush.msra.mxu0 %v4547
        %v4549 = vand.u32 %v4390, 4294901760
        %v4550 = vsub.f32 %v4390, %v4549
        %4551 = vmatpush.msra.mxu0 %v4550
        %v4552 = vand.u32 %v4389, 4294901760
        %v4553 = vsub.f32 %v4389, %v4552
        %4554 = vmatpush.msra.mxu0 %v4553
        %v4555 = vand.u32 %v4388, 4294901760
        %v4556 = vsub.f32 %v4388, %v4555
        %4557 = vmatpush.msra.mxu0 %v4556
        %v4558 = vand.u32 %v4387, 4294901760
        %v4559 = vsub.f32 %v4387, %v4558
        %4560 = vmatpush.msra.mxu0 %v4559
        %v4561 = vand.u32 %v4386, 4294901760
        %v4562 = vsub.f32 %v4386, %v4561
        %4563 = vmatpush.msra.mxu0 %v4562
        %v4564 = vand.u32 %v4385, 4294901760
        %v4565 = vsub.f32 %v4385, %v4564
        %4566 = vmatpush.msra.mxu0 %v4565
        %v4567 = vand.u32 %v4384, 4294901760
        %v4568 = vsub.f32 %v4384, %v4567
        %4569 = vmatpush.msra.mxu0 %v4568
        %v4570 = vand.u32 %v4383, 4294901760
        %v4571 = vsub.f32 %v4383, %v4570
        %4572 = vmatpush.msra.mxu0 %v4571
        %v4573 = vand.u32 %v4382, 4294901760
        %v4574 = vsub.f32 %v4382, %v4573
        %4575 = vmatpush.msra.mxu0 %v4574
        %v4576 = vand.u32 %v4381, 4294901760
        %v4577 = vsub.f32 %v4381, %v4576
        %4578 = vmatpush.msra.mxu0 %v4577
        %v4579 = vand.u32 %v4380, 4294901760
        %v4580 = vsub.f32 %v4380, %v4579
        %4581 = vmatpush.msra.mxu0 %v4580
        %v4582 = vand.u32 %v4379, 4294901760
        %v4583 = vsub.f32 %v4379, %v4582
        %4584 = vmatpush.msra.mxu0 %v4583
        %v4585 = vand.u32 %v4378, 4294901760
        %v4586 = vsub.f32 %v4378, %v4585
        %4587 = vmatmul.f32.gmra.mxu0 %v4586
        %v4588 = vpop.f32.mrf.mxu0
        %v4589 = vadd.f32 %v4535, %v4588
        %4590 = vdwg.mxu0
        %v4591 = vand.u32 %v4394, 4294901760
        %4592 = vmatpush.msra.mxu0 %v4591
        %v4593 = vand.u32 %v4393, 4294901760
        %4594 = vmatpush.msra.mxu0 %v4593
        %v4595 = vand.u32 %v4392, 4294901760
        %4596 = vmatpush.msra.mxu0 %v4595
        %v4597 = vand.u32 %v4391, 4294901760
        %4598 = vmatpush.msra.mxu0 %v4597
        %v4599 = vand.u32 %v4390, 4294901760
        %4600 = vmatpush.msra.mxu0 %v4599
        %v4601 = vand.u32 %v4389, 4294901760
        %4602 = vmatpush.msra.mxu0 %v4601
        %v4603 = vand.u32 %v4388, 4294901760
        %4604 = vmatpush.msra.mxu0 %v4603
        %v4605 = vand.u32 %v4387, 4294901760
        %4606 = vmatpush.msra.mxu0 %v4605
        %v4607 = vand.u32 %v4386, 4294901760
        %4608 = vmatpush.msra.mxu0 %v4607
        %v4609 = vand.u32 %v4385, 4294901760
        %4610 = vmatpush.msra.mxu0 %v4609
        %v4611 = vand.u32 %v4384, 4294901760
        %4612 = vmatpush.msra.mxu0 %v4611
        %v4613 = vand.u32 %v4383, 4294901760
        %4614 = vmatpush.msra.mxu0 %v4613
        %v4615 = vand.u32 %v4382, 4294901760
        %4616 = vmatpush.msra.mxu0 %v4615
        %v4617 = vand.u32 %v4381, 4294901760
        %4618 = vmatpush.msra.mxu0 %v4617
        %v4619 = vand.u32 %v4380, 4294901760
        %4620 = vmatpush.msra.mxu0 %v4619
        %v4621 = vand.u32 %v4379, 4294901760
        %4622 = vmatpush.msra.mxu0 %v4621
        %v4623 = vand.u32 %v4378, 4294901760
        %v4624 = vsub.f32 %v4378, %v4623
        %v4625 = vand.u32 %v4624, 4294901760
        %4626 = vmatmul.f32.gmra.mxu0 %v4625
        %v4627 = vpop.f32.mrf.mxu0
        %v4628 = vadd.f32 %v4589, %v4627
        %4629 = vdwg.mxu0
        %v4630 = vand.u32 %v4394, 4294901760
        %v4631 = vsub.f32 %v4394, %v4630
        %v4632 = vand.u32 %v4631, 4294901760
        %4633 = vmatpush.msra.mxu0 %v4632
        %v4634 = vand.u32 %v4393, 4294901760
        %v4635 = vsub.f32 %v4393, %v4634
        %v4636 = vand.u32 %v4635, 4294901760
        %4637 = vmatpush.msra.mxu0 %v4636
        %v4638 = vand.u32 %v4392, 4294901760
        %v4639 = vsub.f32 %v4392, %v4638
        %v4640 = vand.u32 %v4639, 4294901760
        %4641 = vmatpush.msra.mxu0 %v4640
        %v4642 = vand.u32 %v4391, 4294901760
        %v4643 = vsub.f32 %v4391, %v4642
        %v4644 = vand.u32 %v4643, 4294901760
        %4645 = vmatpush.msra.mxu0 %v4644
        %v4646 = vand.u32 %v4390, 4294901760
        %v4647 = vsub.f32 %v4390, %v4646
        %v4648 = vand.u32 %v4647, 4294901760
        %4649 = vmatpush.msra.mxu0 %v4648
        %v4650 = vand.u32 %v4389, 4294901760
        %v4651 = vsub.f32 %v4389, %v4650
        %v4652 = vand.u32 %v4651, 4294901760
        %4653 = vmatpush.msra.mxu0 %v4652
        %v4654 = vand.u32 %v4388, 4294901760
        %v4655 = vsub.f32 %v4388, %v4654
        %v4656 = vand.u32 %v4655, 4294901760
        %4657 = vmatpush.msra.mxu0 %v4656
        %v4658 = vand.u32 %v4387, 4294901760
        %v4659 = vsub.f32 %v4387, %v4658
        %v4660 = vand.u32 %v4659, 4294901760
        %4661 = vmatpush.msra.mxu0 %v4660
        %v4662 = vand.u32 %v4386, 4294901760
        %v4663 = vsub.f32 %v4386, %v4662
        %v4664 = vand.u32 %v4663, 4294901760
        %4665 = vmatpush.msra.mxu0 %v4664
        %v4666 = vand.u32 %v4385, 4294901760
        %v4667 = vsub.f32 %v4385, %v4666
        %v4668 = vand.u32 %v4667, 4294901760
        %4669 = vmatpush.msra.mxu0 %v4668
        %v4670 = vand.u32 %v4384, 4294901760
        %v4671 = vsub.f32 %v4384, %v4670
        %v4672 = vand.u32 %v4671, 4294901760
        %4673 = vmatpush.msra.mxu0 %v4672
        %v4674 = vand.u32 %v4383, 4294901760
        %v4675 = vsub.f32 %v4383, %v4674
        %v4676 = vand.u32 %v4675, 4294901760
        %4677 = vmatpush.msra.mxu0 %v4676
        %v4678 = vand.u32 %v4382, 4294901760
        %v4679 = vsub.f32 %v4382, %v4678
        %v4680 = vand.u32 %v4679, 4294901760
        %4681 = vmatpush.msra.mxu0 %v4680
        %v4682 = vand.u32 %v4381, 4294901760
        %v4683 = vsub.f32 %v4381, %v4682
        %v4684 = vand.u32 %v4683, 4294901760
        %4685 = vmatpush.msra.mxu0 %v4684
        %v4686 = vand.u32 %v4380, 4294901760
        %v4687 = vsub.f32 %v4380, %v4686
        %v4688 = vand.u32 %v4687, 4294901760
        %4689 = vmatpush.msra.mxu0 %v4688
        %v4690 = vand.u32 %v4379, 4294901760
        %v4691 = vsub.f32 %v4379, %v4690
        %v4692 = vand.u32 %v4691, 4294901760
        %4693 = vmatpush.msra.mxu0 %v4692
        %v4694 = vand.u32 %v4378, 4294901760
        %4695 = vmatmul.f32.gmra.mxu0 %v4694
        %v4696 = vpop.f32.mrf.mxu0
        %v4697 = vadd.f32 %v4628, %v4696
        %4698 = vdwg.mxu0
        %v4699 = vand.u32 %v4394, 4294901760
        %4700 = vmatpush.msra.mxu0 %v4699
        %v4701 = vand.u32 %v4393, 4294901760
        %4702 = vmatpush.msra.mxu0 %v4701
        %v4703 = vand.u32 %v4392, 4294901760
        %4704 = vmatpush.msra.mxu0 %v4703
        %v4705 = vand.u32 %v4391, 4294901760
        %4706 = vmatpush.msra.mxu0 %v4705
        %v4707 = vand.u32 %v4390, 4294901760
        %4708 = vmatpush.msra.mxu0 %v4707
        %v4709 = vand.u32 %v4389, 4294901760
        %4710 = vmatpush.msra.mxu0 %v4709
        %v4711 = vand.u32 %v4388, 4294901760
        %4712 = vmatpush.msra.mxu0 %v4711
        %v4713 = vand.u32 %v4387, 4294901760
        %4714 = vmatpush.msra.mxu0 %v4713
        %v4715 = vand.u32 %v4386, 4294901760
        %4716 = vmatpush.msra.mxu0 %v4715
        %v4717 = vand.u32 %v4385, 4294901760
        %4718 = vmatpush.msra.mxu0 %v4717
        %v4719 = vand.u32 %v4384, 4294901760
        %4720 = vmatpush.msra.mxu0 %v4719
        %v4721 = vand.u32 %v4383, 4294901760
        %4722 = vmatpush.msra.mxu0 %v4721
        %v4723 = vand.u32 %v4382, 4294901760
        %4724 = vmatpush.msra.mxu0 %v4723
        %v4725 = vand.u32 %v4381, 4294901760
        %4726 = vmatpush.msra.mxu0 %v4725
        %v4727 = vand.u32 %v4380, 4294901760
        %4728 = vmatpush.msra.mxu0 %v4727
        %v4729 = vand.u32 %v4379, 4294901760
        %4730 = vmatpush.msra.mxu0 %v4729
        %v4731 = vand.u32 %v4378, 4294901760
        %4732 = vmatmul.f32.gmra.mxu0 %v4731
        %v4733 = vpop.f32.mrf.mxu0
        %v4734 = vadd.f32 %v4697, %v4733
        %4735 = vdwg.mxu0
        %4736 = vst.msk [vmem:[%s620] sm:$0xff] %vm634, %v4734
        %s4737 = sand.u32 %s467, 1
        %s4738 = scalar_lea.sflag [#allocation6], %s4737
        %s4739 = sand.u32 %s467, 1
        %s4740 = smul.addr %s4739, 8
        %s4741 = scalar_lea.vmem [#allocation5], %s4740
        // Predicated region
        $region101: #{bimamba_forward_pallas.1} parent=99 // pred_check
          %p4742 = pneg %p477
        $region102: #{bimamba_forward_pallas.1} parent=99 // pred_check_branch
          %4744 = sbr.rel (%p4742) target = $region104
        $region103: #{bimamba_forward_pallas.1} parent=99 // pred_region
          %4746 = vsyncadd %s4738, 0
          %s4747 = smul.addr %s34, 8
          %s4748 = scalar_lea.hbm %s20, %s4747
          %s4750 = sshll.u32 %s4741, 4
          %s4751 = int_to_ptr.vmem [resolvable:$true] %s4750
          %s4752 = sshll.u32 %s4748, 4
          %s4753 = int_to_ptr.hbm [resolvable:$true] %s4752
          %4755 = dma.vmem_to_hbm [thread:$0]  %s4751, 128, %s4753, %s4738
        $region104: #{bimamba_forward_pallas.1} parent=99 // pred_fallthru
          _
      $region100: #{bimamba_forward_pallas.1} parent=5 // pred_fallthru
        _
      %p4756 = scmp.le.s32.totalorder 2, %s29
      // Predicated region
      $region105: #{bimamba_forward_pallas.1} parent=5 // pred_check
        %p4757 = pneg %p4756
      $region106: #{bimamba_forward_pallas.1} parent=5 // pred_check_branch
        %4759 = sbr.rel (%p4757) target = $region108
      $region107: #{bimamba_forward_pallas.1} parent=5 // pred_region
        %s4760 = ssub.s32 %s29, 2
        // Predicated region
        $region109: #{bimamba_forward_pallas.1} parent=107 // pred_check
          %p4761 = pneg %p483
        $region110: #{bimamba_forward_pallas.1} parent=107 // pred_check_branch
          %4763 = sbr.rel (%p4761) target = $region112
        $region111: #{bimamba_forward_pallas.1} parent=107 // pred_region
          %s4764 = sand.u32 %s468, 1
          %s4765 = scalar_lea.sflag [#allocation6], %s4764
          %s4766 = sand.u32 %s468, 1
          %s4767 = smul.addr %s4766, 8
          %s4768 = scalar_lea.vmem [#allocation5], %s4767
          %4770 = dma.done %s4765, 128
        $region112: #{bimamba_forward_pallas.1} parent=107 // pred_fallthru
          _
      $region108: #{bimamba_forward_pallas.1} parent=5 // pred_fallthru
        _
    $region6: #{bimamba_forward_pallas.1} parent=1 // loop_footer
      %s33 = sadd.s32 1, %s29
    $region7: #{bimamba_forward_pallas.1} parent=1 // loop_footer_branch
      %28 = sbr.rel target = $region3
    $region8: #{bimamba_forward_pallas.1} parent=1 // loop_exit
      _
    %4771 = vsyncpa [#allocation6], 1
    %s4772 = scalar_lea.sflag [#allocation6], 1
    %4773 = vsyncpa %s4772, 1

</llo_original>
